<compile_context>
chip_gen: v6e
topology: v6e:2x2x1
jax: 0.10.0
libtpu: 0.0.40
codegen_flags: <defaults>
</compile_context>

<pallas_src>
import functools

import numpy as np
import jax
import jax.numpy as jnp
from jax.experimental import pallas as pl
from jax.experimental.pallas import tpu as pltpu


# ----------------------------------------------------------------------------
# Helpers
# ----------------------------------------------------------------------------
def _gelu_tanh(x):
    c = 0.7978845608028654  # sqrt(2/pi)
    return 0.5 * x * (1.0 + jnp.tanh(c * (x + 0.044715 * x * x * x)))


def build_relative_position_index(ws: int) -> jnp.ndarray:
    """Same construction as WindowAttention.__init__ (torch.meshgrid 'ij')."""
    coords = np.stack(np.meshgrid(np.arange(ws), np.arange(ws), indexing="ij"))
    cf = coords.reshape(2, -1)                       # (2, N)
    rc = cf[:, :, None] - cf[:, None, :]             # (2, N, N)
    rc = rc.transpose(1, 2, 0).astype(np.int64)      # (N, N, 2)
    rc[:, :, 0] += ws - 1
    rc[:, :, 1] += ws - 1
    rc[:, :, 0] *= 2 * ws - 1
    return jnp.asarray(rc.sum(-1), jnp.int32)        # (N, N)


def build_attn_mask(H: int, W: int, ws: int, shift: int) -> jnp.ndarray:
    """Standard Swin SW-MSA mask (as built in BasicLayer), shape (nW, N, N)."""
    img = np.zeros((H, W), np.float32)
    cnt = 0
    for hs in (slice(0, H - ws), slice(H - ws, H - shift), slice(H - shift, H)):
        for wsl in (slice(0, W - ws), slice(W - ws, W - shift), slice(W - shift, W)):
            img[hs, wsl] = cnt
            cnt += 1
    mw = img.reshape(H // ws, ws, W // ws, ws).transpose(0, 2, 1, 3)
    mw = mw.reshape(-1, ws * ws)                     # (nW, N)
    diff = mw[:, None, :] - mw[:, :, None]
    return jnp.asarray(np.where(diff != 0, -100.0, 0.0), jnp.float32)


def _window_partition_flat(x_bhwc, ws):
    B, H, W, C = x_bhwc.shape
    nWh, nWw = H // ws, W // ws
    x = x_bhwc.reshape(B, nWh, ws, nWw, ws, C).transpose(0, 1, 3, 2, 4, 5)
    return x.reshape(B, nWh * nWw * ws * ws, C)      # (B, nW*N, C)


def _window_reverse_flat(xw, ws, H, W):
    B, T, C = xw.shape
    nWh, nWw = H // ws, W // ws
    x = xw.reshape(B, nWh, nWw, ws, ws, C).transpose(0, 1, 3, 2, 4, 5)
    return x.reshape(B, H, W, C)


def _pick_group_size(nW, N, B):
    """Largest window-group size G (divisor of nW) with G*N <= 256 tokens per
    grid step, while keeping at least ~4 total grid steps for pipelining."""
    best = 1
    for g in range(1, nW + 1):
        if nW % g:
            continue
        if g * N > 256:
            break
        if g == 1 or B * (nW // g) >= 4:
            best = g
    return best


# ----------------------------------------------------------------------------
# Fused Pallas kernel: one group of windows of one batch element per grid step.
# ----------------------------------------------------------------------------
def swin_block_kernel(xw_ref, g1_ref, b1_ref, wqkv_ref, bqkv_ref, rel_ref,
                      wproj_ref, bproj_ref, g2_ref, b2_ref,
                      w1_ref, bfc1_ref, w2_ref, bfc2_ref, *rest,
                      group_windows, win_tokens, num_heads, head_dim,
                      has_mask, eps):
    if has_mask:
        mask_ref, o_ref, acc_ref = rest
    else:
        o_ref, acc_ref = rest
        mask_ref = None

    G = group_windows
    N = win_tokens
    hd = head_dim
    C = num_heads * hd
    T = G * N

    x = xw_ref[0]                                        # (T, C) f32

    # ---- LayerNorm 1 (f32 statistics) ----
    mu = jnp.mean(x, axis=-1, keepdims=True)
    var = jnp.mean(jnp.square(x - mu), axis=-1, keepdims=True)
    xn = (x - mu) * jax.lax.rsqrt(var + eps)
    xn = xn * g1_ref[...] + b1_ref[...]

    # ---- QKV projection (bf16 operands, f32 accum; qk scale pre-folded) ----
    qkv = jnp.dot(xn.astype(jnp.bfloat16), wqkv_ref[...],
                  preferred_element_type=jnp.float32) + bqkv_ref[...]   # (T, 3C)

    # ---- attention: per-head loop, windows batched as a leading batch dim ----
    for h in range(num_heads):
        lo = h * hd
        q_h = qkv[:, lo:lo + hd].reshape(G, N, hd).astype(jnp.bfloat16)
        k_h = qkv[:, C + lo:C + lo + hd].reshape(G, N, hd).astype(jnp.bfloat16)
        v_h = qkv[:, 2 * C + lo:2 * C + lo + hd].reshape(G, N, hd).astype(jnp.bfloat16)

        att = jnp.einsum('gnd,gmd->gnm', q_h, k_h,
                         preferred_element_type=jnp.float32)            # (G, N, N)
        att = att + rel_ref[h][None]
        if has_mask:
            att = att + mask_ref[...]

        # softmax (f32 max/sum; EUP approx reciprocal)
        att = att - jnp.max(att, axis=-1, keepdims=True)
        p = jnp.exp(att)
        p = p * pl.reciprocal(jnp.sum(p, axis=-1, keepdims=True), approx=True)

        o_h = jnp.einsum('gnm,gmd->gnd', p.astype(jnp.bfloat16), v_h,
                         preferred_element_type=jnp.float32)            # (G, N, hd)
        acc_ref[:, lo:lo + hd] = o_h.reshape(T, hd)      # scratch write, no concat

    attn_out = acc_ref[...]                              # (T, C) f32

    # ---- output projection + residual 1 ----
    y = jnp.dot(attn_out.astype(jnp.bfloat16), wproj_ref[...],
                preferred_element_type=jnp.float32) + bproj_ref[...]
    res1 = x + y

    # ---- LayerNorm 2 + MLP + residual 2 ----
    mu2 = jnp.mean(res1, axis=-1, keepdims=True)
    var2 = jnp.mean(jnp.square(res1 - mu2), axis=-1, keepdims=True)
    xn2 = (res1 - mu2) * jax.lax.rsqrt(var2 + eps)
    xn2 = xn2 * g2_ref[...] + b2_ref[...]
    h1 = jnp.dot(xn2.astype(jnp.bfloat16), w1_ref[...],
                 preferred_element_type=jnp.float32) + bfc1_ref[...]
    h1 = _gelu_tanh(h1)
    y2 = jnp.dot(h1.astype(jnp.bfloat16), w2_ref[...],
                 preferred_element_type=jnp.float32) + bfc2_ref[...]

    o_ref[0] = (res1 + y2).astype(o_ref.dtype)


# ----------------------------------------------------------------------------
# Wrapper: mirrors SwinTransformerBlock.forward(x, mask_matrix).
# ----------------------------------------------------------------------------
def swin_block_forward(x, params, mask_matrix, *, H, W, window_size,
                       shift_size, num_heads):
    B, L, C = x.shape
    assert L == H * W, "input feature has wrong size"
    ws = window_size
    assert H % ws == 0 and W % ws == 0, "padding path not implemented"
    nWh, nWw = H // ws, W // ws
    nW = nWh * nWw
    N = ws * ws
    hd = C // num_heads
    scale = hd ** (-0.5)
    Chid = params["w1"].shape[1]

    G = _pick_group_size(nW, N, B)     # windows per grid step
    nG = nW // G
    Tg = G * N
    has_mask = shift_size > 0

    # Cyclic shift + window partition of RAW x (LayerNorm1 is per-token, so it
    # commutes with this permutation and is fused in-kernel; the raw windows
    # also serve as the residual shortcut inside the kernel).
    xs = x.reshape(B, H, W, C)
    if has_mask:
        xs = jnp.roll(xs, shift=(-shift_size, -shift_size), axis=(1, 2))
    xw = _window_partition_flat(xs, ws)                         # (B, nW*N, C)

    # Static relative-position-bias gather -> (num_heads, N, N), f32.
    rel_bias = params["rel_bias_table"][params["rel_index"].reshape(-1)]
    rel_bias = rel_bias.reshape(N, N, num_heads).transpose(2, 0, 1)
    rel_bias = rel_bias.astype(jnp.float32)

    # Fold qk scale into the Q columns; pre-cast weights to bf16 (biases f32).
    q_scale = jnp.concatenate([jnp.full((C,), scale, jnp.float32),
                               jnp.ones((2 * C,), jnp.float32)])
    wqkv_b = (params["wqkv"] * q_scale[None, :]).astype(jnp.bfloat16)
    bqkv_s = params["bqkv"] * q_scale[None, :]
    wproj_b = params["wproj"].astype(jnp.bfloat16)
    w1_b = params["w1"].astype(jnp.bfloat16)
    w2_b = params["w2"].astype(jnp.bfloat16)

    kern = functools.partial(
        swin_block_kernel, group_windows=G, win_tokens=N, num_heads=num_heads,
        head_dim=hd, has_mask=has_mask, eps=1e-5)

    rep2 = lambda b, g: (0, 0)
    rep3 = lambda b, g: (0, 0, 0)
    in_specs = [
        pl.BlockSpec((1, Tg, C), lambda b, g: (b, g, 0)),        # x windows
        pl.BlockSpec((1, C), rep2),                              # norm1 gamma
        pl.BlockSpec((1, C), rep2),                              # norm1 beta
        pl.BlockSpec((C, 3 * C), rep2),                          # Wqkv (bf16)
        pl.BlockSpec((1, 3 * C), rep2),                          # bqkv
        pl.BlockSpec((num_heads, N, N), rep3),                   # rel bias
        pl.BlockSpec((C, C), rep2),                              # Wproj (bf16)
        pl.BlockSpec((1, C), rep2),                              # bproj
        pl.BlockSpec((1, C), rep2),                              # norm2 gamma
        pl.BlockSpec((1, C), rep2),                              # norm2 beta
        pl.BlockSpec((C, Chid), rep2),                           # fc1 W (bf16)
        pl.BlockSpec((1, Chid), rep2),                           # fc1 b
        pl.BlockSpec((Chid, C), rep2),                           # fc2 W (bf16)
        pl.BlockSpec((1, C), rep2),                              # fc2 b
    ]
    inputs = [xw, params["g1"], params["b1"], wqkv_b, bqkv_s, rel_bias,
              wproj_b, params["bproj"], params["g2"], params["b2"],
              w1_b, params["bfc1"], w2_b, params["bfc2"]]
    if has_mask:
        in_specs.append(pl.BlockSpec((G, N, N), lambda b, g: (g, 0, 0)))
        inputs.append(mask_matrix.astype(jnp.float32))

    out_w = pl.pallas_call(
        kern,
        out_shape=jax.ShapeDtypeStruct((B, nW * N, C), x.dtype),
        grid_spec=pltpu.PrefetchScalarGridSpec(
            num_scalar_prefetch=0,
            grid=(B, nG),
            in_specs=in_specs,
            out_specs=pl.BlockSpec((1, Tg, C), lambda b, g: (b, g, 0)),
            scratch_shapes=[pltpu.VMEM((Tg, C), jnp.float32)],
        ),
        compiler_params=pltpu.CompilerParams(
            dimension_semantics=("parallel", "parallel"),
            vmem_limit_bytes=32 * 1024 * 1024),
    )(*inputs)

    # window reverse + reverse cyclic shift (residuals already added in-kernel)
    out = _window_reverse_flat(out_w, ws, H, W)
    if has_mask:
        out = jnp.roll(out, shift=(shift_size, shift_size), axis=(1, 2))
    return out.reshape(B, L, C)


# ----------------------------------------------------------------------------
# Pure-JAX f32 reference, structured exactly like the PyTorch forward.
# ----------------------------------------------------------------------------
def swin_block_reference(x, params, mask_matrix, *, H, W, window_size,
                         shift_size, num_heads):
    B, L, C = x.shape
    ws = window_size
    nWh, nWw = H // ws, W // ws
    nW = nWh * nWw
    N = ws * ws
    hd = C // num_heads
    scale = hd ** (-0.5)
    eps = 1e-5

    def layernorm(v, g, b):
        mu = jnp.mean(v, -1, keepdims=True)
        var = jnp.mean((v - mu) ** 2, -1, keepdims=True)
        return (v - mu) / jnp.sqrt(var + eps) * g + b

    shortcut = x
    xn = layernorm(x, params["g1"], params["b1"])
    xs = xn.reshape(B, H, W, C)
    if shift_size > 0:
        xs = jnp.roll(xs, (-shift_size, -shift_size), axis=(1, 2))
    xw = xs.reshape(B, nWh, ws, nWw, ws, C).transpose(0, 1, 3, 2, 4, 5)
    xw = xw.reshape(B * nW, N, C)

    qkv = xw @ params["wqkv"] + params["bqkv"]
    qkv = qkv.reshape(-1, N, 3, num_heads, hd).transpose(2, 0, 3, 1, 4)
    q, k, v = qkv[0] * scale, qkv[1], qkv[2]             # (B_, nH, N, hd)
    att = jnp.einsum("bhnd,bhmd->bhnm", q, k)
    rel = params["rel_bias_table"][params["rel_index"].reshape(-1)]
    rel = rel.reshape(N, N, num_heads).transpose(2, 0, 1)
    att = att + rel[None]
    if shift_size > 0:
        att = att.reshape(B, nW, num_heads, N, N) + mask_matrix[None, :, None]
        att = att.reshape(B * nW, num_heads, N, N)
    att = jax.nn.softmax(att, axis=-1)
    out = jnp.einsum("bhnm,bhmd->bhnd", att, v).transpose(0, 2, 1, 3)
    out = out.reshape(B * nW, N, C) @ params["wproj"] + params["bproj"]

    out = out.reshape(B, nWh, nWw, ws, ws, C).transpose(0, 1, 3, 2, 4, 5)
    out = out.reshape(B, H, W, C)
    if shift_size > 0:
        out = jnp.roll(out, (shift_size, shift_size), axis=(1, 2))
    out = out.reshape(B, L, C)

    x1 = shortcut + out
    xn2 = layernorm(x1, params["g2"], params["b2"])
    h = _gelu_tanh(xn2 @ params["w1"] + params["bfc1"])
    return x1 + (h @ params["w2"] + params["bfc2"])


# ----------------------------------------------------------------------------
if __name__ == "__main__":
    # dim=32, 4 heads, 16x16 feature map, window_size=8, mlp_ratio=4 -> hidden=128.
    B, C, H, W = 2, 32, 16, 16
    window_size, num_heads = 8, 4
    hidden = 4 * C
    L = H * W
    N = window_size * window_size

    key = jax.random.PRNGKey(0)
    ks = jax.random.split(key, 12)
    x = jax.random.normal(ks[0], (B, L, C), jnp.float32)

    params = {
        "g1": 1.0 + 0.1 * jax.random.normal(ks[1], (1, C), jnp.float32),
        "b1": 0.1 * jax.random.normal(ks[2], (1, C), jnp.float32),
        "wqkv": 0.1 * jax.random.normal(ks[3], (C, 3 * C), jnp.float32),
        "bqkv": 0.05 * jax.random.normal(ks[4], (1, 3 * C), jnp.float32),
        "wproj": 0.1 * jax.random.normal(ks[5], (C, C), jnp.float32),
        "bproj": 0.05 * jax.random.normal(ks[6], (1, C), jnp.float32),
        "g2": 1.0 + 0.1 * jax.random.normal(ks[7], (1, C), jnp.float32),
        "b2": 0.1 * jax.random.normal(ks[8], (1, C), jnp.float32),
        "w1": 0.1 * jax.random.normal(ks[9], (C, hidden), jnp.float32),
        "bfc1": 0.05 * jax.random.normal(ks[10], (1, hidden), jnp.float32),
        "w2": 0.1 * jax.random.normal(ks[11], (hidden, C), jnp.float32),
        "bfc2": jnp.zeros((1, C), jnp.float32),
        "rel_bias_table": 0.02 * jax.random.normal(
            jax.random.PRNGKey(1),
            ((2 * window_size - 1) * (2 * window_size - 1), num_heads),
            jnp.float32),
        "rel_index": build_relative_position_index(window_size),
    }
    mask_matrix = build_attn_mask(H, W, window_size, 4)          # (nW, N, N)

    # Exercise both the SW-MSA (shifted + masked) and W-MSA (no mask) paths.
    for shift_size in (4, 0):
        kwargs = dict(H=H, W=W, window_size=window_size,
                      shift_size=shift_size, num_heads=num_heads)
        out = jax.block_until_ready(
            swin_block_forward(x, params, mask_matrix, **kwargs))
        ref = jax.block_until_ready(
            swin_block_reference(x, params, mask_matrix, **kwargs))
        assert out.shape == (B, L, C), out.shape
        # bf16 MXU operands with f32 accumulation -> loosen tolerance vs f32 ref.
        assert jnp.max(jnp.abs(out - ref)) < 7.5e-2
        assert jnp.mean(jnp.abs(out - ref)) < 1e-2

    print("KERNEL_OK")
</pallas_src>

<mosaic_0001>
module attributes {stable_mosaic.version = 11 : i64} {
  func.func @swin_block_kernel(%arg0: i32, %arg1: i32, %arg2: memref<1x128x32xf32, #tpu.memory_space<vmem>>, %arg3: memref<1x32xf32, #tpu.memory_space<vmem>>, %arg4: memref<1x32xf32, #tpu.memory_space<vmem>>, %arg5: memref<32x96xbf16, #tpu.memory_space<vmem>>, %arg6: memref<1x96xf32, #tpu.memory_space<vmem>>, %arg7: memref<4x64x64xf32, #tpu.memory_space<vmem>>, %arg8: memref<32x32xbf16, #tpu.memory_space<vmem>>, %arg9: memref<1x32xf32, #tpu.memory_space<vmem>>, %arg10: memref<1x32xf32, #tpu.memory_space<vmem>>, %arg11: memref<1x32xf32, #tpu.memory_space<vmem>>, %arg12: memref<32x128xbf16, #tpu.memory_space<vmem>>, %arg13: memref<1x128xf32, #tpu.memory_space<vmem>>, %arg14: memref<128x32xbf16, #tpu.memory_space<vmem>>, %arg15: memref<1x32xf32, #tpu.memory_space<vmem>>, %arg16: memref<2x64x64xf32, #tpu.memory_space<vmem>>, %arg17: memref<1x128x32xf32, #tpu.memory_space<vmem>>, %arg18: memref<128x32xf32, #tpu.memory_space<vmem>>) attributes {dimension_semantics = [#tpu.dimension_semantics<parallel>, #tpu.dimension_semantics<parallel>], iteration_bounds = array<i64: 2, 2>, scalar_prefetch = 0 : i64, scratch_operands = 1 : i64, tpu.core_type = #tpu.core_type<tc>, window_params = [{transform_indices = @transform_0, window_bounds = array<i64: 1, 128, 32>}, {pipeline_mode = #tpu.pipeline_mode<synchronous>, transform_indices = @transform_1, window_bounds = array<i64: 1, 32>}, {pipeline_mode = #tpu.pipeline_mode<synchronous>, transform_indices = @transform_2, window_bounds = array<i64: 1, 32>}, {pipeline_mode = #tpu.pipeline_mode<synchronous>, transform_indices = @transform_3, window_bounds = array<i64: 32, 96>}, {pipeline_mode = #tpu.pipeline_mode<synchronous>, transform_indices = @transform_4, window_bounds = array<i64: 1, 96>}, {pipeline_mode = #tpu.pipeline_mode<synchronous>, transform_indices = @transform_5, window_bounds = array<i64: 4, 64, 64>}, {pipeline_mode = #tpu.pipeline_mode<synchronous>, transform_indices = @transform_6, window_bounds = array<i64: 32, 32>}, {pipeline_mode = #tpu.pipeline_mode<synchronous>, transform_indices = @transform_7, window_bounds = array<i64: 1, 32>}, {pipeline_mode = #tpu.pipeline_mode<synchronous>, transform_indices = @transform_8, window_bounds = array<i64: 1, 32>}, {pipeline_mode = #tpu.pipeline_mode<synchronous>, transform_indices = @transform_9, window_bounds = array<i64: 1, 32>}, {pipeline_mode = #tpu.pipeline_mode<synchronous>, transform_indices = @transform_10, window_bounds = array<i64: 32, 128>}, {pipeline_mode = #tpu.pipeline_mode<synchronous>, transform_indices = @transform_11, window_bounds = array<i64: 1, 128>}, {pipeline_mode = #tpu.pipeline_mode<synchronous>, transform_indices = @transform_12, window_bounds = array<i64: 128, 32>}, {pipeline_mode = #tpu.pipeline_mode<synchronous>, transform_indices = @transform_13, window_bounds = array<i64: 1, 32>}, {transform_indices = @transform_14, window_bounds = array<i64: 2, 64, 64>}, {transform_indices = @transform_15, window_bounds = array<i64: 1, 128, 32>}]} {
    %c0 = arith.constant 0 : index
    %c0_0 = arith.constant 0 : index
    %c0_1 = arith.constant 0 : index
    %0 = vector.load %arg2[%c0, %c0_0, %c0_1] : memref<1x128x32xf32, #tpu.memory_space<vmem>>, vector<1x128x32xf32>
    %1 = vector.shape_cast %0 : vector<1x128x32xf32> to vector<128x32xf32>
    %cst = arith.constant dense<0.000000e+00> : vector<128xf32>
    %2 = vector.multi_reduction <add>, %1, %cst [1] : vector<128x32xf32> to vector<128xf32>
    %3 = vector.shape_cast %2 : vector<128xf32> to vector<128x1xf32>
    %cst_2 = arith.constant 3.200000e+01 : f32
    %4 = vector.broadcast %cst_2 : f32 to vector<128x1xf32>
    %5 = arith.divf %3, %4 : vector<128x1xf32>
    %6 = vector.broadcast %5 : vector<128x1xf32> to vector<128x32xf32>
    %7 = arith.subf %1, %6 : vector<128x32xf32>
    %8 = arith.mulf %7, %7 : vector<128x32xf32>
    %cst_3 = arith.constant dense<0.000000e+00> : vector<128xf32>
    %9 = vector.multi_reduction <add>, %8, %cst_3 [1] : vector<128x32xf32> to vector<128xf32>
    %10 = vector.shape_cast %9 : vector<128xf32> to vector<128x1xf32>
    %cst_4 = arith.constant 3.200000e+01 : f32
    %11 = vector.broadcast %cst_4 : f32 to vector<128x1xf32>
    %12 = arith.divf %10, %11 : vector<128x1xf32>
    %13 = vector.broadcast %5 : vector<128x1xf32> to vector<128x32xf32>
    %14 = arith.subf %1, %13 : vector<128x32xf32>
    %cst_5 = arith.constant 9.99999974E-6 : f32
    %15 = vector.broadcast %cst_5 : f32 to vector<128x1xf32>
    %16 = arith.addf %12, %15 : vector<128x1xf32>
    %17 = math.rsqrt %16 : vector<128x1xf32>
    %18 = vector.broadcast %17 : vector<128x1xf32> to vector<128x32xf32>
    %19 = arith.mulf %14, %18 : vector<128x32xf32>
    %c0_6 = arith.constant 0 : index
    %c0_7 = arith.constant 0 : index
    %20 = vector.load %arg3[%c0_6, %c0_7] : memref<1x32xf32, #tpu.memory_space<vmem>>, vector<1x32xf32>
    %21 = vector.broadcast %20 : vector<1x32xf32> to vector<128x32xf32>
    %22 = arith.mulf %19, %21 : vector<128x32xf32>
    %c0_8 = arith.constant 0 : index
    %c0_9 = arith.constant 0 : index
    %23 = vector.load %arg4[%c0_8, %c0_9] : memref<1x32xf32, #tpu.memory_space<vmem>>, vector<1x32xf32>
    %24 = vector.broadcast %23 : vector<1x32xf32> to vector<128x32xf32>
    %25 = arith.addf %22, %24 : vector<128x32xf32>
    %26 = arith.truncf %25 : vector<128x32xf32> to vector<128x32xbf16>
    %c0_10 = arith.constant 0 : index
    %c0_11 = arith.constant 0 : index
    %27 = vector.load %arg5[%c0_10, %c0_11] : memref<32x96xbf16, #tpu.memory_space<vmem>>, vector<32x96xbf16>
    %cst_12 = arith.constant dense<0.000000e+00> : vector<128x96xf32>
    %28 = tpu.matmul %26, %27, %cst_12 {dimension_numbers = #tpu.dot_dimension_numbers<[1], [0], [0], [1], [0, 0, 1, 1], [], []>} : vector<128x32xbf16>, vector<32x96xbf16>, vector<128x96xf32> -> vector<128x96xf32>
    %c0_13 = arith.constant 0 : index
    %c0_14 = arith.constant 0 : index
    %29 = vector.load %arg6[%c0_13, %c0_14] : memref<1x96xf32, #tpu.memory_space<vmem>>, vector<1x96xf32>
    %30 = vector.broadcast %29 : vector<1x96xf32> to vector<128x96xf32>
    %31 = arith.addf %28, %30 : vector<128x96xf32>
    %32 = vector.extract_strided_slice %31 {offsets = [0, 0], sizes = [128, 8], strides = [1, 1]} : vector<128x96xf32> to vector<128x8xf32>
    %33 = vector.shape_cast %32 : vector<128x8xf32> to vector<2x64x8xf32>
    %34 = arith.truncf %33 : vector<2x64x8xf32> to vector<2x64x8xbf16>
    %35 = vector.extract_strided_slice %31 {offsets = [0, 32], sizes = [128, 8], strides = [1, 1]} : vector<128x96xf32> to vector<128x8xf32>
    %36 = vector.shape_cast %35 : vector<128x8xf32> to vector<2x64x8xf32>
    %37 = arith.truncf %36 : vector<2x64x8xf32> to vector<2x64x8xbf16>
    %38 = vector.extract_strided_slice %31 {offsets = [0, 64], sizes = [128, 8], strides = [1, 1]} : vector<128x96xf32> to vector<128x8xf32>
    %39 = vector.shape_cast %38 : vector<128x8xf32> to vector<2x64x8xf32>
    %40 = arith.truncf %39 : vector<2x64x8xf32> to vector<2x64x8xbf16>
    "tpu.trace_start"() <{level = 10 : i32, message = "gnd,gmd->gnm"}> : () -> ()
    %cst_15 = arith.constant dense<0.000000e+00> : vector<2x64x64xf32>
    %41 = tpu.matmul %34, %37, %cst_15 {dimension_numbers = #tpu.dot_dimension_numbers<[2], [2], [1], [1], [0, 0, 0, 1, 1, 1], [0], [0]>} : vector<2x64x8xbf16>, vector<2x64x8xbf16>, vector<2x64x64xf32> -> vector<2x64x64xf32>
    "tpu.trace_stop"() : () -> ()
    %c0_16 = arith.constant 0 : index
    %c0_17 = arith.constant 0 : index
    %c0_18 = arith.constant 0 : index
    %42 = vector.load %arg7[%c0_16, %c0_17, %c0_18] : memref<4x64x64xf32, #tpu.memory_space<vmem>>, vector<1x64x64xf32>
    %43 = vector.shape_cast %42 : vector<1x64x64xf32> to vector<64x64xf32>
    %44 = vector.shape_cast %43 : vector<64x64xf32> to vector<1x64x64xf32>
    %45 = vector.broadcast %44 : vector<1x64x64xf32> to vector<2x64x64xf32>
    %46 = arith.addf %41, %45 : vector<2x64x64xf32>
    %c0_19 = arith.constant 0 : index
    %c0_20 = arith.constant 0 : index
    %c0_21 = arith.constant 0 : index
    %47 = vector.load %arg16[%c0_19, %c0_20, %c0_21] : memref<2x64x64xf32, #tpu.memory_space<vmem>>, vector<2x64x64xf32>
    %48 = arith.addf %46, %47 : vector<2x64x64xf32>
    %cst_22 = arith.constant dense<0xFF800000> : vector<2x64xf32>
    %49 = vector.multi_reduction <maximumf>, %48, %cst_22 [2] : vector<2x64x64xf32> to vector<2x64xf32>
    %50 = vector.shape_cast %49 : vector<2x64xf32> to vector<2x64x1xf32>
    %51 = vector.broadcast %50 : vector<2x64x1xf32> to vector<2x64x64xf32>
    %52 = arith.subf %48, %51 : vector<2x64x64xf32>
    %53 = math.exp %52 : vector<2x64x64xf32>
    %cst_23 = arith.constant dense<0.000000e+00> : vector<2x64xf32>
    %54 = vector.multi_reduction <add>, %53, %cst_23 [2] : vector<2x64x64xf32> to vector<2x64xf32>
    %55 = vector.shape_cast %54 : vector<2x64xf32> to vector<2x64x1xf32>
    %56 = tpu.reciprocal %55 {approx = true} : vector<2x64x1xf32> -> vector<2x64x1xf32>
    %57 = vector.broadcast %56 : vector<2x64x1xf32> to vector<2x64x64xf32>
    %58 = arith.mulf %53, %57 : vector<2x64x64xf32>
    %59 = arith.truncf %58 : vector<2x64x64xf32> to vector<2x64x64xbf16>
    "tpu.trace_start"() <{level = 10 : i32, message = "gnm,gmd->gnd"}> : () -> ()
    %cst_24 = arith.constant dense<0.000000e+00> : vector<2x64x8xf32>
    %60 = tpu.matmul %59, %40, %cst_24 {dimension_numbers = #tpu.dot_dimension_numbers<[2], [1], [1], [2], [0, 0, 0, 1, 1, 2], [0], [0]>} : vector<2x64x64xbf16>, vector<2x64x8xbf16>, vector<2x64x8xf32> -> vector<2x64x8xf32>
    "tpu.trace_stop"() : () -> ()
    %61 = vector.shape_cast %60 : vector<2x64x8xf32> to vector<128x8xf32>
    %c0_25 = arith.constant 0 : index
    %c0_26 = arith.constant 0 : index
    %62 = vector.load %arg18[%c0_25, %c0_26] : memref<128x32xf32, #tpu.memory_space<vmem>>, vector<128x8xf32>
    tpu.vector_store %arg18[%c0_25, %c0_26], %61 {strides = array<i32>} : memref<128x32xf32, #tpu.memory_space<vmem>>, vector<128x8xf32>,
    %63 = vector.extract_strided_slice %31 {offsets = [0, 8], sizes = [128, 8], strides = [1, 1]} : vector<128x96xf32> to vector<128x8xf32>
    %64 = vector.shape_cast %63 : vector<128x8xf32> to vector<2x64x8xf32>
    %65 = arith.truncf %64 : vector<2x64x8xf32> to vector<2x64x8xbf16>
    %66 = vector.extract_strided_slice %31 {offsets = [0, 40], sizes = [128, 8], strides = [1, 1]} : vector<128x96xf32> to vector<128x8xf32>
    %67 = vector.shape_cast %66 : vector<128x8xf32> to vector<2x64x8xf32>
    %68 = arith.truncf %67 : vector<2x64x8xf32> to vector<2x64x8xbf16>
    %69 = vector.extract_strided_slice %31 {offsets = [0, 72], sizes = [128, 8], strides = [1, 1]} : vector<128x96xf32> to vector<128x8xf32>
    %70 = vector.shape_cast %69 : vector<128x8xf32> to vector<2x64x8xf32>
    %71 = arith.truncf %70 : vector<2x64x8xf32> to vector<2x64x8xbf16>
    "tpu.trace_start"() <{level = 10 : i32, message = "gnd,gmd->gnm"}> : () -> ()
    %cst_27 = arith.constant dense<0.000000e+00> : vector<2x64x64xf32>
    %72 = tpu.matmul %65, %68, %cst_27 {dimension_numbers = #tpu.dot_dimension_numbers<[2], [2], [1], [1], [0, 0, 0, 1, 1, 1], [0], [0]>} : vector<2x64x8xbf16>, vector<2x64x8xbf16>, vector<2x64x64xf32> -> vector<2x64x64xf32>
    "tpu.trace_stop"() : () -> ()
    %c1 = arith.constant 1 : index
    %c0_28 = arith.constant 0 : index
    %c0_29 = arith.constant 0 : index
    %73 = vector.load %arg7[%c1, %c0_28, %c0_29] : memref<4x64x64xf32, #tpu.memory_space<vmem>>, vector<1x64x64xf32>
    %74 = vector.shape_cast %73 : vector<1x64x64xf32> to vector<64x64xf32>
    %75 = vector.shape_cast %74 : vector<64x64xf32> to vector<1x64x64xf32>
    %76 = vector.broadcast %75 : vector<1x64x64xf32> to vector<2x64x64xf32>
    %77 = arith.addf %72, %76 : vector<2x64x64xf32>
    %c0_30 = arith.constant 0 : index
    %c0_31 = arith.constant 0 : index
    %c0_32 = arith.constant 0 : index
    %78 = vector.load %arg16[%c0_30, %c0_31, %c0_32] : memref<2x64x64xf32, #tpu.memory_space<vmem>>, vector<2x64x64xf32>
    %79 = arith.addf %77, %78 : vector<2x64x64xf32>
    %cst_33 = arith.constant dense<0xFF800000> : vector<2x64xf32>
    %80 = vector.multi_reduction <maximumf>, %79, %cst_33 [2] : vector<2x64x64xf32> to vector<2x64xf32>
    %81 = vector.shape_cast %80 : vector<2x64xf32> to vector<2x64x1xf32>
    %82 = vector.broadcast %81 : vector<2x64x1xf32> to vector<2x64x64xf32>
    %83 = arith.subf %79, %82 : vector<2x64x64xf32>
    %84 = math.exp %83 : vector<2x64x64xf32>
    %cst_34 = arith.constant dense<0.000000e+00> : vector<2x64xf32>
    %85 = vector.multi_reduction <add>, %84, %cst_34 [2] : vector<2x64x64xf32> to vector<2x64xf32>
    %86 = vector.shape_cast %85 : vector<2x64xf32> to vector<2x64x1xf32>
    %87 = tpu.reciprocal %86 {approx = true} : vector<2x64x1xf32> -> vector<2x64x1xf32>
    %88 = vector.broadcast %87 : vector<2x64x1xf32> to vector<2x64x64xf32>
    %89 = arith.mulf %84, %88 : vector<2x64x64xf32>
    %90 = arith.truncf %89 : vector<2x64x64xf32> to vector<2x64x64xbf16>
    "tpu.trace_start"() <{level = 10 : i32, message = "gnm,gmd->gnd"}> : () -> ()
    %cst_35 = arith.constant dense<0.000000e+00> : vector<2x64x8xf32>
    %91 = tpu.matmul %90, %71, %cst_35 {dimension_numbers = #tpu.dot_dimension_numbers<[2], [1], [1], [2], [0, 0, 0, 1, 1, 2], [0], [0]>} : vector<2x64x64xbf16>, vector<2x64x8xbf16>, vector<2x64x8xf32> -> vector<2x64x8xf32>
    "tpu.trace_stop"() : () -> ()
    %92 = vector.shape_cast %91 : vector<2x64x8xf32> to vector<128x8xf32>
    %c0_36 = arith.constant 0 : index
    %c8 = arith.constant 8 : index
    %93 = vector.load %arg18[%c0_36, %c8] : memref<128x32xf32, #tpu.memory_space<vmem>>, vector<128x8xf32>
    tpu.vector_store %arg18[%c0_36, %c8], %92 {strides = array<i32>} : memref<128x32xf32, #tpu.memory_space<vmem>>, vector<128x8xf32>,
    %94 = vector.extract_strided_slice %31 {offsets = [0, 16], sizes = [128, 8], strides = [1, 1]} : vector<128x96xf32> to vector<128x8xf32>
    %95 = vector.shape_cast %94 : vector<128x8xf32> to vector<2x64x8xf32>
    %96 = arith.truncf %95 : vector<2x64x8xf32> to vector<2x64x8xbf16>
    %97 = vector.extract_strided_slice %31 {offsets = [0, 48], sizes = [128, 8], strides = [1, 1]} : vector<128x96xf32> to vector<128x8xf32>
    %98 = vector.shape_cast %97 : vector<128x8xf32> to vector<2x64x8xf32>
    %99 = arith.truncf %98 : vector<2x64x8xf32> to vector<2x64x8xbf16>
    %100 = vector.extract_strided_slice %31 {offsets = [0, 80], sizes = [128, 8], strides = [1, 1]} : vector<128x96xf32> to vector<128x8xf32>
    %101 = vector.shape_cast %100 : vector<128x8xf32> to vector<2x64x8xf32>
    %102 = arith.truncf %101 : vector<2x64x8xf32> to vector<2x64x8xbf16>
    "tpu.trace_start"() <{level = 10 : i32, message = "gnd,gmd->gnm"}> : () -> ()
    %cst_37 = arith.constant dense<0.000000e+00> : vector<2x64x64xf32>
    %103 = tpu.matmul %96, %99, %cst_37 {dimension_numbers = #tpu.dot_dimension_numbers<[2], [2], [1], [1], [0, 0, 0, 1, 1, 1], [0], [0]>} : vector<2x64x8xbf16>, vector<2x64x8xbf16>, vector<2x64x64xf32> -> vector<2x64x64xf32>
    "tpu.trace_stop"() : () -> ()
    %c2 = arith.constant 2 : index
    %c0_38 = arith.constant 0 : index
    %c0_39 = arith.constant 0 : index
    %104 = vector.load %arg7[%c2, %c0_38, %c0_39] : memref<4x64x64xf32, #tpu.memory_space<vmem>>, vector<1x64x64xf32>
    %105 = vector.shape_cast %104 : vector<1x64x64xf32> to vector<64x64xf32>
    %106 = vector.shape_cast %105 : vector<64x64xf32> to vector<1x64x64xf32>
    %107 = vector.broadcast %106 : vector<1x64x64xf32> to vector<2x64x64xf32>
    %108 = arith.addf %103, %107 : vector<2x64x64xf32>
    %c0_40 = arith.constant 0 : index
    %c0_41 = arith.constant 0 : index
    %c0_42 = arith.constant 0 : index
    %109 = vector.load %arg16[%c0_40, %c0_41, %c0_42] : memref<2x64x64xf32, #tpu.memory_space<vmem>>, vector<2x64x64xf32>
    %110 = arith.addf %108, %109 : vector<2x64x64xf32>
    %cst_43 = arith.constant dense<0xFF800000> : vector<2x64xf32>
    %111 = vector.multi_reduction <maximumf>, %110, %cst_43 [2] : vector<2x64x64xf32> to vector<2x64xf32>
    %112 = vector.shape_cast %111 : vector<2x64xf32> to vector<2x64x1xf32>
    %113 = vector.broadcast %112 : vector<2x64x1xf32> to vector<2x64x64xf32>
    %114 = arith.subf %110, %113 : vector<2x64x64xf32>
    %115 = math.exp %114 : vector<2x64x64xf32>
    %cst_44 = arith.constant dense<0.000000e+00> : vector<2x64xf32>
    %116 = vector.multi_reduction <add>, %115, %cst_44 [2] : vector<2x64x64xf32> to vector<2x64xf32>
    %117 = vector.shape_cast %116 : vector<2x64xf32> to vector<2x64x1xf32>
    %118 = tpu.reciprocal %117 {approx = true} : vector<2x64x1xf32> -> vector<2x64x1xf32>
    %119 = vector.broadcast %118 : vector<2x64x1xf32> to vector<2x64x64xf32>
    %120 = arith.mulf %115, %119 : vector<2x64x64xf32>
    %121 = arith.truncf %120 : vector<2x64x64xf32> to vector<2x64x64xbf16>
    "tpu.trace_start"() <{level = 10 : i32, message = "gnm,gmd->gnd"}> : () -> ()
    %cst_45 = arith.constant dense<0.000000e+00> : vector<2x64x8xf32>
    %122 = tpu.matmul %121, %102, %cst_45 {dimension_numbers = #tpu.dot_dimension_numbers<[2], [1], [1], [2], [0, 0, 0, 1, 1, 2], [0], [0]>} : vector<2x64x64xbf16>, vector<2x64x8xbf16>, vector<2x64x8xf32> -> vector<2x64x8xf32>
    "tpu.trace_stop"() : () -> ()
    %123 = vector.shape_cast %122 : vector<2x64x8xf32> to vector<128x8xf32>
    %c0_46 = arith.constant 0 : index
    %c16 = arith.constant 16 : index
    %124 = vector.load %arg18[%c0_46, %c16] : memref<128x32xf32, #tpu.memory_space<vmem>>, vector<128x8xf32>
    tpu.vector_store %arg18[%c0_46, %c16], %123 {strides = array<i32>} : memref<128x32xf32, #tpu.memory_space<vmem>>, vector<128x8xf32>,
    %125 = vector.extract_strided_slice %31 {offsets = [0, 24], sizes = [128, 8], strides = [1, 1]} : vector<128x96xf32> to vector<128x8xf32>
    %126 = vector.shape_cast %125 : vector<128x8xf32> to vector<2x64x8xf32>
    %127 = arith.truncf %126 : vector<2x64x8xf32> to vector<2x64x8xbf16>
    %128 = vector.extract_strided_slice %31 {offsets = [0, 56], sizes = [128, 8], strides = [1, 1]} : vector<128x96xf32> to vector<128x8xf32>
    %129 = vector.shape_cast %128 : vector<128x8xf32> to vector<2x64x8xf32>
    %130 = arith.truncf %129 : vector<2x64x8xf32> to vector<2x64x8xbf16>
    %131 = vector.extract_strided_slice %31 {offsets = [0, 88], sizes = [128, 8], strides = [1, 1]} : vector<128x96xf32> to vector<128x8xf32>
    %132 = vector.shape_cast %131 : vector<128x8xf32> to vector<2x64x8xf32>
    %133 = arith.truncf %132 : vector<2x64x8xf32> to vector<2x64x8xbf16>
    "tpu.trace_start"() <{level = 10 : i32, message = "gnd,gmd->gnm"}> : () -> ()
    %cst_47 = arith.constant dense<0.000000e+00> : vector<2x64x64xf32>
    %134 = tpu.matmul %127, %130, %cst_47 {dimension_numbers = #tpu.dot_dimension_numbers<[2], [2], [1], [1], [0, 0, 0, 1, 1, 1], [0], [0]>} : vector<2x64x8xbf16>, vector<2x64x8xbf16>, vector<2x64x64xf32> -> vector<2x64x64xf32>
    "tpu.trace_stop"() : () -> ()
    %c3 = arith.constant 3 : index
    %c0_48 = arith.constant 0 : index
    %c0_49 = arith.constant 0 : index
    %135 = vector.load %arg7[%c3, %c0_48, %c0_49] : memref<4x64x64xf32, #tpu.memory_space<vmem>>, vector<1x64x64xf32>
    %136 = vector.shape_cast %135 : vector<1x64x64xf32> to vector<64x64xf32>
    %137 = vector.shape_cast %136 : vector<64x64xf32> to vector<1x64x64xf32>
    %138 = vector.broadcast %137 : vector<1x64x64xf32> to vector<2x64x64xf32>
    %139 = arith.addf %134, %138 : vector<2x64x64xf32>
    %c0_50 = arith.constant 0 : index
    %c0_51 = arith.constant 0 : index
    %c0_52 = arith.constant 0 : index
    %140 = vector.load %arg16[%c0_50, %c0_51, %c0_52] : memref<2x64x64xf32, #tpu.memory_space<vmem>>, vector<2x64x64xf32>
    %141 = arith.addf %139, %140 : vector<2x64x64xf32>
    %cst_53 = arith.constant dense<0xFF800000> : vector<2x64xf32>
    %142 = vector.multi_reduction <maximumf>, %141, %cst_53 [2] : vector<2x64x64xf32> to vector<2x64xf32>
    %143 = vector.shape_cast %142 : vector<2x64xf32> to vector<2x64x1xf32>
    %144 = vector.broadcast %143 : vector<2x64x1xf32> to vector<2x64x64xf32>
    %145 = arith.subf %141, %144 : vector<2x64x64xf32>
    %146 = math.exp %145 : vector<2x64x64xf32>
    %cst_54 = arith.constant dense<0.000000e+00> : vector<2x64xf32>
    %147 = vector.multi_reduction <add>, %146, %cst_54 [2] : vector<2x64x64xf32> to vector<2x64xf32>
    %148 = vector.shape_cast %147 : vector<2x64xf32> to vector<2x64x1xf32>
    %149 = tpu.reciprocal %148 {approx = true} : vector<2x64x1xf32> -> vector<2x64x1xf32>
    %150 = vector.broadcast %149 : vector<2x64x1xf32> to vector<2x64x64xf32>
    %151 = arith.mulf %146, %150 : vector<2x64x64xf32>
    %152 = arith.truncf %151 : vector<2x64x64xf32> to vector<2x64x64xbf16>
    "tpu.trace_start"() <{level = 10 : i32, message = "gnm,gmd->gnd"}> : () -> ()
    %cst_55 = arith.constant dense<0.000000e+00> : vector<2x64x8xf32>
    %153 = tpu.matmul %152, %133, %cst_55 {dimension_numbers = #tpu.dot_dimension_numbers<[2], [1], [1], [2], [0, 0, 0, 1, 1, 2], [0], [0]>} : vector<2x64x64xbf16>, vector<2x64x8xbf16>, vector<2x64x8xf32> -> vector<2x64x8xf32>
    "tpu.trace_stop"() : () -> ()
    %154 = vector.shape_cast %153 : vector<2x64x8xf32> to vector<128x8xf32>
    %c0_56 = arith.constant 0 : index
    %c24 = arith.constant 24 : index
    %155 = vector.load %arg18[%c0_56, %c24] : memref<128x32xf32, #tpu.memory_space<vmem>>, vector<128x8xf32>
    tpu.vector_store %arg18[%c0_56, %c24], %154 {strides = array<i32>} : memref<128x32xf32, #tpu.memory_space<vmem>>, vector<128x8xf32>,
    %c0_57 = arith.constant 0 : index
    %c0_58 = arith.constant 0 : index
    %156 = vector.load %arg18[%c0_57, %c0_58] : memref<128x32xf32, #tpu.memory_space<vmem>>, vector<128x32xf32>
    %157 = arith.truncf %156 : vector<128x32xf32> to vector<128x32xbf16>
    %c0_59 = arith.constant 0 : index
    %c0_60 = arith.constant 0 : index
    %158 = vector.load %arg8[%c0_59, %c0_60] : memref<32x32xbf16, #tpu.memory_space<vmem>>, vector<32x32xbf16>
    %cst_61 = arith.constant dense<0.000000e+00> : vector<128x32xf32>
    %159 = tpu.matmul %157, %158, %cst_61 {dimension_numbers = #tpu.dot_dimension_numbers<[1], [0], [0], [1], [0, 0, 1, 1], [], []>} : vector<128x32xbf16>, vector<32x32xbf16>, vector<128x32xf32> -> vector<128x32xf32>
    %c0_62 = arith.constant 0 : index
    %c0_63 = arith.constant 0 : index
    %160 = vector.load %arg9[%c0_62, %c0_63] : memref<1x32xf32, #tpu.memory_space<vmem>>, vector<1x32xf32>
    %161 = vector.broadcast %160 : vector<1x32xf32> to vector<128x32xf32>
    %162 = arith.addf %159, %161 : vector<128x32xf32>
    %163 = arith.addf %1, %162 : vector<128x32xf32>
    %cst_64 = arith.constant dense<0.000000e+00> : vector<128xf32>
    %164 = vector.multi_reduction <add>, %163, %cst_64 [1] : vector<128x32xf32> to vector<128xf32>
    %165 = vector.shape_cast %164 : vector<128xf32> to vector<128x1xf32>
    %cst_65 = arith.constant 3.200000e+01 : f32
    %166 = vector.broadcast %cst_65 : f32 to vector<128x1xf32>
    %167 = arith.divf %165, %166 : vector<128x1xf32>
    %168 = vector.broadcast %167 : vector<128x1xf32> to vector<128x32xf32>
    %169 = arith.subf %163, %168 : vector<128x32xf32>
    %170 = arith.mulf %169, %169 : vector<128x32xf32>
    %cst_66 = arith.constant dense<0.000000e+00> : vector<128xf32>
    %171 = vector.multi_reduction <add>, %170, %cst_66 [1] : vector<128x32xf32> to vector<128xf32>
    %172 = vector.shape_cast %171 : vector<128xf32> to vector<128x1xf32>
    %cst_67 = arith.constant 3.200000e+01 : f32
    %173 = vector.broadcast %cst_67 : f32 to vector<128x1xf32>
    %174 = arith.divf %172, %173 : vector<128x1xf32>
    %175 = vector.broadcast %167 : vector<128x1xf32> to vector<128x32xf32>
    %176 = arith.subf %163, %175 : vector<128x32xf32>
    %cst_68 = arith.constant 9.99999974E-6 : f32
    %177 = vector.broadcast %cst_68 : f32 to vector<128x1xf32>
    %178 = arith.addf %174, %177 : vector<128x1xf32>
    %179 = math.rsqrt %178 : vector<128x1xf32>
    %180 = vector.broadcast %179 : vector<128x1xf32> to vector<128x32xf32>
    %181 = arith.mulf %176, %180 : vector<128x32xf32>
    %c0_69 = arith.constant 0 : index
    %c0_70 = arith.constant 0 : index
    %182 = vector.load %arg10[%c0_69, %c0_70] : memref<1x32xf32, #tpu.memory_space<vmem>>, vector<1x32xf32>
    %183 = vector.broadcast %182 : vector<1x32xf32> to vector<128x32xf32>
    %184 = arith.mulf %181, %183 : vector<128x32xf32>
    %c0_71 = arith.constant 0 : index
    %c0_72 = arith.constant 0 : index
    %185 = vector.load %arg11[%c0_71, %c0_72] : memref<1x32xf32, #tpu.memory_space<vmem>>, vector<1x32xf32>
    %186 = vector.broadcast %185 : vector<1x32xf32> to vector<128x32xf32>
    %187 = arith.addf %184, %186 : vector<128x32xf32>
    %188 = arith.truncf %187 : vector<128x32xf32> to vector<128x32xbf16>
    %c0_73 = arith.constant 0 : index
    %c0_74 = arith.constant 0 : index
    %189 = vector.load %arg12[%c0_73, %c0_74] : memref<32x128xbf16, #tpu.memory_space<vmem>>, vector<32x128xbf16>
    %cst_75 = arith.constant dense<0.000000e+00> : vector<128x128xf32>
    %190 = tpu.matmul %188, %189, %cst_75 {dimension_numbers = #tpu.dot_dimension_numbers<[1], [0], [0], [1], [0, 0, 1, 1], [], []>} : vector<128x32xbf16>, vector<32x128xbf16>, vector<128x128xf32> -> vector<128x128xf32>
    %c0_76 = arith.constant 0 : index
    %c0_77 = arith.constant 0 : index
    %191 = vector.load %arg13[%c0_76, %c0_77] : memref<1x128xf32, #tpu.memory_space<vmem>>, vector<1x128xf32>
    %192 = vector.broadcast %191 : vector<1x128xf32> to vector<128x128xf32>
    %193 = arith.addf %190, %192 : vector<128x128xf32>
    %cst_78 = arith.constant 5.000000e-01 : f32
    %194 = vector.broadcast %cst_78 : f32 to vector<128x128xf32>
    %195 = arith.mulf %194, %193 : vector<128x128xf32>
    %cst_79 = arith.constant 4.471500e-02 : f32
    %196 = vector.broadcast %cst_79 : f32 to vector<128x128xf32>
    %197 = arith.mulf %196, %193 : vector<128x128xf32>
    %198 = arith.mulf %197, %193 : vector<128x128xf32>
    %199 = arith.mulf %198, %193 : vector<128x128xf32>
    %200 = arith.addf %193, %199 : vector<128x128xf32>
    %cst_80 = arith.constant 0.797884583 : f32
    %201 = vector.broadcast %cst_80 : f32 to vector<128x128xf32>
    %202 = arith.mulf %201, %200 : vector<128x128xf32>
    %203 = math.tanh %202 : vector<128x128xf32>
    %cst_81 = arith.constant 1.000000e+00 : f32
    %204 = vector.broadcast %cst_81 : f32 to vector<128x128xf32>
    %205 = arith.addf %204, %203 : vector<128x128xf32>
    %206 = arith.mulf %195, %205 : vector<128x128xf32>
    %207 = arith.truncf %206 : vector<128x128xf32> to vector<128x128xbf16>
    %c0_82 = arith.constant 0 : index
    %c0_83 = arith.constant 0 : index
    %208 = vector.load %arg14[%c0_82, %c0_83] : memref<128x32xbf16, #tpu.memory_space<vmem>>, vector<128x32xbf16>
    %cst_84 = arith.constant dense<0.000000e+00> : vector<128x32xf32>
    %209 = tpu.matmul %207, %208, %cst_84 {dimension_numbers = #tpu.dot_dimension_numbers<[1], [0], [0], [1], [0, 0, 1, 1], [], []>} : vector<128x128xbf16>, vector<128x32xbf16>, vector<128x32xf32> -> vector<128x32xf32>
    %c0_85 = arith.constant 0 : index
    %c0_86 = arith.constant 0 : index
    %210 = vector.load %arg15[%c0_85, %c0_86] : memref<1x32xf32, #tpu.memory_space<vmem>>, vector<1x32xf32>
    %211 = vector.broadcast %210 : vector<1x32xf32> to vector<128x32xf32>
    %212 = arith.addf %209, %211 : vector<128x32xf32>
    %213 = arith.addf %163, %212 : vector<128x32xf32>
    %c0_87 = arith.constant 0 : index
    %c0_88 = arith.constant 0 : index
    %c0_89 = arith.constant 0 : index
    %214 = vector.load %arg17[%c0_87, %c0_88, %c0_89] : memref<1x128x32xf32, #tpu.memory_space<vmem>>, vector<1x128x32xf32>
    %215 = vector.shape_cast %214 : vector<1x128x32xf32> to vector<128x32xf32>
    %216 = vector.shape_cast %213 : vector<128x32xf32> to vector<1x128x32xf32>
    tpu.vector_store %arg17[%c0_87, %c0_88, %c0_89], %216 {strides = array<i32>} : memref<1x128x32xf32, #tpu.memory_space<vmem>>, vector<1x128x32xf32>,
    return
  }
  func.func @transform_0(%arg0: i32, %arg1: i32) -> (i32, i32, i32) {
    %c0_i32 = arith.constant 0 : i32
    %c0_i32_0 = arith.constant 0 : i32
    return %arg0, %arg1, %c0_i32 : i32, i32, i32
  }
  func.func @transform_1(%arg0: i32, %arg1: i32) -> (i32, i32) {
    %c0_i32 = arith.constant 0 : i32
    %c0_i32_0 = arith.constant 0 : i32
    %c0_i32_1 = arith.constant 0 : i32
    return %c0_i32, %c0_i32_0 : i32, i32
  }
  func.func @transform_2(%arg0: i32, %arg1: i32) -> (i32, i32) {
    %c0_i32 = arith.constant 0 : i32
    %c0_i32_0 = arith.constant 0 : i32
    %c0_i32_1 = arith.constant 0 : i32
    return %c0_i32, %c0_i32_0 : i32, i32
  }
  func.func @transform_3(%arg0: i32, %arg1: i32) -> (i32, i32) {
    %c0_i32 = arith.constant 0 : i32
    %c0_i32_0 = arith.constant 0 : i32
    %c0_i32_1 = arith.constant 0 : i32
    return %c0_i32, %c0_i32_0 : i32, i32
  }
  func.func @transform_4(%arg0: i32, %arg1: i32) -> (i32, i32) {
    %c0_i32 = arith.constant 0 : i32
    %c0_i32_0 = arith.constant 0 : i32
    %c0_i32_1 = arith.constant 0 : i32
    return %c0_i32, %c0_i32_0 : i32, i32
  }
  func.func @transform_5(%arg0: i32, %arg1: i32) -> (i32, i32, i32) {
    %c0_i32 = arith.constant 0 : i32
    %c0_i32_0 = arith.constant 0 : i32
    %c0_i32_1 = arith.constant 0 : i32
    %c0_i32_2 = arith.constant 0 : i32
    return %c0_i32, %c0_i32_0, %c0_i32_1 : i32, i32, i32
  }
  func.func @transform_6(%arg0: i32, %arg1: i32) -> (i32, i32) {
    %c0_i32 = arith.constant 0 : i32
    %c0_i32_0 = arith.constant 0 : i32
    %c0_i32_1 = arith.constant 0 : i32
    return %c0_i32, %c0_i32_0 : i32, i32
  }
  func.func @transform_7(%arg0: i32, %arg1: i32) -> (i32, i32) {
    %c0_i32 = arith.constant 0 : i32
    %c0_i32_0 = arith.constant 0 : i32
    %c0_i32_1 = arith.constant 0 : i32
    return %c0_i32, %c0_i32_0 : i32, i32
  }
  func.func @transform_8(%arg0: i32, %arg1: i32) -> (i32, i32) {
    %c0_i32 = arith.constant 0 : i32
    %c0_i32_0 = arith.constant 0 : i32
    %c0_i32_1 = arith.constant 0 : i32
    return %c0_i32, %c0_i32_0 : i32, i32
  }
  func.func @transform_9(%arg0: i32, %arg1: i32) -> (i32, i32) {
    %c0_i32 = arith.constant 0 : i32
    %c0_i32_0 = arith.constant 0 : i32
    %c0_i32_1 = arith.constant 0 : i32
    return %c0_i32, %c0_i32_0 : i32, i32
  }
  func.func @transform_10(%arg0: i32, %arg1: i32) -> (i32, i32) {
    %c0_i32 = arith.constant 0 : i32
    %c0_i32_0 = arith.constant 0 : i32
    %c0_i32_1 = arith.constant 0 : i32
    return %c0_i32, %c0_i32_0 : i32, i32
  }
  func.func @transform_11(%arg0: i32, %arg1: i32) -> (i32, i32) {
    %c0_i32 = arith.constant 0 : i32
    %c0_i32_0 = arith.constant 0 : i32
    %c0_i32_1 = arith.constant 0 : i32
    return %c0_i32, %c0_i32_0 : i32, i32
  }
  func.func @transform_12(%arg0: i32, %arg1: i32) -> (i32, i32) {
    %c0_i32 = arith.constant 0 : i32
    %c0_i32_0 = arith.constant 0 : i32
    %c0_i32_1 = arith.constant 0 : i32
    return %c0_i32, %c0_i32_0 : i32, i32
  }
  func.func @transform_13(%arg0: i32, %arg1: i32) -> (i32, i32) {
    %c0_i32 = arith.constant 0 : i32
    %c0_i32_0 = arith.constant 0 : i32
    %c0_i32_1 = arith.constant 0 : i32
    return %c0_i32, %c0_i32_0 : i32, i32
  }
  func.func @transform_14(%arg0: i32, %arg1: i32) -> (i32, i32, i32) {
    %c0_i32 = arith.constant 0 : i32
    %c0_i32_0 = arith.constant 0 : i32
    %c0_i32_1 = arith.constant 0 : i32
    return %arg1, %c0_i32, %c0_i32_0 : i32, i32, i32
  }
  func.func @transform_15(%arg0: i32, %arg1: i32) -> (i32, i32, i32) {
    %c0_i32 = arith.constant 0 : i32
    %c0_i32_0 = arith.constant 0 : i32
    return %arg0, %arg1, %c0_i32 : i32, i32, i32
  }
}

</mosaic_0001>

<llo_original>
// kernel: tpu_custom_call.1
$region0: #{tpu_custom_call.1}
  #allocation0 [shape = 'u32[]', space=smem, size = 0x4, offset = 0x4, fixed_abs, tag = 'smem constant byte address 0x4 - core index']
  #allocation1 [shape = 'u32[144,128]{1,0:T(1,128)}', space=vmem, size = 0x12000, scoped, tag = 'internal scratch']
  #allocation2 [shape = 'f32[128,32]{1,0:T(8,128)}', space=vmem, size = 0x10000, scoped, tag = 'scratch operand']
  %s0 = inlined_call_operand.vmem [shape: f32[2,256,32], index: 0, kind: input, shape index: {}]
  %s1 = inlined_call_operand.vmem [shape: f32[1,32], index: 1, kind: input, shape index: {}]
  %s2 = inlined_call_operand.vmem [shape: f32[1,32], index: 2, kind: input, shape index: {}]
  %s3 = inlined_call_operand.vmem [shape: bf16[32,96], index: 3, kind: input, shape index: {}]
  %s4 = inlined_call_operand.vmem [shape: f32[1,96], index: 4, kind: input, shape index: {}]
  %s5 = inlined_call_operand.vmem [shape: f32[4,64,64], index: 5, kind: input, shape index: {}]
  %s6 = inlined_call_operand.vmem [shape: bf16[32,32], index: 6, kind: input, shape index: {}]
  %s7 = inlined_call_operand.vmem [shape: f32[1,32], index: 7, kind: input, shape index: {}]
  %s8 = inlined_call_operand.vmem [shape: f32[1,32], index: 8, kind: input, shape index: {}]
  %s9 = inlined_call_operand.vmem [shape: f32[1,32], index: 9, kind: input, shape index: {}]
  %s10 = inlined_call_operand.vmem [shape: bf16[32,128], index: 10, kind: input, shape index: {}]
  %s11 = inlined_call_operand.vmem [shape: f32[1,128], index: 11, kind: input, shape index: {}]
  %s12 = inlined_call_operand.vmem [shape: bf16[128,32], index: 12, kind: input, shape index: {}]
  %s13 = inlined_call_operand.vmem [shape: f32[1,32], index: 13, kind: input, shape index: {}]
  %s14 = inlined_call_operand.vmem [shape: f32[4,64,64], index: 14, kind: input, shape index: {}]
  %s15 = inlined_call_operand.vmem [shape: f32[2,256,32], index: 15, kind: output, shape index: {}]
  %s16 = sld [smem:[#allocation0]]
  $region93: #{tpu_custom_call.1} parent=0
    _
  %s18 = ssub.s32 1, %s16
  %s19 = scalar_select 0, %s18, %s16
  loop: start=0, step=1, limit=6
  $region2: #{tpu_custom_call.1} parent=0 // loop_pre_header
    _
  $region3: #{tpu_custom_call.1} parent=0 // loop_header
    %s21 = sphi 0, %s25
    %p22 = scmp.ge.s32.totalorder %s21, 6
    %s28 = sphi 0, %s40
    %s29 = sphi 0, %s36
    %s30 = sphi 0, %s28
    %s31 = sphi 0, %s29
    %s32 = sphi 0, %s30
    %s33 = sphi 0, %s31
    %s45 = sphi 0, %s47
    %s48 = sphi 0, %s45
    %s49 = sphi 0, %s48
    %s65 = sphi 0, %s49
    %s69 = sphi 0, %s69
    %s71 = sphi 0, %s69
    %s72 = sphi 0, %s71
    %s86 = sphi 0, %s72
    %s90 = sphi 0, %s90
    %s92 = sphi 0, %s90
    %s93 = sphi 0, %s92
    %s107 = sphi 0, %s93
    %s111 = sphi 0, %s111
    %s113 = sphi 0, %s111
    %s114 = sphi 0, %s113
    %s128 = sphi 0, %s114
    %s132 = sphi 0, %s132
    %s134 = sphi 0, %s132
    %s135 = sphi 0, %s134
    %s149 = sphi 0, %s135
    %s153 = sphi 0, %s153
    %s155 = sphi 0, %s153
    %s156 = sphi 0, %s155
    %s170 = sphi 0, %s156
    %s174 = sphi 0, %s174
    %s176 = sphi 0, %s174
    %s177 = sphi 0, %s176
    %s191 = sphi 0, %s177
    %s195 = sphi 0, %s195
    %s197 = sphi 0, %s195
    %s198 = sphi 0, %s197
    %s212 = sphi 0, %s198
    %s216 = sphi 0, %s216
    %s218 = sphi 0, %s216
    %s219 = sphi 0, %s218
    %s233 = sphi 0, %s219
    %s237 = sphi 0, %s237
    %s239 = sphi 0, %s237
    %s240 = sphi 0, %s239
    %s254 = sphi 0, %s240
    %s258 = sphi 0, %s258
    %s260 = sphi 0, %s258
    %s261 = sphi 0, %s260
    %s275 = sphi 0, %s261
    %s279 = sphi 0, %s279
    %s281 = sphi 0, %s279
    %s282 = sphi 0, %s281
    %s296 = sphi 0, %s282
    %s300 = sphi 0, %s300
    %s302 = sphi 0, %s300
    %s303 = sphi 0, %s302
    %s317 = sphi 0, %s303
    %s321 = sphi 0, %s321
    %s323 = sphi 0, %s321
    %s324 = sphi 0, %s323
    %s338 = sphi 0, %s324
    %s344 = sphi 0, %s346
    %s347 = sphi 0, %s344
    %s348 = sphi 0, %s347
    %s364 = sphi 0, %s348
    %s372 = sphi 0, %s374
    %s375 = sphi 0, %s372
    %s376 = sphi 0, %s375
    %s392 = sphi 0, %s376
  $region4: #{tpu_custom_call.1} parent=0 // loop_header_branch
    %24 = sbr.rel (%p22) target = $region8
  $region5: #{tpu_custom_call.1} parent=0 // loop_body
    %s26 = ssub.s32 %s21, 1
    %s27 = ssub.s32 %s21, 2
    %s34 = sadd.s32 1, %s29
    %p35 = scmp.ge.s32.totalorder %s34, 2
    %s36 = scalar_select %p35, 0, %s34
    %s37 = sadd.s32 1, %s28
    %s38 = scalar_select %p35, %s37, %s28
    %p39 = scmp.ge.s32.totalorder %s38, 2
    %s40 = scalar_select %p39, 0, %s38
    %s41 = ssub.s32 %s28, %s40
    %s42 = ssub.s32 %s29, %s36
    %s43 = sor.u32 %s41, %s42
    %p44 = scmp.eq.s32.totalorder %s43, 0
    %s46 = sadd.s32 %s45, 1
    %s47 = scalar_select %p44, %s45, %s46
    %p50 = pneg %p44
    %p51 = scmp.eq.s32.totalorder %s21, 3
    %p52 = por %p50, %p51
    %p53 = scmp.ne.s32.totalorder %s45, %s48
    %p54 = scmp.eq.s32.totalorder %s21, 0
    %p55 = por %p53, %p54
    %p56 = scmp.ne.s32.totalorder %s45, %s48
    %p57 = scmp.eq.s32.totalorder %s26, 3
    %p58 = por %p56, %p57
    %p59 = scmp.ne.s32.totalorder %s48, %s49
    %p60 = scmp.eq.s32.totalorder %s26, 0
    %p61 = por %p59, %p60
    %p62 = scmp.ne.s32.totalorder %s48, %s49
    %p63 = scmp.eq.s32.totalorder %s27, 3
    %p64 = por %p62, %p63
    %p66 = scmp.ne.s32.totalorder %s49, %s65
    %p67 = scmp.eq.s32.totalorder %s27, 0
    %p68 = por %p66, %p67
    %s70 = sadd.s32 %s69, 1
    %p73 = scmp.eq.s32.totalorder %s21, 3
    %p74 = scmp.ne.s32.totalorder %s69, %s71
    %p75 = scmp.eq.s32.totalorder %s21, 0
    %p76 = por %p74, %p75
    %p77 = scmp.ne.s32.totalorder %s69, %s71
    %p78 = scmp.eq.s32.totalorder %s26, 3
    %p79 = por %p77, %p78
    %p80 = scmp.ne.s32.totalorder %s71, %s72
    %p81 = scmp.eq.s32.totalorder %s26, 0
    %p82 = por %p80, %p81
    %p83 = scmp.ne.s32.totalorder %s71, %s72
    %p84 = scmp.eq.s32.totalorder %s27, 3
    %p85 = por %p83, %p84
    %p87 = scmp.ne.s32.totalorder %s72, %s86
    %p88 = scmp.eq.s32.totalorder %s27, 0
    %p89 = por %p87, %p88
    %s91 = sadd.s32 %s90, 1
    %p94 = scmp.eq.s32.totalorder %s21, 3
    %p95 = scmp.ne.s32.totalorder %s90, %s92
    %p96 = scmp.eq.s32.totalorder %s21, 0
    %p97 = por %p95, %p96
    %p98 = scmp.ne.s32.totalorder %s90, %s92
    %p99 = scmp.eq.s32.totalorder %s26, 3
    %p100 = por %p98, %p99
    %p101 = scmp.ne.s32.totalorder %s92, %s93
    %p102 = scmp.eq.s32.totalorder %s26, 0
    %p103 = por %p101, %p102
    %p104 = scmp.ne.s32.totalorder %s92, %s93
    %p105 = scmp.eq.s32.totalorder %s27, 3
    %p106 = por %p104, %p105
    %p108 = scmp.ne.s32.totalorder %s93, %s107
    %p109 = scmp.eq.s32.totalorder %s27, 0
    %p110 = por %p108, %p109
    %s112 = sadd.s32 %s111, 1
    %p115 = scmp.eq.s32.totalorder %s21, 3
    %p116 = scmp.ne.s32.totalorder %s111, %s113
    %p117 = scmp.eq.s32.totalorder %s21, 0
    %p118 = por %p116, %p117
    %p119 = scmp.ne.s32.totalorder %s111, %s113
    %p120 = scmp.eq.s32.totalorder %s26, 3
    %p121 = por %p119, %p120
    %p122 = scmp.ne.s32.totalorder %s113, %s114
    %p123 = scmp.eq.s32.totalorder %s26, 0
    %p124 = por %p122, %p123
    %p125 = scmp.ne.s32.totalorder %s113, %s114
    %p126 = scmp.eq.s32.totalorder %s27, 3
    %p127 = por %p125, %p126
    %p129 = scmp.ne.s32.totalorder %s114, %s128
    %p130 = scmp.eq.s32.totalorder %s27, 0
    %p131 = por %p129, %p130
    %s133 = sadd.s32 %s132, 1
    %p136 = scmp.eq.s32.totalorder %s21, 3
    %p137 = scmp.ne.s32.totalorder %s132, %s134
    %p138 = scmp.eq.s32.totalorder %s21, 0
    %p139 = por %p137, %p138
    %p140 = scmp.ne.s32.totalorder %s132, %s134
    %p141 = scmp.eq.s32.totalorder %s26, 3
    %p142 = por %p140, %p141
    %p143 = scmp.ne.s32.totalorder %s134, %s135
    %p144 = scmp.eq.s32.totalorder %s26, 0
    %p145 = por %p143, %p144
    %p146 = scmp.ne.s32.totalorder %s134, %s135
    %p147 = scmp.eq.s32.totalorder %s27, 3
    %p148 = por %p146, %p147
    %p150 = scmp.ne.s32.totalorder %s135, %s149
    %p151 = scmp.eq.s32.totalorder %s27, 0
    %p152 = por %p150, %p151
    %s154 = sadd.s32 %s153, 1
    %p157 = scmp.eq.s32.totalorder %s21, 3
    %p158 = scmp.ne.s32.totalorder %s153, %s155
    %p159 = scmp.eq.s32.totalorder %s21, 0
    %p160 = por %p158, %p159
    %p161 = scmp.ne.s32.totalorder %s153, %s155
    %p162 = scmp.eq.s32.totalorder %s26, 3
    %p163 = por %p161, %p162
    %p164 = scmp.ne.s32.totalorder %s155, %s156
    %p165 = scmp.eq.s32.totalorder %s26, 0
    %p166 = por %p164, %p165
    %p167 = scmp.ne.s32.totalorder %s155, %s156
    %p168 = scmp.eq.s32.totalorder %s27, 3
    %p169 = por %p167, %p168
    %p171 = scmp.ne.s32.totalorder %s156, %s170
    %p172 = scmp.eq.s32.totalorder %s27, 0
    %p173 = por %p171, %p172
    %s175 = sadd.s32 %s174, 1
    %p178 = scmp.eq.s32.totalorder %s21, 3
    %p179 = scmp.ne.s32.totalorder %s174, %s176
    %p180 = scmp.eq.s32.totalorder %s21, 0
    %p181 = por %p179, %p180
    %p182 = scmp.ne.s32.totalorder %s174, %s176
    %p183 = scmp.eq.s32.totalorder %s26, 3
    %p184 = por %p182, %p183
    %p185 = scmp.ne.s32.totalorder %s176, %s177
    %p186 = scmp.eq.s32.totalorder %s26, 0
    %p187 = por %p185, %p186
    %p188 = scmp.ne.s32.totalorder %s176, %s177
    %p189 = scmp.eq.s32.totalorder %s27, 3
    %p190 = por %p188, %p189
    %p192 = scmp.ne.s32.totalorder %s177, %s191
    %p193 = scmp.eq.s32.totalorder %s27, 0
    %p194 = por %p192, %p193
    %s196 = sadd.s32 %s195, 1
    %p199 = scmp.eq.s32.totalorder %s21, 3
    %p200 = scmp.ne.s32.totalorder %s195, %s197
    %p201 = scmp.eq.s32.totalorder %s21, 0
    %p202 = por %p200, %p201
    %p203 = scmp.ne.s32.totalorder %s195, %s197
    %p204 = scmp.eq.s32.totalorder %s26, 3
    %p205 = por %p203, %p204
    %p206 = scmp.ne.s32.totalorder %s197, %s198
    %p207 = scmp.eq.s32.totalorder %s26, 0
    %p208 = por %p206, %p207
    %p209 = scmp.ne.s32.totalorder %s197, %s198
    %p210 = scmp.eq.s32.totalorder %s27, 3
    %p211 = por %p209, %p210
    %p213 = scmp.ne.s32.totalorder %s198, %s212
    %p214 = scmp.eq.s32.totalorder %s27, 0
    %p215 = por %p213, %p214
    %s217 = sadd.s32 %s216, 1
    %p220 = scmp.eq.s32.totalorder %s21, 3
    %p221 = scmp.ne.s32.totalorder %s216, %s218
    %p222 = scmp.eq.s32.totalorder %s21, 0
    %p223 = por %p221, %p222
    %p224 = scmp.ne.s32.totalorder %s216, %s218
    %p225 = scmp.eq.s32.totalorder %s26, 3
    %p226 = por %p224, %p225
    %p227 = scmp.ne.s32.totalorder %s218, %s219
    %p228 = scmp.eq.s32.totalorder %s26, 0
    %p229 = por %p227, %p228
    %p230 = scmp.ne.s32.totalorder %s218, %s219
    %p231 = scmp.eq.s32.totalorder %s27, 3
    %p232 = por %p230, %p231
    %p234 = scmp.ne.s32.totalorder %s219, %s233
    %p235 = scmp.eq.s32.totalorder %s27, 0
    %p236 = por %p234, %p235
    %s238 = sadd.s32 %s237, 1
    %p241 = scmp.eq.s32.totalorder %s21, 3
    %p242 = scmp.ne.s32.totalorder %s237, %s239
    %p243 = scmp.eq.s32.totalorder %s21, 0
    %p244 = por %p242, %p243
    %p245 = scmp.ne.s32.totalorder %s237, %s239
    %p246 = scmp.eq.s32.totalorder %s26, 3
    %p247 = por %p245, %p246
    %p248 = scmp.ne.s32.totalorder %s239, %s240
    %p249 = scmp.eq.s32.totalorder %s26, 0
    %p250 = por %p248, %p249
    %p251 = scmp.ne.s32.totalorder %s239, %s240
    %p252 = scmp.eq.s32.totalorder %s27, 3
    %p253 = por %p251, %p252
    %p255 = scmp.ne.s32.totalorder %s240, %s254
    %p256 = scmp.eq.s32.totalorder %s27, 0
    %p257 = por %p255, %p256
    %s259 = sadd.s32 %s258, 1
    %p262 = scmp.eq.s32.totalorder %s21, 3
    %p263 = scmp.ne.s32.totalorder %s258, %s260
    %p264 = scmp.eq.s32.totalorder %s21, 0
    %p265 = por %p263, %p264
    %p266 = scmp.ne.s32.totalorder %s258, %s260
    %p267 = scmp.eq.s32.totalorder %s26, 3
    %p268 = por %p266, %p267
    %p269 = scmp.ne.s32.totalorder %s260, %s261
    %p270 = scmp.eq.s32.totalorder %s26, 0
    %p271 = por %p269, %p270
    %p272 = scmp.ne.s32.totalorder %s260, %s261
    %p273 = scmp.eq.s32.totalorder %s27, 3
    %p274 = por %p272, %p273
    %p276 = scmp.ne.s32.totalorder %s261, %s275
    %p277 = scmp.eq.s32.totalorder %s27, 0
    %p278 = por %p276, %p277
    %s280 = sadd.s32 %s279, 1
    %p283 = scmp.eq.s32.totalorder %s21, 3
    %p284 = scmp.ne.s32.totalorder %s279, %s281
    %p285 = scmp.eq.s32.totalorder %s21, 0
    %p286 = por %p284, %p285
    %p287 = scmp.ne.s32.totalorder %s279, %s281
    %p288 = scmp.eq.s32.totalorder %s26, 3
    %p289 = por %p287, %p288
    %p290 = scmp.ne.s32.totalorder %s281, %s282
    %p291 = scmp.eq.s32.totalorder %s26, 0
    %p292 = por %p290, %p291
    %p293 = scmp.ne.s32.totalorder %s281, %s282
    %p294 = scmp.eq.s32.totalorder %s27, 3
    %p295 = por %p293, %p294
    %p297 = scmp.ne.s32.totalorder %s282, %s296
    %p298 = scmp.eq.s32.totalorder %s27, 0
    %p299 = por %p297, %p298
    %s301 = sadd.s32 %s300, 1
    %p304 = scmp.eq.s32.totalorder %s21, 3
    %p305 = scmp.ne.s32.totalorder %s300, %s302
    %p306 = scmp.eq.s32.totalorder %s21, 0
    %p307 = por %p305, %p306
    %p308 = scmp.ne.s32.totalorder %s300, %s302
    %p309 = scmp.eq.s32.totalorder %s26, 3
    %p310 = por %p308, %p309
    %p311 = scmp.ne.s32.totalorder %s302, %s303
    %p312 = scmp.eq.s32.totalorder %s26, 0
    %p313 = por %p311, %p312
    %p314 = scmp.ne.s32.totalorder %s302, %s303
    %p315 = scmp.eq.s32.totalorder %s27, 3
    %p316 = por %p314, %p315
    %p318 = scmp.ne.s32.totalorder %s303, %s317
    %p319 = scmp.eq.s32.totalorder %s27, 0
    %p320 = por %p318, %p319
    %s322 = sadd.s32 %s321, 1
    %p325 = scmp.eq.s32.totalorder %s21, 3
    %p326 = scmp.ne.s32.totalorder %s321, %s323
    %p327 = scmp.eq.s32.totalorder %s21, 0
    %p328 = por %p326, %p327
    %p329 = scmp.ne.s32.totalorder %s321, %s323
    %p330 = scmp.eq.s32.totalorder %s26, 3
    %p331 = por %p329, %p330
    %p332 = scmp.ne.s32.totalorder %s323, %s324
    %p333 = scmp.eq.s32.totalorder %s26, 0
    %p334 = por %p332, %p333
    %p335 = scmp.ne.s32.totalorder %s323, %s324
    %p336 = scmp.eq.s32.totalorder %s27, 3
    %p337 = por %p335, %p336
    %p339 = scmp.ne.s32.totalorder %s324, %s338
    %p340 = scmp.eq.s32.totalorder %s27, 0
    %p341 = por %p339, %p340
    %s342 = ssub.s32 %s29, %s36
    %p343 = scmp.eq.s32.totalorder %s342, 0
    %s345 = sadd.s32 %s344, 1
    %s346 = scalar_select %p343, %s344, %s345
    %p349 = pneg %p343
    %p350 = scmp.eq.s32.totalorder %s21, 3
    %p351 = por %p349, %p350
    %p352 = scmp.ne.s32.totalorder %s344, %s347
    %p353 = scmp.eq.s32.totalorder %s21, 0
    %p354 = por %p352, %p353
    %p355 = scmp.ne.s32.totalorder %s344, %s347
    %p356 = scmp.eq.s32.totalorder %s26, 3
    %p357 = por %p355, %p356
    %p358 = scmp.ne.s32.totalorder %s347, %s348
    %p359 = scmp.eq.s32.totalorder %s26, 0
    %p360 = por %p358, %p359
    %p361 = scmp.ne.s32.totalorder %s347, %s348
    %p362 = scmp.eq.s32.totalorder %s27, 3
    %p363 = por %p361, %p362
    %p365 = scmp.ne.s32.totalorder %s348, %s364
    %p366 = scmp.eq.s32.totalorder %s27, 0
    %p367 = por %p365, %p366
    %s368 = ssub.s32 %s28, %s40
    %s369 = ssub.s32 %s29, %s36
    %s370 = sor.u32 %s368, %s369
    %p371 = scmp.eq.s32.totalorder %s370, 0
    %s373 = sadd.s32 %s372, 1
    %s374 = scalar_select %p371, %s372, %s373
    %p377 = pneg %p371
    %p378 = scmp.eq.s32.totalorder %s21, 3
    %p379 = por %p377, %p378
    %p380 = scmp.ne.s32.totalorder %s372, %s375
    %p381 = scmp.eq.s32.totalorder %s21, 0
    %p382 = por %p380, %p381
    %p383 = scmp.ne.s32.totalorder %s372, %s375
    %p384 = scmp.eq.s32.totalorder %s26, 3
    %p385 = por %p383, %p384
    %p386 = scmp.ne.s32.totalorder %s375, %s376
    %p387 = scmp.eq.s32.totalorder %s26, 0
    %p388 = por %p386, %p387
    %p389 = scmp.ne.s32.totalorder %s375, %s376
    %p390 = scmp.eq.s32.totalorder %s27, 3
    %p391 = por %p389, %p390
    %p393 = scmp.ne.s32.totalorder %s376, %s392
    %p394 = scmp.eq.s32.totalorder %s27, 0
    %p395 = por %p393, %p394
    %p396 = scmp.le.s32.totalorder 1, %s21
    %p397 = scmp.lt.s32.totalorder %s21, 5
    %p398 = pnand %p396, %p397
    %p399 = pneg %p398
    // Predicated region
    $region9: #{tpu_custom_call.1} parent=5 // pred_check
      _
    $region10: #{tpu_custom_call.1} parent=5 // pred_check_branch
      %401 = sbr.rel (%p398) target = $region12
    $region11: #{tpu_custom_call.1} parent=5 // pred_region
      %s402 = ssub.s32 %s21, 1
      // Predicated region
      $region13: #{tpu_custom_call.1} parent=11 // pred_check
        %p403 = pneg %p82
      $region14: #{tpu_custom_call.1} parent=11 // pred_check_branch
        %405 = sbr.rel (%p403) target = $region16
      $region15: #{tpu_custom_call.1} parent=11 // pred_region
        _
      $region16: #{tpu_custom_call.1} parent=11 // pred_fallthru
        _
      // Predicated region
      $region17: #{tpu_custom_call.1} parent=11 // pred_check
        %p406 = pneg %p103
      $region18: #{tpu_custom_call.1} parent=11 // pred_check_branch
        %408 = sbr.rel (%p406) target = $region20
      $region19: #{tpu_custom_call.1} parent=11 // pred_region
        _
      $region20: #{tpu_custom_call.1} parent=11 // pred_fallthru
        _
      // Predicated region
      $region21: #{tpu_custom_call.1} parent=11 // pred_check
        %p409 = pneg %p124
      $region22: #{tpu_custom_call.1} parent=11 // pred_check_branch
        %411 = sbr.rel (%p409) target = $region24
      $region23: #{tpu_custom_call.1} parent=11 // pred_region
        _
      $region24: #{tpu_custom_call.1} parent=11 // pred_fallthru
        _
      // Predicated region
      $region25: #{tpu_custom_call.1} parent=11 // pred_check
        %p412 = pneg %p145
      $region26: #{tpu_custom_call.1} parent=11 // pred_check_branch
        %414 = sbr.rel (%p412) target = $region28
      $region27: #{tpu_custom_call.1} parent=11 // pred_region
        _
      $region28: #{tpu_custom_call.1} parent=11 // pred_fallthru
        _
      // Predicated region
      $region29: #{tpu_custom_call.1} parent=11 // pred_check
        %p415 = pneg %p166
      $region30: #{tpu_custom_call.1} parent=11 // pred_check_branch
        %417 = sbr.rel (%p415) target = $region32
      $region31: #{tpu_custom_call.1} parent=11 // pred_region
        _
      $region32: #{tpu_custom_call.1} parent=11 // pred_fallthru
        _
      // Predicated region
      $region33: #{tpu_custom_call.1} parent=11 // pred_check
        %p418 = pneg %p187
      $region34: #{tpu_custom_call.1} parent=11 // pred_check_branch
        %420 = sbr.rel (%p418) target = $region36
      $region35: #{tpu_custom_call.1} parent=11 // pred_region
        _
      $region36: #{tpu_custom_call.1} parent=11 // pred_fallthru
        _
      // Predicated region
      $region37: #{tpu_custom_call.1} parent=11 // pred_check
        %p421 = pneg %p208
      $region38: #{tpu_custom_call.1} parent=11 // pred_check_branch
        %423 = sbr.rel (%p421) target = $region40
      $region39: #{tpu_custom_call.1} parent=11 // pred_region
        _
      $region40: #{tpu_custom_call.1} parent=11 // pred_fallthru
        _
      // Predicated region
      $region41: #{tpu_custom_call.1} parent=11 // pred_check
        %p424 = pneg %p229
      $region42: #{tpu_custom_call.1} parent=11 // pred_check_branch
        %426 = sbr.rel (%p424) target = $region44
      $region43: #{tpu_custom_call.1} parent=11 // pred_region
        _
      $region44: #{tpu_custom_call.1} parent=11 // pred_fallthru
        _
      // Predicated region
      $region45: #{tpu_custom_call.1} parent=11 // pred_check
        %p427 = pneg %p250
      $region46: #{tpu_custom_call.1} parent=11 // pred_check_branch
        %429 = sbr.rel (%p427) target = $region48
      $region47: #{tpu_custom_call.1} parent=11 // pred_region
        _
      $region48: #{tpu_custom_call.1} parent=11 // pred_fallthru
        _
      // Predicated region
      $region49: #{tpu_custom_call.1} parent=11 // pred_check
        %p430 = pneg %p271
      $region50: #{tpu_custom_call.1} parent=11 // pred_check_branch
        %432 = sbr.rel (%p430) target = $region52
      $region51: #{tpu_custom_call.1} parent=11 // pred_region
        _
      $region52: #{tpu_custom_call.1} parent=11 // pred_fallthru
        _
      // Predicated region
      $region53: #{tpu_custom_call.1} parent=11 // pred_check
        %p433 = pneg %p292
      $region54: #{tpu_custom_call.1} parent=11 // pred_check_branch
        %435 = sbr.rel (%p433) target = $region56
      $region55: #{tpu_custom_call.1} parent=11 // pred_region
        _
      $region56: #{tpu_custom_call.1} parent=11 // pred_fallthru
        _
      // Predicated region
      $region57: #{tpu_custom_call.1} parent=11 // pred_check
        %p436 = pneg %p313
      $region58: #{tpu_custom_call.1} parent=11 // pred_check_branch
        %438 = sbr.rel (%p436) target = $region60
      $region59: #{tpu_custom_call.1} parent=11 // pred_region
        _
      $region60: #{tpu_custom_call.1} parent=11 // pred_fallthru
        _
      // Predicated region
      $region61: #{tpu_custom_call.1} parent=11 // pred_check
        %p439 = pneg %p334
      $region62: #{tpu_custom_call.1} parent=11 // pred_check_branch
        %441 = sbr.rel (%p439) target = $region64
      $region63: #{tpu_custom_call.1} parent=11 // pred_region
        _
      $region64: #{tpu_custom_call.1} parent=11 // pred_fallthru
        _
    $region12: #{tpu_custom_call.1} parent=5 // pred_fallthru
      _
    %p442 = scmp.lt.s32.totalorder %s21, 4
    // Predicated region
    $region65: #{tpu_custom_call.1} parent=5 // pred_check
      %p443 = pneg %p442
    $region66: #{tpu_custom_call.1} parent=5 // pred_check_branch
      %445 = sbr.rel (%p443) target = $region68
    $region67: #{tpu_custom_call.1} parent=5 // pred_region
      // Predicated region
      $region69: #{tpu_custom_call.1} parent=67 // pred_check
        %p446 = pneg %p55
      $region70: #{tpu_custom_call.1} parent=67 // pred_check_branch
        %448 = sbr.rel (%p446) target = $region72
      $region71: #{tpu_custom_call.1} parent=67 // pred_region
        %s449 = smul.u32 16, %s29
        %p450 = scmp.lt.s32.totalorder %s28, 1
        %s451 = scalar_select %p450, %s28, 1
        %p452 = scmp.lt.s32.totalorder %s449, 31
        %s453 = scalar_select %p452, %s449, 31
        %s454 = smul.addr %s451, 32
        %s455 = sadd.s32 %s453, %s454
        %s456 = smul.addr %s455, 8
        %s457 = scalar_lea.vmem %s0, %s456
        %s458 = smul.u32 16, %s29
      $region72: #{tpu_custom_call.1} parent=67 // pred_fallthru
        _
      // Predicated region
      $region73: #{tpu_custom_call.1} parent=67 // pred_check
        %p459 = pneg %p354
      $region74: #{tpu_custom_call.1} parent=67 // pred_check_branch
        %461 = sbr.rel (%p459) target = $region76
      $region75: #{tpu_custom_call.1} parent=67 // pred_region
        %s462 = smul.u32 2, %s29
        %p463 = scmp.lt.s32.totalorder %s462, 3
        %s464 = scalar_select %p463, %s462, 3
        %s465 = smul.addr %s464, 8
        %s466 = smul.addr %s465, 8
        %s467 = scalar_lea.vmem %s14, %s466
        %s468 = smul.u32 2, %s29
      $region76: #{tpu_custom_call.1} parent=67 // pred_fallthru
        _
    $region68: #{tpu_custom_call.1} parent=5 // pred_fallthru
      _
    %p469 = scmp.le.s32.totalorder 1, %s21
    %p470 = scmp.lt.s32.totalorder %s21, 5
    %p471 = pnand %p469, %p470
    %p472 = pneg %p471
    // Predicated region
    $region77: #{tpu_custom_call.1} parent=5 // pred_check
      _
    $region78: #{tpu_custom_call.1} parent=5 // pred_check_branch
      %474 = sbr.rel (%p471) target = $region80
    $region79: #{tpu_custom_call.1} parent=5 // pred_region
      %s475 = ssub.s32 %s21, 1
      %s476 = smul.u32 16, %s31
      %p477 = scmp.lt.s32.totalorder %s30, 1
      %s478 = scalar_select %p477, %s30, 1
      %p479 = scmp.lt.s32.totalorder %s476, 31
      %s480 = scalar_select %p479, %s476, 31
      %s481 = smul.addr %s478, 32
      %s482 = sadd.s32 %s480, %s481
      %s483 = smul.addr %s482, 8
      %s484 = scalar_lea.vmem %s0, %s483
      %p485 = pneg %p61
      %p486 = pneg %p58
      %p487 = pneg %p82
      %p488 = pneg %p79
      %p489 = pneg %p103
      %p490 = pneg %p100
      %p491 = pneg %p124
      %p492 = pneg %p121
      %p493 = pneg %p145
      %p494 = pneg %p142
      %p495 = pneg %p166
      %p496 = pneg %p163
      %p497 = pneg %p187
      %p498 = pneg %p184
      %p499 = pneg %p208
      %p500 = pneg %p205
      %p501 = pneg %p229
      %p502 = pneg %p226
      %p503 = pneg %p250
      %p504 = pneg %p247
      %p505 = pneg %p271
      %p506 = pneg %p268
      %p507 = pneg %p292
      %p508 = pneg %p289
      %p509 = pneg %p313
      %p510 = pneg %p310
      %p511 = pneg %p334
      %p512 = pneg %p331
      %s513 = smul.u32 2, %s31
      %p514 = scmp.lt.s32.totalorder %s513, 3
      %s515 = scalar_select %p514, %s513, 3
      %s516 = smul.addr %s515, 8
      %s517 = smul.addr %s516, 8
      %s518 = scalar_lea.vmem %s14, %s517
      %p519 = pneg %p360
      %p520 = pneg %p357
      %p521 = pneg %p388
      %p522 = pneg %p385
      %s523 = smul.u32 16, %s31
      %p524 = scmp.lt.s32.totalorder %s30, 1
      %s525 = scalar_select %p524, %s30, 1
      %p526 = scmp.lt.s32.totalorder %s523, 31
      %s527 = scalar_select %p526, %s523, 31
      %s528 = smul.addr %s525, 32
      %s529 = sadd.s32 %s527, %s528
      %s530 = smul.addr %s529, 8
      %s531 = scalar_lea.vmem %s15, %s530
      %s532 = smul.u32 16, %s31
      %p533 = scmp.lt.s32.totalorder %s30, 1
      %s534 = scalar_select %p533, %s30, 1
      %p535 = scmp.lt.s32.totalorder %s532, 31
      %s536 = scalar_select %p535, %s532, 31
      %s537 = smul.addr %s534, 32
      %s538 = sadd.s32 %s536, %s537
      %s539 = smul.addr %s538, 8
      %s540 = scalar_lea.vmem %s0, %s539
      %s541 = smul.u32 16, %s31
      %s542 = smul.u32 2, %s31
      %p543 = scmp.lt.s32.totalorder %s542, 3
      %s544 = scalar_select %p543, %s542, 3
      %s545 = smul.addr %s544, 8
      %s546 = smul.addr %s545, 8
      %s547 = scalar_lea.vmem %s14, %s546
      %s548 = smul.u32 2, %s31
      %s549 = smul.u32 16, %s31
      %p550 = scmp.lt.s32.totalorder %s30, 1
      %s551 = scalar_select %p550, %s30, 1
      %p552 = scmp.lt.s32.totalorder %s549, 31
      %s553 = scalar_select %p552, %s549, 31
      %s554 = smul.addr %s551, 32
      %s555 = sadd.s32 %s553, %s554
      %s556 = smul.addr %s555, 8
      %s557 = scalar_lea.vmem %s15, %s556
      %s558 = smul.u32 16, %s31
      %v560 = vld [vmem:[%s540] sm:$0xff]
      %v561 = vld [vmem:[%s540 + $0x8] sm:$0xff]
      %v562 = vld [vmem:[%s540 + $0x10] sm:$0xff]
      %v563 = vld [vmem:[%s540 + $0x18] sm:$0xff]
      %v564 = vld [vmem:[%s540 + $0x20] sm:$0xff]
      %v565 = vld [vmem:[%s540 + $0x28] sm:$0xff]
      %v566 = vld [vmem:[%s540 + $0x30] sm:$0xff]
      %v567 = vld [vmem:[%s540 + $0x38] sm:$0xff]
      %v568 = vld [vmem:[%s540 + $0x40] sm:$0xff]
      %v569 = vld [vmem:[%s540 + $0x48] sm:$0xff]
      %v570 = vld [vmem:[%s540 + $0x50] sm:$0xff]
      %v571 = vld [vmem:[%s540 + $0x58] sm:$0xff]
      %v572 = vld [vmem:[%s540 + $0x60] sm:$0xff]
      %v573 = vld [vmem:[%s540 + $0x68] sm:$0xff]
      %v574 = vld [vmem:[%s540 + $0x70] sm:$0xff]
      %v575 = vld [vmem:[%s540 + $0x78] sm:$0xff]
      %vm576 = vcmask 261120
      %v577 = vsel %vm576, %v560, 0.0
      %578 = vadd.xlane.f32.xlu0 %v577
      %v579 = vpop.xlane.xlu0 %578
      %v580 = vsel %vm576, %v561, 0.0
      %581 = vadd.xlane.f32.xlu0 %v580
      %v582 = vpop.xlane.xlu0 %581
      %v583 = vsel %vm576, %v562, 0.0
      %584 = vadd.xlane.f32.xlu0 %v583
      %v585 = vpop.xlane.xlu0 %584
      %v586 = vsel %vm576, %v563, 0.0
      %587 = vadd.xlane.f32.xlu0 %v586
      %v588 = vpop.xlane.xlu0 %587
      %v589 = vsel %vm576, %v564, 0.0
      %590 = vadd.xlane.f32.xlu0 %v589
      %v591 = vpop.xlane.xlu0 %590
      %v592 = vsel %vm576, %v565, 0.0
      %593 = vadd.xlane.f32.xlu0 %v592
      %v594 = vpop.xlane.xlu0 %593
      %v595 = vsel %vm576, %v566, 0.0
      %596 = vadd.xlane.f32.xlu0 %v595
      %v597 = vpop.xlane.xlu0 %596
      %v598 = vsel %vm576, %v567, 0.0
      %599 = vadd.xlane.f32.xlu0 %v598
      %v600 = vpop.xlane.xlu0 %599
      %v601 = vsel %vm576, %v568, 0.0
      %602 = vadd.xlane.f32.xlu0 %v601
      %v603 = vpop.xlane.xlu0 %602
      %v604 = vsel %vm576, %v569, 0.0
      %605 = vadd.xlane.f32.xlu0 %v604
      %v606 = vpop.xlane.xlu0 %605
      %v607 = vsel %vm576, %v570, 0.0
      %608 = vadd.xlane.f32.xlu0 %v607
      %v609 = vpop.xlane.xlu0 %608
      %v610 = vsel %vm576, %v571, 0.0
      %611 = vadd.xlane.f32.xlu0 %v610
      %v612 = vpop.xlane.xlu0 %611
      %v613 = vsel %vm576, %v572, 0.0
      %614 = vadd.xlane.f32.xlu0 %v613
      %v615 = vpop.xlane.xlu0 %614
      %v616 = vsel %vm576, %v573, 0.0
      %617 = vadd.xlane.f32.xlu0 %v616
      %v618 = vpop.xlane.xlu0 %617
      %v619 = vsel %vm576, %v574, 0.0
      %620 = vadd.xlane.f32.xlu0 %v619
      %v621 = vpop.xlane.xlu0 %620
      %v622 = vsel %vm576, %v575, 0.0
      %623 = vadd.xlane.f32.xlu0 %v622
      %v624 = vpop.xlane.xlu0 %623
      %v625 = vrcp.pop 32.0
      %v626 = vmul.f32 %v579, %v625
      %v627 = vmul.f32 %v582, %v625
      %v628 = vmul.f32 %v585, %v625
      %v629 = vmul.f32 %v588, %v625
      %v630 = vmul.f32 %v591, %v625
      %v631 = vmul.f32 %v594, %v625
      %v632 = vmul.f32 %v597, %v625
      %v633 = vmul.f32 %v600, %v625
      %v634 = vmul.f32 %v603, %v625
      %v635 = vmul.f32 %v606, %v625
      %v636 = vmul.f32 %v609, %v625
      %v637 = vmul.f32 %v612, %v625
      %v638 = vmul.f32 %v615, %v625
      %v639 = vmul.f32 %v618, %v625
      %v640 = vmul.f32 %v621, %v625
      %v641 = vmul.f32 %v624, %v625
      %v642 = vsub.f32 %v560, %v626
      %v643 = vsub.f32 %v561, %v627
      %v644 = vsub.f32 %v562, %v628
      %v645 = vsub.f32 %v563, %v629
      %v646 = vsub.f32 %v564, %v630
      %v647 = vsub.f32 %v565, %v631
      %v648 = vsub.f32 %v566, %v632
      %v649 = vsub.f32 %v567, %v633
      %v650 = vsub.f32 %v568, %v634
      %v651 = vsub.f32 %v569, %v635
      %v652 = vsub.f32 %v570, %v636
      %v653 = vsub.f32 %v571, %v637
      %v654 = vsub.f32 %v572, %v638
      %v655 = vsub.f32 %v573, %v639
      %v656 = vsub.f32 %v574, %v640
      %v657 = vsub.f32 %v575, %v641
      %v658 = vmul.f32 %v642, %v642
      %v659 = vmul.f32 %v643, %v643
      %v660 = vmul.f32 %v644, %v644
      %v661 = vmul.f32 %v645, %v645
      %v662 = vmul.f32 %v646, %v646
      %v663 = vmul.f32 %v647, %v647
      %v664 = vmul.f32 %v648, %v648
      %v665 = vmul.f32 %v649, %v649
      %v666 = vmul.f32 %v650, %v650
      %v667 = vmul.f32 %v651, %v651
      %v668 = vmul.f32 %v652, %v652
      %v669 = vmul.f32 %v653, %v653
      %v670 = vmul.f32 %v654, %v654
      %v671 = vmul.f32 %v655, %v655
      %v672 = vmul.f32 %v656, %v656
      %v673 = vmul.f32 %v657, %v657
      %v674 = vsel %vm576, %v658, 0.0
      %675 = vadd.xlane.f32.xlu0 %v674
      %v676 = vpop.xlane.xlu0 %675
      %v677 = vsel %vm576, %v659, 0.0
      %678 = vadd.xlane.f32.xlu0 %v677
      %v679 = vpop.xlane.xlu0 %678
      %v680 = vsel %vm576, %v660, 0.0
      %681 = vadd.xlane.f32.xlu0 %v680
      %v682 = vpop.xlane.xlu0 %681
      %v683 = vsel %vm576, %v661, 0.0
      %684 = vadd.xlane.f32.xlu0 %v683
      %v685 = vpop.xlane.xlu0 %684
      %v686 = vsel %vm576, %v662, 0.0
      %687 = vadd.xlane.f32.xlu0 %v686
      %v688 = vpop.xlane.xlu0 %687
      %v689 = vsel %vm576, %v663, 0.0
      %690 = vadd.xlane.f32.xlu0 %v689
      %v691 = vpop.xlane.xlu0 %690
      %v692 = vsel %vm576, %v664, 0.0
      %693 = vadd.xlane.f32.xlu0 %v692
      %v694 = vpop.xlane.xlu0 %693
      %v695 = vsel %vm576, %v665, 0.0
      %696 = vadd.xlane.f32.xlu0 %v695
      %v697 = vpop.xlane.xlu0 %696
      %v698 = vsel %vm576, %v666, 0.0
      %699 = vadd.xlane.f32.xlu0 %v698
      %v700 = vpop.xlane.xlu0 %699
      %v701 = vsel %vm576, %v667, 0.0
      %702 = vadd.xlane.f32.xlu0 %v701
      %v703 = vpop.xlane.xlu0 %702
      %v704 = vsel %vm576, %v668, 0.0
      %705 = vadd.xlane.f32.xlu0 %v704
      %v706 = vpop.xlane.xlu0 %705
      %v707 = vsel %vm576, %v669, 0.0
      %708 = vadd.xlane.f32.xlu0 %v707
      %v709 = vpop.xlane.xlu0 %708
      %v710 = vsel %vm576, %v670, 0.0
      %711 = vadd.xlane.f32.xlu0 %v710
      %v712 = vpop.xlane.xlu0 %711
      %v713 = vsel %vm576, %v671, 0.0
      %714 = vadd.xlane.f32.xlu0 %v713
      %v715 = vpop.xlane.xlu0 %714
      %v716 = vsel %vm576, %v672, 0.0
      %717 = vadd.xlane.f32.xlu0 %v716
      %v718 = vpop.xlane.xlu0 %717
      %v719 = vsel %vm576, %v673, 0.0
      %720 = vadd.xlane.f32.xlu0 %v719
      %v721 = vpop.xlane.xlu0 %720
      %v722 = vmul.f32 %v676, %v625
      %v723 = vmul.f32 %v679, %v625
      %v724 = vmul.f32 %v682, %v625
      %v725 = vmul.f32 %v685, %v625
      %v726 = vmul.f32 %v688, %v625
      %v727 = vmul.f32 %v691, %v625
      %v728 = vmul.f32 %v694, %v625
      %v729 = vmul.f32 %v697, %v625
      %v730 = vmul.f32 %v700, %v625
      %v731 = vmul.f32 %v703, %v625
      %v732 = vmul.f32 %v706, %v625
      %v733 = vmul.f32 %v709, %v625
      %v734 = vmul.f32 %v712, %v625
      %v735 = vmul.f32 %v715, %v625
      %v736 = vmul.f32 %v718, %v625
      %v737 = vmul.f32 %v721, %v625
      %v738 = vadd.f32 %v722, 1e-05
      %v739 = vadd.f32 %v723, 1e-05
      %v740 = vadd.f32 %v724, 1e-05
      %v741 = vadd.f32 %v725, 1e-05
      %v742 = vadd.f32 %v726, 1e-05
      %v743 = vadd.f32 %v727, 1e-05
      %v744 = vadd.f32 %v728, 1e-05
      %v745 = vadd.f32 %v729, 1e-05
      %v746 = vadd.f32 %v730, 1e-05
      %v747 = vadd.f32 %v731, 1e-05
      %v748 = vadd.f32 %v732, 1e-05
      %v749 = vadd.f32 %v733, 1e-05
      %v750 = vadd.f32 %v734, 1e-05
      %v751 = vadd.f32 %v735, 1e-05
      %v752 = vadd.f32 %v736, 1e-05
      %v753 = vadd.f32 %v737, 1e-05
      %v754 = vrsqrt.pop %v738
      %v755 = vrsqrt.pop %v739
      %v756 = vrsqrt.pop %v740
      %v757 = vrsqrt.pop %v741
      %v758 = vrsqrt.pop %v742
      %v759 = vrsqrt.pop %v743
      %v760 = vrsqrt.pop %v744
      %v761 = vrsqrt.pop %v745
      %v762 = vrsqrt.pop %v746
      %v763 = vrsqrt.pop %v747
      %v764 = vrsqrt.pop %v748
      %v765 = vrsqrt.pop %v749
      %v766 = vrsqrt.pop %v750
      %v767 = vrsqrt.pop %v751
      %v768 = vrsqrt.pop %v752
      %v769 = vrsqrt.pop %v753
      %v770 = vmul.f32 %v642, %v754
      %v771 = vmul.f32 %v643, %v755
      %v772 = vmul.f32 %v644, %v756
      %v773 = vmul.f32 %v645, %v757
      %v774 = vmul.f32 %v646, %v758
      %v775 = vmul.f32 %v647, %v759
      %v776 = vmul.f32 %v648, %v760
      %v777 = vmul.f32 %v649, %v761
      %v778 = vmul.f32 %v650, %v762
      %v779 = vmul.f32 %v651, %v763
      %v780 = vmul.f32 %v652, %v764
      %v781 = vmul.f32 %v653, %v765
      %v782 = vmul.f32 %v654, %v766
      %v783 = vmul.f32 %v655, %v767
      %v784 = vmul.f32 %v656, %v768
      %v785 = vmul.f32 %v657, %v769
      %v786 = vld [vmem:[%s1] sm:$0x1]
      %v788 = vlaneseq
      %v789 = vshrl.u32 %v788, 7
      %v790 = vsub.s32 0, %v789
      %v791 = vrot.slane %v786, %v790
      %v793 = vmul.f32 %v770, %v791
      %v794 = vmul.f32 %v771, %v791
      %v795 = vmul.f32 %v772, %v791
      %v796 = vmul.f32 %v773, %v791
      %v797 = vmul.f32 %v774, %v791
      %v798 = vmul.f32 %v775, %v791
      %v799 = vmul.f32 %v776, %v791
      %v800 = vmul.f32 %v777, %v791
      %v801 = vmul.f32 %v778, %v791
      %v802 = vmul.f32 %v779, %v791
      %v803 = vmul.f32 %v780, %v791
      %v804 = vmul.f32 %v781, %v791
      %v805 = vmul.f32 %v782, %v791
      %v806 = vmul.f32 %v783, %v791
      %v807 = vmul.f32 %v784, %v791
      %v808 = vmul.f32 %v785, %v791
      %v809 = vld [vmem:[%s2] sm:$0x1]
      %v811 = vlaneseq
      %v812 = vshrl.u32 %v811, 7
      %v813 = vsub.s32 0, %v812
      %v814 = vrot.slane %v809, %v813
      %v816 = vadd.f32 %v793, %v814
      %v817 = vadd.f32 %v794, %v814
      %v818 = vadd.f32 %v795, %v814
      %v819 = vadd.f32 %v796, %v814
      %v820 = vadd.f32 %v797, %v814
      %v821 = vadd.f32 %v798, %v814
      %v822 = vadd.f32 %v799, %v814
      %v823 = vadd.f32 %v800, %v814
      %v824 = vadd.f32 %v801, %v814
      %v825 = vadd.f32 %v802, %v814
      %v826 = vadd.f32 %v803, %v814
      %v827 = vadd.f32 %v804, %v814
      %v828 = vadd.f32 %v805, %v814
      %v829 = vadd.f32 %v806, %v814
      %v830 = vadd.f32 %v807, %v814
      %v831 = vadd.f32 %v808, %v814
      %v832 = vpack.c.bf16 %v817, %v816
      %v833 = vpack.c.bf16 %v819, %v818
      %v834 = vpack.c.bf16 %v821, %v820
      %v835 = vpack.c.bf16 %v823, %v822
      %v836 = vpack.c.bf16 %v825, %v824
      %v837 = vpack.c.bf16 %v827, %v826
      %v838 = vpack.c.bf16 %v829, %v828
      %v839 = vpack.c.bf16 %v831, %v830
      %v840 = vld [vmem:[%s3] sm:$0xf]
      %v841 = vld [vmem:[%s3 + $0x4] sm:$0xf]
      %v842 = vld [vmem:[%s3 + $0x8] sm:$0xf]
      %v843 = vld [vmem:[%s3 + $0xc] sm:$0xf]
      %v844 = vld [vmem:[%s4] sm:$0x1]
      %v846 = vlaneseq
      %v847 = vshrl.u32 %v846, 7
      %v848 = vsub.s32 0, %v847
      %v849 = vrot.slane %v844, %v848
      %v855 = vunpack.c.l.b16 %v840
      %v856 = vunpack.c.l.b16 %v841
      %v857 = vunpack.c.l.b16 %v842
      %v858 = vunpack.c.l.b16 %v843
      %v859 = vpack.c.b16 %v856, %v855
      %v860 = vpack.c.b16 %v858, %v857
      %v864 = vsel %vm576, %v832, 0
      %v867 = vsel %vm576, %v833, 0
      %v870 = vsel %vm576, %v834, 0
      %v873 = vsel %vm576, %v835, 0
      %v876 = vsel %vm576, %v836, 0
      %v879 = vsel %vm576, %v837, 0
      %v882 = vsel %vm576, %v838, 0
      %v885 = vsel %vm576, %v839, 0
      %887 = vmatprep.subr.bf16.mxu0 0
      %888 = vmatpush1.bf16.msra.mxu0 0
      %889 = vmatprep.subr.bf16.mxu0 0
      %890 = vmatpush1.bf16.msra.mxu0 0
      %891 = vmatprep.subr.bf16.mxu0 0
      %892 = vmatpush1.bf16.msra.mxu0 0
      %893 = vmatprep.subr.bf16.mxu0 0
      %894 = vmatpush1.bf16.msra.mxu0 0
      %895 = vmatprep.subr.bf16.mxu0 0
      %896 = vmatpush1.bf16.msra.mxu0 0
      %897 = vmatprep.subr.bf16.mxu0 0
      %898 = vmatpush1.bf16.msra.mxu0 0
      %899 = vmatprep.subr.bf16.mxu0 0
      %900 = vmatpush1.bf16.msra.mxu0 %v860
      %901 = vmatprep.subr.bf16.mxu0 0
      %902 = vmatpush1.bf16.msra.mxu0 %v859
      %903 = vmatprep.subr.bf16.mxu0 0
      %904 = vmatpush2.bf16.msra.mxu0 0
      %905 = vmatprep.subr.bf16.mxu0 0
      %906 = vmatpush2.bf16.msra.mxu0 0
      %907 = vmatprep.subr.bf16.mxu0 0
      %908 = vmatpush2.bf16.msra.mxu0 0
      %909 = vmatprep.subr.bf16.mxu0 0
      %910 = vmatpush2.bf16.msra.mxu0 0
      %911 = vmatprep.subr.bf16.mxu0 0
      %912 = vmatpush2.bf16.msra.mxu0 0
      %913 = vmatprep.subr.bf16.mxu0 0
      %914 = vmatpush2.bf16.msra.mxu0 0
      %915 = vmatprep.subr.bf16.mxu0 0
      %916 = vmatpush2.bf16.msra.mxu0 0
      %917 = vmatprep.subr.bf16.mxu0 0
      %918 = vmatpush2.bf16.msra.mxu0 0
      %919 = vmatprep.mubr.bf16.mxu0 0
      %920 = vmatmul.mubr.bf16.gmra.mxu0 %v864
      %v921 = vpop.f32.mrf.mxu0
      %v922 = vadd.f32 %v849, %v921
      %v923 = vpop.f32.mrf.mxu0
      %v924 = vpop.f32.mrf.mxu0
      %v925 = vadd.f32 %v849, %v924
      %v926 = vpop.f32.mrf.mxu0
      %927 = vmatprep.mubr.bf16.mxu0 0
      %928 = vmatmul.mubr.bf16.gmra.mxu0 %v867
      %v929 = vpop.f32.mrf.mxu0
      %v930 = vadd.f32 %v849, %v929
      %v931 = vpop.f32.mrf.mxu0
      %v932 = vpop.f32.mrf.mxu0
      %v933 = vadd.f32 %v849, %v932
      %v934 = vpop.f32.mrf.mxu0
      %935 = vmatprep.mubr.bf16.mxu0 0
      %936 = vmatmul.mubr.bf16.gmra.mxu0 %v870
      %v937 = vpop.f32.mrf.mxu0
      %v938 = vadd.f32 %v849, %v937
      %v939 = vpop.f32.mrf.mxu0
      %v940 = vpop.f32.mrf.mxu0
      %v941 = vadd.f32 %v849, %v940
      %v942 = vpop.f32.mrf.mxu0
      %943 = vmatprep.mubr.bf16.mxu0 0
      %944 = vmatmul.mubr.bf16.gmra.mxu0 %v873
      %v945 = vpop.f32.mrf.mxu0
      %v946 = vadd.f32 %v849, %v945
      %v947 = vpop.f32.mrf.mxu0
      %v948 = vpop.f32.mrf.mxu0
      %v949 = vadd.f32 %v849, %v948
      %v950 = vpop.f32.mrf.mxu0
      %951 = vmatprep.mubr.bf16.mxu0 0
      %952 = vmatmul.mubr.bf16.gmra.mxu0 %v876
      %v953 = vpop.f32.mrf.mxu0
      %v954 = vadd.f32 %v849, %v953
      %v955 = vpop.f32.mrf.mxu0
      %v956 = vpop.f32.mrf.mxu0
      %v957 = vadd.f32 %v849, %v956
      %v958 = vpop.f32.mrf.mxu0
      %959 = vmatprep.mubr.bf16.mxu0 0
      %960 = vmatmul.mubr.bf16.gmra.mxu0 %v879
      %v961 = vpop.f32.mrf.mxu0
      %v962 = vadd.f32 %v849, %v961
      %v963 = vpop.f32.mrf.mxu0
      %v964 = vpop.f32.mrf.mxu0
      %v965 = vadd.f32 %v849, %v964
      %v966 = vpop.f32.mrf.mxu0
      %967 = vmatprep.mubr.bf16.mxu0 0
      %968 = vmatmul.mubr.bf16.gmra.mxu0 %v882
      %v969 = vpop.f32.mrf.mxu0
      %v970 = vadd.f32 %v849, %v969
      %v971 = vpop.f32.mrf.mxu0
      %v972 = vpop.f32.mrf.mxu0
      %v973 = vadd.f32 %v849, %v972
      %v974 = vpop.f32.mrf.mxu0
      %975 = vmatprep.mubr.bf16.mxu0 0
      %976 = vmatmul.mubr.bf16.gmra.mxu0 %v885
      %v977 = vpop.f32.mrf.mxu0
      %v978 = vadd.f32 %v849, %v977
      %v979 = vpop.f32.mrf.mxu0
      %v980 = vpop.f32.mrf.mxu0
      %v981 = vadd.f32 %v849, %v980
      %v982 = vpop.f32.mrf.mxu0
      %983 = vdwg.mxu0
      %v984 = vpack.c.bf16 %v925, %v922
      %v985 = vpack.c.bf16 %v933, %v930
      %v986 = vpack.c.bf16 %v941, %v938
      %v987 = vpack.c.bf16 %v949, %v946
      %v988 = vpack.c.bf16 %v957, %v954
      %v989 = vpack.c.bf16 %v965, %v962
      %v990 = vpack.c.bf16 %v973, %v970
      %v991 = vpack.c.bf16 %v981, %v978
      %v992 = vld [vmem:[%s5] sm:$0xff]
      %v993 = vld [vmem:[%s5 + $0x8] sm:$0xff]
      %v994 = vld [vmem:[%s5 + $0x10] sm:$0xff]
      %v995 = vld [vmem:[%s5 + $0x18] sm:$0xff]
      %v996 = vld [vmem:[%s5 + $0x20] sm:$0xff]
      %v997 = vld [vmem:[%s5 + $0x28] sm:$0xff]
      %v998 = vld [vmem:[%s5 + $0x30] sm:$0xff]
      %v999 = vld [vmem:[%s5 + $0x38] sm:$0xff]
      %1004 = vrot.lane.b32.xlu0 %v984, 96
      %v1005 = vpop.permute.xlu0 %1004
      %1006 = vrot.lane.b32.xlu0 %v985, 96
      %v1007 = vpop.permute.xlu0 %1006
      %1008 = vrot.lane.b32.xlu0 %v986, 96
      %v1009 = vpop.permute.xlu0 %1008
      %1010 = vrot.lane.b32.xlu0 %v987, 96
      %v1011 = vpop.permute.xlu0 %1010
      %vm1012 = vcmask 64512
      %v1014 = vsel %vm1012, %v984, 0
      %v1017 = vsel %vm1012, %v985, 0
      %v1020 = vsel %vm1012, %v986, 0
      %v1023 = vsel %vm1012, %v987, 0
      %v1026 = vsel %vm1012, %v1005, 0
      %v1029 = vsel %vm1012, %v1007, 0
      %v1032 = vsel %vm1012, %v1009, 0
      %v1035 = vsel %vm1012, %v1011, 0
      %1037 = vmatprep.subr.bf16.mxu0 0
      %1038 = vmatpush1.bf16.xpose.msra.mxu0 0
      %1039 = vmatprep.subr.bf16.mxu0 0
      %1040 = vmatpush1.bf16.xpose.msra.mxu0 0
      %1041 = vmatprep.subr.bf16.mxu0 0
      %1042 = vmatpush1.bf16.xpose.msra.mxu0 0
      %1043 = vmatprep.subr.bf16.mxu0 0
      %1044 = vmatpush1.bf16.xpose.msra.mxu0 0
      %1045 = vmatprep.subr.bf16.mxu0 0
      %1046 = vmatpush1.bf16.xpose.msra.mxu0 %v1035
      %1047 = vmatprep.subr.bf16.mxu0 0
      %1048 = vmatpush1.bf16.xpose.msra.mxu0 %v1032
      %1049 = vmatprep.subr.bf16.mxu0 0
      %1050 = vmatpush1.bf16.xpose.msra.mxu0 %v1029
      %1051 = vmatprep.subr.bf16.mxu0 0
      %1052 = vmatpush1.bf16.xpose.msra.mxu0 %v1026
      %1053 = vmatprep.subr.bf16.mxu0 0
      %1054 = vmatpush2.bf16.xpose.msra.mxu0 0
      %1055 = vmatprep.subr.bf16.mxu0 0
      %1056 = vmatpush2.bf16.xpose.msra.mxu0 0
      %1057 = vmatprep.subr.bf16.mxu0 0
      %1058 = vmatpush2.bf16.xpose.msra.mxu0 0
      %1059 = vmatprep.subr.bf16.mxu0 0
      %1060 = vmatpush2.bf16.xpose.msra.mxu0 0
      %1061 = vmatprep.subr.bf16.mxu0 0
      %1062 = vmatpush2.bf16.xpose.msra.mxu0 0
      %1063 = vmatprep.subr.bf16.mxu0 0
      %1064 = vmatpush2.bf16.xpose.msra.mxu0 0
      %1065 = vmatprep.subr.bf16.mxu0 0
      %1066 = vmatpush2.bf16.xpose.msra.mxu0 0
      %1067 = vmatprep.subr.bf16.mxu0 0
      %1068 = vmatpush2.bf16.xpose.msra.mxu0 0
      %1069 = vmatprep.mubr.bf16.mxu0 0
      %1070 = vmatmul.mubr.bf16.gmra.mxu0 %v1014
      %v1071 = vpop.f32.mrf.mxu0
      %v1072 = vadd.f32 %v992, %v1071
      %v1073 = vpop.f32.mrf.mxu0
      %v1074 = vpop.f32.mrf.mxu0
      %v1075 = vadd.f32 %v993, %v1074
      %v1076 = vpop.f32.mrf.mxu0
      %1077 = vmatprep.mubr.bf16.mxu0 0
      %1078 = vmatmul.mubr.bf16.gmra.mxu0 %v1017
      %v1079 = vpop.f32.mrf.mxu0
      %v1080 = vadd.f32 %v994, %v1079
      %v1081 = vpop.f32.mrf.mxu0
      %v1082 = vpop.f32.mrf.mxu0
      %v1083 = vadd.f32 %v995, %v1082
      %v1084 = vpop.f32.mrf.mxu0
      %1085 = vmatprep.mubr.bf16.mxu0 0
      %1086 = vmatmul.mubr.bf16.gmra.mxu0 %v1020
      %v1087 = vpop.f32.mrf.mxu0
      %v1088 = vadd.f32 %v996, %v1087
      %v1089 = vpop.f32.mrf.mxu0
      %v1090 = vpop.f32.mrf.mxu0
      %v1091 = vadd.f32 %v997, %v1090
      %v1092 = vpop.f32.mrf.mxu0
      %1093 = vmatprep.mubr.bf16.mxu0 0
      %1094 = vmatmul.mubr.bf16.gmra.mxu0 %v1023
      %v1095 = vpop.f32.mrf.mxu0
      %v1096 = vadd.f32 %v998, %v1095
      %v1097 = vpop.f32.mrf.mxu0
      %v1098 = vpop.f32.mrf.mxu0
      %v1099 = vadd.f32 %v999, %v1098
      %v1100 = vpop.f32.mrf.mxu0
      %1101 = vdwg.mxu0
      %1106 = vrot.lane.b32.xlu0 %v988, 96
      %v1107 = vpop.permute.xlu0 %1106
      %1108 = vrot.lane.b32.xlu0 %v989, 96
      %v1109 = vpop.permute.xlu0 %1108
      %1110 = vrot.lane.b32.xlu0 %v990, 96
      %v1111 = vpop.permute.xlu0 %1110
      %1112 = vrot.lane.b32.xlu0 %v991, 96
      %v1113 = vpop.permute.xlu0 %1112
      %v1115 = vsel %vm1012, %v988, 0
      %v1118 = vsel %vm1012, %v989, 0
      %v1121 = vsel %vm1012, %v990, 0
      %v1124 = vsel %vm1012, %v991, 0
      %v1127 = vsel %vm1012, %v1107, 0
      %v1130 = vsel %vm1012, %v1109, 0
      %v1133 = vsel %vm1012, %v1111, 0
      %v1136 = vsel %vm1012, %v1113, 0
      %1138 = vmatprep.subr.bf16.mxu0 0
      %1139 = vmatpush1.bf16.xpose.msra.mxu0 0
      %1140 = vmatprep.subr.bf16.mxu0 0
      %1141 = vmatpush1.bf16.xpose.msra.mxu0 0
      %1142 = vmatprep.subr.bf16.mxu0 0
      %1143 = vmatpush1.bf16.xpose.msra.mxu0 0
      %1144 = vmatprep.subr.bf16.mxu0 0
      %1145 = vmatpush1.bf16.xpose.msra.mxu0 0
      %1146 = vmatprep.subr.bf16.mxu0 0
      %1147 = vmatpush1.bf16.xpose.msra.mxu0 %v1136
      %1148 = vmatprep.subr.bf16.mxu0 0
      %1149 = vmatpush1.bf16.xpose.msra.mxu0 %v1133
      %1150 = vmatprep.subr.bf16.mxu0 0
      %1151 = vmatpush1.bf16.xpose.msra.mxu0 %v1130
      %1152 = vmatprep.subr.bf16.mxu0 0
      %1153 = vmatpush1.bf16.xpose.msra.mxu0 %v1127
      %1154 = vmatprep.subr.bf16.mxu0 0
      %1155 = vmatpush2.bf16.xpose.msra.mxu0 0
      %1156 = vmatprep.subr.bf16.mxu0 0
      %1157 = vmatpush2.bf16.xpose.msra.mxu0 0
      %1158 = vmatprep.subr.bf16.mxu0 0
      %1159 = vmatpush2.bf16.xpose.msra.mxu0 0
      %1160 = vmatprep.subr.bf16.mxu0 0
      %1161 = vmatpush2.bf16.xpose.msra.mxu0 0
      %1162 = vmatprep.subr.bf16.mxu0 0
      %1163 = vmatpush2.bf16.xpose.msra.mxu0 0
      %1164 = vmatprep.subr.bf16.mxu0 0
      %1165 = vmatpush2.bf16.xpose.msra.mxu0 0
      %1166 = vmatprep.subr.bf16.mxu0 0
      %1167 = vmatpush2.bf16.xpose.msra.mxu0 0
      %1168 = vmatprep.subr.bf16.mxu0 0
      %1169 = vmatpush2.bf16.xpose.msra.mxu0 0
      %1170 = vmatprep.mubr.bf16.mxu0 0
      %1171 = vmatmul.mubr.bf16.gmra.mxu0 %v1115
      %v1172 = vpop.f32.mrf.mxu0
      %v1173 = vadd.f32 %v992, %v1172
      %v1174 = vpop.f32.mrf.mxu0
      %v1175 = vpop.f32.mrf.mxu0
      %v1176 = vadd.f32 %v993, %v1175
      %v1177 = vpop.f32.mrf.mxu0
      %1178 = vmatprep.mubr.bf16.mxu0 0
      %1179 = vmatmul.mubr.bf16.gmra.mxu0 %v1118
      %v1180 = vpop.f32.mrf.mxu0
      %v1181 = vadd.f32 %v994, %v1180
      %v1182 = vpop.f32.mrf.mxu0
      %v1183 = vpop.f32.mrf.mxu0
      %v1184 = vadd.f32 %v995, %v1183
      %v1185 = vpop.f32.mrf.mxu0
      %1186 = vmatprep.mubr.bf16.mxu0 0
      %1187 = vmatmul.mubr.bf16.gmra.mxu0 %v1121
      %v1188 = vpop.f32.mrf.mxu0
      %v1189 = vadd.f32 %v996, %v1188
      %v1190 = vpop.f32.mrf.mxu0
      %v1191 = vpop.f32.mrf.mxu0
      %v1192 = vadd.f32 %v997, %v1191
      %v1193 = vpop.f32.mrf.mxu0
      %1194 = vmatprep.mubr.bf16.mxu0 0
      %1195 = vmatmul.mubr.bf16.gmra.mxu0 %v1124
      %v1196 = vpop.f32.mrf.mxu0
      %v1197 = vadd.f32 %v998, %v1196
      %v1198 = vpop.f32.mrf.mxu0
      %v1199 = vpop.f32.mrf.mxu0
      %v1200 = vadd.f32 %v999, %v1199
      %v1201 = vpop.f32.mrf.mxu0
      %1202 = vdwg.mxu0
      %v1203 = vld [vmem:[%s547] sm:$0xff]
      %v1204 = vld [vmem:[%s547 + $0x8] sm:$0xff]
      %v1205 = vld [vmem:[%s547 + $0x10] sm:$0xff]
      %v1206 = vld [vmem:[%s547 + $0x18] sm:$0xff]
      %v1207 = vld [vmem:[%s547 + $0x20] sm:$0xff]
      %v1208 = vld [vmem:[%s547 + $0x28] sm:$0xff]
      %v1209 = vld [vmem:[%s547 + $0x30] sm:$0xff]
      %v1210 = vld [vmem:[%s547 + $0x38] sm:$0xff]
      %v1211 = vld [vmem:[%s547 + $0x40] sm:$0xff]
      %v1212 = vld [vmem:[%s547 + $0x48] sm:$0xff]
      %v1213 = vld [vmem:[%s547 + $0x50] sm:$0xff]
      %v1214 = vld [vmem:[%s547 + $0x58] sm:$0xff]
      %v1215 = vld [vmem:[%s547 + $0x60] sm:$0xff]
      %v1216 = vld [vmem:[%s547 + $0x68] sm:$0xff]
      %v1217 = vld [vmem:[%s547 + $0x70] sm:$0xff]
      %v1218 = vld [vmem:[%s547 + $0x78] sm:$0xff]
      %v1219 = vadd.f32 %v1072, %v1203
      %v1220 = vadd.f32 %v1075, %v1204
      %v1221 = vadd.f32 %v1080, %v1205
      %v1222 = vadd.f32 %v1083, %v1206
      %v1223 = vadd.f32 %v1088, %v1207
      %v1224 = vadd.f32 %v1091, %v1208
      %v1225 = vadd.f32 %v1096, %v1209
      %v1226 = vadd.f32 %v1099, %v1210
      %v1227 = vadd.f32 %v1173, %v1211
      %v1228 = vadd.f32 %v1176, %v1212
      %v1229 = vadd.f32 %v1181, %v1213
      %v1230 = vadd.f32 %v1184, %v1214
      %v1231 = vadd.f32 %v1189, %v1215
      %v1232 = vadd.f32 %v1192, %v1216
      %v1233 = vadd.f32 %v1197, %v1217
      %v1234 = vadd.f32 %v1200, %v1218
      %vm1235 = vcmask 523264
      %v1236 = vsel %vm1235, %v1219, -inf
      %1237 = vmax.xlane.f32.xlu0 %v1236
      %v1238 = vpop.xlane.xlu0 %1237
      %v1239 = vsel %vm1235, %v1220, -inf
      %1240 = vmax.xlane.f32.xlu0 %v1239
      %v1241 = vpop.xlane.xlu0 %1240
      %v1242 = vsel %vm1235, %v1221, -inf
      %1243 = vmax.xlane.f32.xlu0 %v1242
      %v1244 = vpop.xlane.xlu0 %1243
      %v1245 = vsel %vm1235, %v1222, -inf
      %1246 = vmax.xlane.f32.xlu0 %v1245
      %v1247 = vpop.xlane.xlu0 %1246
      %v1248 = vsel %vm1235, %v1223, -inf
      %1249 = vmax.xlane.f32.xlu0 %v1248
      %v1250 = vpop.xlane.xlu0 %1249
      %v1251 = vsel %vm1235, %v1224, -inf
      %1252 = vmax.xlane.f32.xlu0 %v1251
      %v1253 = vpop.xlane.xlu0 %1252
      %v1254 = vsel %vm1235, %v1225, -inf
      %1255 = vmax.xlane.f32.xlu0 %v1254
      %v1256 = vpop.xlane.xlu0 %1255
      %v1257 = vsel %vm1235, %v1226, -inf
      %1258 = vmax.xlane.f32.xlu0 %v1257
      %v1259 = vpop.xlane.xlu0 %1258
      %v1260 = vsel %vm1235, %v1227, -inf
      %1261 = vmax.xlane.f32.xlu0 %v1260
      %v1262 = vpop.xlane.xlu0 %1261
      %v1263 = vsel %vm1235, %v1228, -inf
      %1264 = vmax.xlane.f32.xlu0 %v1263
      %v1265 = vpop.xlane.xlu0 %1264
      %v1266 = vsel %vm1235, %v1229, -inf
      %1267 = vmax.xlane.f32.xlu0 %v1266
      %v1268 = vpop.xlane.xlu0 %1267
      %v1269 = vsel %vm1235, %v1230, -inf
      %1270 = vmax.xlane.f32.xlu0 %v1269
      %v1271 = vpop.xlane.xlu0 %1270
      %v1272 = vsel %vm1235, %v1231, -inf
      %1273 = vmax.xlane.f32.xlu0 %v1272
      %v1274 = vpop.xlane.xlu0 %1273
      %v1275 = vsel %vm1235, %v1232, -inf
      %1276 = vmax.xlane.f32.xlu0 %v1275
      %v1277 = vpop.xlane.xlu0 %1276
      %v1278 = vsel %vm1235, %v1233, -inf
      %1279 = vmax.xlane.f32.xlu0 %v1278
      %v1280 = vpop.xlane.xlu0 %1279
      %v1281 = vsel %vm1235, %v1234, -inf
      %1282 = vmax.xlane.f32.xlu0 %v1281
      %v1283 = vpop.xlane.xlu0 %1282
      %v1284 = vsub.f32 %v1219, %v1238
      %v1285 = vsub.f32 %v1220, %v1241
      %v1286 = vsub.f32 %v1221, %v1244
      %v1287 = vsub.f32 %v1222, %v1247
      %v1288 = vsub.f32 %v1223, %v1250
      %v1289 = vsub.f32 %v1224, %v1253
      %v1290 = vsub.f32 %v1225, %v1256
      %v1291 = vsub.f32 %v1226, %v1259
      %v1292 = vsub.f32 %v1227, %v1262
      %v1293 = vsub.f32 %v1228, %v1265
      %v1294 = vsub.f32 %v1229, %v1268
      %v1295 = vsub.f32 %v1230, %v1271
      %v1296 = vsub.f32 %v1231, %v1274
      %v1297 = vsub.f32 %v1232, %v1277
      %v1298 = vsub.f32 %v1233, %v1280
      %v1299 = vsub.f32 %v1234, %v1283
      %v1300 = vmul.f32 %v1284, 1.442695
      %v1301 = vpow.pop %v1300
      %v1302 = vmul.f32 %v1285, 1.442695
      %v1303 = vpow.pop %v1302
      %v1304 = vmul.f32 %v1286, 1.442695
      %v1305 = vpow.pop %v1304
      %v1306 = vmul.f32 %v1287, 1.442695
      %v1307 = vpow.pop %v1306
      %v1308 = vmul.f32 %v1288, 1.442695
      %v1309 = vpow.pop %v1308
      %v1310 = vmul.f32 %v1289, 1.442695
      %v1311 = vpow.pop %v1310
      %v1312 = vmul.f32 %v1290, 1.442695
      %v1313 = vpow.pop %v1312
      %v1314 = vmul.f32 %v1291, 1.442695
      %v1315 = vpow.pop %v1314
      %v1316 = vmul.f32 %v1292, 1.442695
      %v1317 = vpow.pop %v1316
      %v1318 = vmul.f32 %v1293, 1.442695
      %v1319 = vpow.pop %v1318
      %v1320 = vmul.f32 %v1294, 1.442695
      %v1321 = vpow.pop %v1320
      %v1322 = vmul.f32 %v1295, 1.442695
      %v1323 = vpow.pop %v1322
      %v1324 = vmul.f32 %v1296, 1.442695
      %v1325 = vpow.pop %v1324
      %v1326 = vmul.f32 %v1297, 1.442695
      %v1327 = vpow.pop %v1326
      %v1328 = vmul.f32 %v1298, 1.442695
      %v1329 = vpow.pop %v1328
      %v1330 = vmul.f32 %v1299, 1.442695
      %v1331 = vpow.pop %v1330
      %v1332 = vsel %vm1235, %v1301, 0.0
      %1333 = vadd.xlane.f32.xlu0 %v1332
      %v1334 = vpop.xlane.xlu0 %1333
      %v1335 = vsel %vm1235, %v1303, 0.0
      %1336 = vadd.xlane.f32.xlu0 %v1335
      %v1337 = vpop.xlane.xlu0 %1336
      %v1338 = vsel %vm1235, %v1305, 0.0
      %1339 = vadd.xlane.f32.xlu0 %v1338
      %v1340 = vpop.xlane.xlu0 %1339
      %v1341 = vsel %vm1235, %v1307, 0.0
      %1342 = vadd.xlane.f32.xlu0 %v1341
      %v1343 = vpop.xlane.xlu0 %1342
      %v1344 = vsel %vm1235, %v1309, 0.0
      %1345 = vadd.xlane.f32.xlu0 %v1344
      %v1346 = vpop.xlane.xlu0 %1345
      %v1347 = vsel %vm1235, %v1311, 0.0
      %1348 = vadd.xlane.f32.xlu0 %v1347
      %v1349 = vpop.xlane.xlu0 %1348
      %v1350 = vsel %vm1235, %v1313, 0.0
      %1351 = vadd.xlane.f32.xlu0 %v1350
      %v1352 = vpop.xlane.xlu0 %1351
      %v1353 = vsel %vm1235, %v1315, 0.0
      %1354 = vadd.xlane.f32.xlu0 %v1353
      %v1355 = vpop.xlane.xlu0 %1354
      %v1356 = vsel %vm1235, %v1317, 0.0
      %1357 = vadd.xlane.f32.xlu0 %v1356
      %v1358 = vpop.xlane.xlu0 %1357
      %v1359 = vsel %vm1235, %v1319, 0.0
      %1360 = vadd.xlane.f32.xlu0 %v1359
      %v1361 = vpop.xlane.xlu0 %1360
      %v1362 = vsel %vm1235, %v1321, 0.0
      %1363 = vadd.xlane.f32.xlu0 %v1362
      %v1364 = vpop.xlane.xlu0 %1363
      %v1365 = vsel %vm1235, %v1323, 0.0
      %1366 = vadd.xlane.f32.xlu0 %v1365
      %v1367 = vpop.xlane.xlu0 %1366
      %v1368 = vsel %vm1235, %v1325, 0.0
      %1369 = vadd.xlane.f32.xlu0 %v1368
      %v1370 = vpop.xlane.xlu0 %1369
      %v1371 = vsel %vm1235, %v1327, 0.0
      %1372 = vadd.xlane.f32.xlu0 %v1371
      %v1373 = vpop.xlane.xlu0 %1372
      %v1374 = vsel %vm1235, %v1329, 0.0
      %1375 = vadd.xlane.f32.xlu0 %v1374
      %v1376 = vpop.xlane.xlu0 %1375
      %v1377 = vsel %vm1235, %v1331, 0.0
      %1378 = vadd.xlane.f32.xlu0 %v1377
      %v1379 = vpop.xlane.xlu0 %1378
      %v1380 = vrcp.pop %v1334
      %v1381 = vrcp.pop %v1337
      %v1382 = vrcp.pop %v1340
      %v1383 = vrcp.pop %v1343
      %v1384 = vrcp.pop %v1346
      %v1385 = vrcp.pop %v1349
      %v1386 = vrcp.pop %v1352
      %v1387 = vrcp.pop %v1355
      %v1388 = vrcp.pop %v1358
      %v1389 = vrcp.pop %v1361
      %v1390 = vrcp.pop %v1364
      %v1391 = vrcp.pop %v1367
      %v1392 = vrcp.pop %v1370
      %v1393 = vrcp.pop %v1373
      %v1394 = vrcp.pop %v1376
      %v1395 = vrcp.pop %v1379
      %v1396 = vmul.f32 %v1301, %v1380
      %v1397 = vmul.f32 %v1303, %v1381
      %v1398 = vmul.f32 %v1305, %v1382
      %v1399 = vmul.f32 %v1307, %v1383
      %v1400 = vmul.f32 %v1309, %v1384
      %v1401 = vmul.f32 %v1311, %v1385
      %v1402 = vmul.f32 %v1313, %v1386
      %v1403 = vmul.f32 %v1315, %v1387
      %v1404 = vmul.f32 %v1317, %v1388
      %v1405 = vmul.f32 %v1319, %v1389
      %v1406 = vmul.f32 %v1321, %v1390
      %v1407 = vmul.f32 %v1323, %v1391
      %v1408 = vmul.f32 %v1325, %v1392
      %v1409 = vmul.f32 %v1327, %v1393
      %v1410 = vmul.f32 %v1329, %v1394
      %v1411 = vmul.f32 %v1331, %v1395
      %v1412 = vpack.c.bf16 %v1397, %v1396
      %v1413 = vpack.c.bf16 %v1399, %v1398
      %v1414 = vpack.c.bf16 %v1401, %v1400
      %v1415 = vpack.c.bf16 %v1403, %v1402
      %v1416 = vpack.c.bf16 %v1405, %v1404
      %v1417 = vpack.c.bf16 %v1407, %v1406
      %v1418 = vpack.c.bf16 %v1409, %v1408
      %v1419 = vpack.c.bf16 %v1411, %v1410
      %1420 = vrot.lane.b32.xlu0 %v984, 64
      %v1421 = vpop.permute.xlu0 %1420
      %1422 = vrot.lane.b32.xlu0 %v985, 64
      %v1423 = vpop.permute.xlu0 %1422
      %1424 = vrot.lane.b32.xlu0 %v986, 64
      %v1425 = vpop.permute.xlu0 %1424
      %1426 = vrot.lane.b32.xlu0 %v987, 64
      %v1427 = vpop.permute.xlu0 %1426
      %v1433 = vsel %vm1235, %v1412, 0
      %v1436 = vsel %vm1235, %v1413, 0
      %v1439 = vsel %vm1235, %v1414, 0
      %v1442 = vsel %vm1235, %v1415, 0
      %1444 = vmatprep.subr.bf16.mxu0 0
      %1445 = vmatpush1.bf16.msra.mxu0 0
      %1446 = vmatprep.subr.bf16.mxu0 0
      %1447 = vmatpush1.bf16.msra.mxu0 0
      %1448 = vmatprep.subr.bf16.mxu0 0
      %1449 = vmatpush1.bf16.msra.mxu0 0
      %1450 = vmatprep.subr.bf16.mxu0 0
      %1451 = vmatpush1.bf16.msra.mxu0 0
      %1452 = vmatprep.subr.bf16.mxu0 0
      %1453 = vmatpush1.bf16.msra.mxu0 %v1427
      %1454 = vmatprep.subr.bf16.mxu0 0
      %1455 = vmatpush1.bf16.msra.mxu0 %v1425
      %1456 = vmatprep.subr.bf16.mxu0 0
      %1457 = vmatpush1.bf16.msra.mxu0 %v1423
      %1458 = vmatprep.subr.bf16.mxu0 0
      %1459 = vmatpush1.bf16.msra.mxu0 %v1421
      %1460 = vmatprep.subr.bf16.mxu0 0
      %1461 = vmatpush2.bf16.msra.mxu0 0
      %1462 = vmatprep.subr.bf16.mxu0 0
      %1463 = vmatpush2.bf16.msra.mxu0 0
      %1464 = vmatprep.subr.bf16.mxu0 0
      %1465 = vmatpush2.bf16.msra.mxu0 0
      %1466 = vmatprep.subr.bf16.mxu0 0
      %1467 = vmatpush2.bf16.msra.mxu0 0
      %1468 = vmatprep.subr.bf16.mxu0 0
      %1469 = vmatpush2.bf16.msra.mxu0 0
      %1470 = vmatprep.subr.bf16.mxu0 0
      %1471 = vmatpush2.bf16.msra.mxu0 0
      %1472 = vmatprep.subr.bf16.mxu0 0
      %1473 = vmatpush2.bf16.msra.mxu0 0
      %1474 = vmatprep.subr.bf16.mxu0 0
      %1475 = vmatpush2.bf16.msra.mxu0 0
      %1476 = vmatprep.mubr.bf16.mxu0 0
      %1477 = vmatmul.mubr.bf16.gmra.mxu0 %v1433
      %v1478 = vpop.f32.mrf.mxu0
      %v1479 = vadd.f32 0.0, %v1478
      %v1480 = vpop.f32.mrf.mxu0
      %v1481 = vpop.f32.mrf.mxu0
      %v1482 = vadd.f32 0.0, %v1481
      %v1483 = vpop.f32.mrf.mxu0
      %1484 = vmatprep.mubr.bf16.mxu0 0
      %1485 = vmatmul.mubr.bf16.gmra.mxu0 %v1436
      %v1486 = vpop.f32.mrf.mxu0
      %v1487 = vadd.f32 0.0, %v1486
      %v1488 = vpop.f32.mrf.mxu0
      %v1489 = vpop.f32.mrf.mxu0
      %v1490 = vadd.f32 0.0, %v1489
      %v1491 = vpop.f32.mrf.mxu0
      %1492 = vmatprep.mubr.bf16.mxu0 0
      %1493 = vmatmul.mubr.bf16.gmra.mxu0 %v1439
      %v1494 = vpop.f32.mrf.mxu0
      %v1495 = vadd.f32 0.0, %v1494
      %v1496 = vpop.f32.mrf.mxu0
      %v1497 = vpop.f32.mrf.mxu0
      %v1498 = vadd.f32 0.0, %v1497
      %v1499 = vpop.f32.mrf.mxu0
      %1500 = vmatprep.mubr.bf16.mxu0 0
      %1501 = vmatmul.mubr.bf16.gmra.mxu0 %v1442
      %v1502 = vpop.f32.mrf.mxu0
      %v1503 = vadd.f32 0.0, %v1502
      %v1504 = vpop.f32.mrf.mxu0
      %v1505 = vpop.f32.mrf.mxu0
      %v1506 = vadd.f32 0.0, %v1505
      %v1507 = vpop.f32.mrf.mxu0
      %1508 = vdwg.mxu0
      %1509 = vrot.lane.b32.xlu0 %v988, 64
      %v1510 = vpop.permute.xlu0 %1509
      %1511 = vrot.lane.b32.xlu0 %v989, 64
      %v1512 = vpop.permute.xlu0 %1511
      %1513 = vrot.lane.b32.xlu0 %v990, 64
      %v1514 = vpop.permute.xlu0 %1513
      %1515 = vrot.lane.b32.xlu0 %v991, 64
      %v1516 = vpop.permute.xlu0 %1515
      %v1522 = vsel %vm1235, %v1416, 0
      %v1525 = vsel %vm1235, %v1417, 0
      %v1528 = vsel %vm1235, %v1418, 0
      %v1531 = vsel %vm1235, %v1419, 0
      %1533 = vmatprep.subr.bf16.mxu0 0
      %1534 = vmatpush1.bf16.msra.mxu0 0
      %1535 = vmatprep.subr.bf16.mxu0 0
      %1536 = vmatpush1.bf16.msra.mxu0 0
      %1537 = vmatprep.subr.bf16.mxu0 0
      %1538 = vmatpush1.bf16.msra.mxu0 0
      %1539 = vmatprep.subr.bf16.mxu0 0
      %1540 = vmatpush1.bf16.msra.mxu0 0
      %1541 = vmatprep.subr.bf16.mxu0 0
      %1542 = vmatpush1.bf16.msra.mxu0 %v1516
      %1543 = vmatprep.subr.bf16.mxu0 0
      %1544 = vmatpush1.bf16.msra.mxu0 %v1514
      %1545 = vmatprep.subr.bf16.mxu0 0
      %1546 = vmatpush1.bf16.msra.mxu0 %v1512
      %1547 = vmatprep.subr.bf16.mxu0 0
      %1548 = vmatpush1.bf16.msra.mxu0 %v1510
      %1549 = vmatprep.subr.bf16.mxu0 0
      %1550 = vmatpush2.bf16.msra.mxu0 0
      %1551 = vmatprep.subr.bf16.mxu0 0
      %1552 = vmatpush2.bf16.msra.mxu0 0
      %1553 = vmatprep.subr.bf16.mxu0 0
      %1554 = vmatpush2.bf16.msra.mxu0 0
      %1555 = vmatprep.subr.bf16.mxu0 0
      %1556 = vmatpush2.bf16.msra.mxu0 0
      %1557 = vmatprep.subr.bf16.mxu0 0
      %1558 = vmatpush2.bf16.msra.mxu0 0
      %1559 = vmatprep.subr.bf16.mxu0 0
      %1560 = vmatpush2.bf16.msra.mxu0 0
      %1561 = vmatprep.subr.bf16.mxu0 0
      %1562 = vmatpush2.bf16.msra.mxu0 0
      %1563 = vmatprep.subr.bf16.mxu0 0
      %1564 = vmatpush2.bf16.msra.mxu0 0
      %1565 = vmatprep.mubr.bf16.mxu0 0
      %1566 = vmatmul.mubr.bf16.gmra.mxu0 %v1522
      %v1567 = vpop.f32.mrf.mxu0
      %v1568 = vadd.f32 0.0, %v1567
      %v1569 = vpop.f32.mrf.mxu0
      %v1570 = vpop.f32.mrf.mxu0
      %v1571 = vadd.f32 0.0, %v1570
      %v1572 = vpop.f32.mrf.mxu0
      %1573 = vmatprep.mubr.bf16.mxu0 0
      %1574 = vmatmul.mubr.bf16.gmra.mxu0 %v1525
      %v1575 = vpop.f32.mrf.mxu0
      %v1576 = vadd.f32 0.0, %v1575
      %v1577 = vpop.f32.mrf.mxu0
      %v1578 = vpop.f32.mrf.mxu0
      %v1579 = vadd.f32 0.0, %v1578
      %v1580 = vpop.f32.mrf.mxu0
      %1581 = vmatprep.mubr.bf16.mxu0 0
      %1582 = vmatmul.mubr.bf16.gmra.mxu0 %v1528
      %v1583 = vpop.f32.mrf.mxu0
      %v1584 = vadd.f32 0.0, %v1583
      %v1585 = vpop.f32.mrf.mxu0
      %v1586 = vpop.f32.mrf.mxu0
      %v1587 = vadd.f32 0.0, %v1586
      %v1588 = vpop.f32.mrf.mxu0
      %1589 = vmatprep.mubr.bf16.mxu0 0
      %1590 = vmatmul.mubr.bf16.gmra.mxu0 %v1531
      %v1591 = vpop.f32.mrf.mxu0
      %v1592 = vadd.f32 0.0, %v1591
      %v1593 = vpop.f32.mrf.mxu0
      %v1594 = vpop.f32.mrf.mxu0
      %v1595 = vadd.f32 0.0, %v1594
      %v1596 = vpop.f32.mrf.mxu0
      %1597 = vdwg.mxu0
      %1598 = vst.msk [vmem:[#allocation2] sm:$0xff] %vm1012, %v1479
      %1599 = vst.msk [vmem:[#allocation2 + $0x8] sm:$0xff] %vm1012, %v1482
      %1600 = vst.msk [vmem:[#allocation2 + $0x10] sm:$0xff] %vm1012, %v1487
      %1601 = vst.msk [vmem:[#allocation2 + $0x18] sm:$0xff] %vm1012, %v1490
      %1602 = vst.msk [vmem:[#allocation2 + $0x20] sm:$0xff] %vm1012, %v1495
      %1603 = vst.msk [vmem:[#allocation2 + $0x28] sm:$0xff] %vm1012, %v1498
      %1604 = vst.msk [vmem:[#allocation2 + $0x30] sm:$0xff] %vm1012, %v1503
      %1605 = vst.msk [vmem:[#allocation2 + $0x38] sm:$0xff] %vm1012, %v1506
      %1606 = vst.msk [vmem:[#allocation2 + $0x40] sm:$0xff] %vm1012, %v1568
      %1607 = vst.msk [vmem:[#allocation2 + $0x48] sm:$0xff] %vm1012, %v1571
      %1608 = vst.msk [vmem:[#allocation2 + $0x50] sm:$0xff] %vm1012, %v1576
      %1609 = vst.msk [vmem:[#allocation2 + $0x58] sm:$0xff] %vm1012, %v1579
      %1610 = vst.msk [vmem:[#allocation2 + $0x60] sm:$0xff] %vm1012, %v1584
      %1611 = vst.msk [vmem:[#allocation2 + $0x68] sm:$0xff] %vm1012, %v1587
      %1612 = vst.msk [vmem:[#allocation2 + $0x70] sm:$0xff] %vm1012, %v1592
      %1613 = vst.msk [vmem:[#allocation2 + $0x78] sm:$0xff] %vm1012, %v1595
      %s1614 = scalar_lea.vmem %s5, 64
      %v1615 = vld [vmem:[%s1614] sm:$0xff]
      %v1616 = vld [vmem:[%s1614 + $0x8] sm:$0xff]
      %v1617 = vld [vmem:[%s1614 + $0x10] sm:$0xff]
      %v1618 = vld [vmem:[%s1614 + $0x18] sm:$0xff]
      %v1619 = vld [vmem:[%s1614 + $0x20] sm:$0xff]
      %v1620 = vld [vmem:[%s1614 + $0x28] sm:$0xff]
      %v1621 = vld [vmem:[%s1614 + $0x30] sm:$0xff]
      %v1622 = vld [vmem:[%s1614 + $0x38] sm:$0xff]
      %1623 = vrot.lane.b32.xlu0 %v984, 120
      %v1624 = vpop.permute.xlu0 %1623
      %1625 = vrot.lane.b32.xlu0 %v985, 120
      %v1626 = vpop.permute.xlu0 %1625
      %1627 = vrot.lane.b32.xlu0 %v986, 120
      %v1628 = vpop.permute.xlu0 %1627
      %1629 = vrot.lane.b32.xlu0 %v987, 120
      %v1630 = vpop.permute.xlu0 %1629
      %1631 = vrot.lane.b32.xlu0 %v984, 88
      %v1632 = vpop.permute.xlu0 %1631
      %1633 = vrot.lane.b32.xlu0 %v985, 88
      %v1634 = vpop.permute.xlu0 %1633
      %1635 = vrot.lane.b32.xlu0 %v986, 88
      %v1636 = vpop.permute.xlu0 %1635
      %1637 = vrot.lane.b32.xlu0 %v987, 88
      %v1638 = vpop.permute.xlu0 %1637
      %v1640 = vsel %vm1012, %v1624, 0
      %v1643 = vsel %vm1012, %v1626, 0
      %v1646 = vsel %vm1012, %v1628, 0
      %v1649 = vsel %vm1012, %v1630, 0
      %v1652 = vsel %vm1012, %v1632, 0
      %v1655 = vsel %vm1012, %v1634, 0
      %v1658 = vsel %vm1012, %v1636, 0
      %v1661 = vsel %vm1012, %v1638, 0
      %1663 = vmatprep.subr.bf16.mxu0 0
      %1664 = vmatpush1.bf16.xpose.msra.mxu0 0
      %1665 = vmatprep.subr.bf16.mxu0 0
      %1666 = vmatpush1.bf16.xpose.msra.mxu0 0
      %1667 = vmatprep.subr.bf16.mxu0 0
      %1668 = vmatpush1.bf16.xpose.msra.mxu0 0
      %1669 = vmatprep.subr.bf16.mxu0 0
      %1670 = vmatpush1.bf16.xpose.msra.mxu0 0
      %1671 = vmatprep.subr.bf16.mxu0 0
      %1672 = vmatpush1.bf16.xpose.msra.mxu0 %v1661
      %1673 = vmatprep.subr.bf16.mxu0 0
      %1674 = vmatpush1.bf16.xpose.msra.mxu0 %v1658
      %1675 = vmatprep.subr.bf16.mxu0 0
      %1676 = vmatpush1.bf16.xpose.msra.mxu0 %v1655
      %1677 = vmatprep.subr.bf16.mxu0 0
      %1678 = vmatpush1.bf16.xpose.msra.mxu0 %v1652
      %1679 = vmatprep.subr.bf16.mxu0 0
      %1680 = vmatpush2.bf16.xpose.msra.mxu0 0
      %1681 = vmatprep.subr.bf16.mxu0 0
      %1682 = vmatpush2.bf16.xpose.msra.mxu0 0
      %1683 = vmatprep.subr.bf16.mxu0 0
      %1684 = vmatpush2.bf16.xpose.msra.mxu0 0
      %1685 = vmatprep.subr.bf16.mxu0 0
      %1686 = vmatpush2.bf16.xpose.msra.mxu0 0
      %1687 = vmatprep.subr.bf16.mxu0 0
      %1688 = vmatpush2.bf16.xpose.msra.mxu0 0
      %1689 = vmatprep.subr.bf16.mxu0 0
      %1690 = vmatpush2.bf16.xpose.msra.mxu0 0
      %1691 = vmatprep.subr.bf16.mxu0 0
      %1692 = vmatpush2.bf16.xpose.msra.mxu0 0
      %1693 = vmatprep.subr.bf16.mxu0 0
      %1694 = vmatpush2.bf16.xpose.msra.mxu0 0
      %1695 = vmatprep.mubr.bf16.mxu0 0
      %1696 = vmatmul.mubr.bf16.gmra.mxu0 %v1640
      %v1697 = vpop.f32.mrf.mxu0
      %v1698 = vadd.f32 %v1615, %v1697
      %v1699 = vpop.f32.mrf.mxu0
      %v1700 = vpop.f32.mrf.mxu0
      %v1701 = vadd.f32 %v1616, %v1700
      %v1702 = vpop.f32.mrf.mxu0
      %1703 = vmatprep.mubr.bf16.mxu0 0
      %1704 = vmatmul.mubr.bf16.gmra.mxu0 %v1643
      %v1705 = vpop.f32.mrf.mxu0
      %v1706 = vadd.f32 %v1617, %v1705
      %v1707 = vpop.f32.mrf.mxu0
      %v1708 = vpop.f32.mrf.mxu0
      %v1709 = vadd.f32 %v1618, %v1708
      %v1710 = vpop.f32.mrf.mxu0
      %1711 = vmatprep.mubr.bf16.mxu0 0
      %1712 = vmatmul.mubr.bf16.gmra.mxu0 %v1646
      %v1713 = vpop.f32.mrf.mxu0
      %v1714 = vadd.f32 %v1619, %v1713
      %v1715 = vpop.f32.mrf.mxu0
      %v1716 = vpop.f32.mrf.mxu0
      %v1717 = vadd.f32 %v1620, %v1716
      %v1718 = vpop.f32.mrf.mxu0
      %1719 = vmatprep.mubr.bf16.mxu0 0
      %1720 = vmatmul.mubr.bf16.gmra.mxu0 %v1649
      %v1721 = vpop.f32.mrf.mxu0
      %v1722 = vadd.f32 %v1621, %v1721
      %v1723 = vpop.f32.mrf.mxu0
      %v1724 = vpop.f32.mrf.mxu0
      %v1725 = vadd.f32 %v1622, %v1724
      %v1726 = vpop.f32.mrf.mxu0
      %1727 = vdwg.mxu0
      %1728 = vrot.lane.b32.xlu0 %v988, 120
      %v1729 = vpop.permute.xlu0 %1728
      %1730 = vrot.lane.b32.xlu0 %v989, 120
      %v1731 = vpop.permute.xlu0 %1730
      %1732 = vrot.lane.b32.xlu0 %v990, 120
      %v1733 = vpop.permute.xlu0 %1732
      %1734 = vrot.lane.b32.xlu0 %v991, 120
      %v1735 = vpop.permute.xlu0 %1734
      %1736 = vrot.lane.b32.xlu0 %v988, 88
      %v1737 = vpop.permute.xlu0 %1736
      %1738 = vrot.lane.b32.xlu0 %v989, 88
      %v1739 = vpop.permute.xlu0 %1738
      %1740 = vrot.lane.b32.xlu0 %v990, 88
      %v1741 = vpop.permute.xlu0 %1740
      %1742 = vrot.lane.b32.xlu0 %v991, 88
      %v1743 = vpop.permute.xlu0 %1742
      %v1745 = vsel %vm1012, %v1729, 0
      %v1748 = vsel %vm1012, %v1731, 0
      %v1751 = vsel %vm1012, %v1733, 0
      %v1754 = vsel %vm1012, %v1735, 0
      %v1757 = vsel %vm1012, %v1737, 0
      %v1760 = vsel %vm1012, %v1739, 0
      %v1763 = vsel %vm1012, %v1741, 0
      %v1766 = vsel %vm1012, %v1743, 0
      %1768 = vmatprep.subr.bf16.mxu0 0
      %1769 = vmatpush1.bf16.xpose.msra.mxu0 0
      %1770 = vmatprep.subr.bf16.mxu0 0
      %1771 = vmatpush1.bf16.xpose.msra.mxu0 0
      %1772 = vmatprep.subr.bf16.mxu0 0
      %1773 = vmatpush1.bf16.xpose.msra.mxu0 0
      %1774 = vmatprep.subr.bf16.mxu0 0
      %1775 = vmatpush1.bf16.xpose.msra.mxu0 0
      %1776 = vmatprep.subr.bf16.mxu0 0
      %1777 = vmatpush1.bf16.xpose.msra.mxu0 %v1766
      %1778 = vmatprep.subr.bf16.mxu0 0
      %1779 = vmatpush1.bf16.xpose.msra.mxu0 %v1763
      %1780 = vmatprep.subr.bf16.mxu0 0
      %1781 = vmatpush1.bf16.xpose.msra.mxu0 %v1760
      %1782 = vmatprep.subr.bf16.mxu0 0
      %1783 = vmatpush1.bf16.xpose.msra.mxu0 %v1757
      %1784 = vmatprep.subr.bf16.mxu0 0
      %1785 = vmatpush2.bf16.xpose.msra.mxu0 0
      %1786 = vmatprep.subr.bf16.mxu0 0
      %1787 = vmatpush2.bf16.xpose.msra.mxu0 0
      %1788 = vmatprep.subr.bf16.mxu0 0
      %1789 = vmatpush2.bf16.xpose.msra.mxu0 0
      %1790 = vmatprep.subr.bf16.mxu0 0
      %1791 = vmatpush2.bf16.xpose.msra.mxu0 0
      %1792 = vmatprep.subr.bf16.mxu0 0
      %1793 = vmatpush2.bf16.xpose.msra.mxu0 0
      %1794 = vmatprep.subr.bf16.mxu0 0
      %1795 = vmatpush2.bf16.xpose.msra.mxu0 0
      %1796 = vmatprep.subr.bf16.mxu0 0
      %1797 = vmatpush2.bf16.xpose.msra.mxu0 0
      %1798 = vmatprep.subr.bf16.mxu0 0
      %1799 = vmatpush2.bf16.xpose.msra.mxu0 0
      %1800 = vmatprep.mubr.bf16.mxu0 0
      %1801 = vmatmul.mubr.bf16.gmra.mxu0 %v1745
      %v1802 = vpop.f32.mrf.mxu0
      %v1803 = vadd.f32 %v1615, %v1802
      %v1804 = vpop.f32.mrf.mxu0
      %v1805 = vpop.f32.mrf.mxu0
      %v1806 = vadd.f32 %v1616, %v1805
      %v1807 = vpop.f32.mrf.mxu0
      %1808 = vmatprep.mubr.bf16.mxu0 0
      %1809 = vmatmul.mubr.bf16.gmra.mxu0 %v1748
      %v1810 = vpop.f32.mrf.mxu0
      %v1811 = vadd.f32 %v1617, %v1810
      %v1812 = vpop.f32.mrf.mxu0
      %v1813 = vpop.f32.mrf.mxu0
      %v1814 = vadd.f32 %v1618, %v1813
      %v1815 = vpop.f32.mrf.mxu0
      %1816 = vmatprep.mubr.bf16.mxu0 0
      %1817 = vmatmul.mubr.bf16.gmra.mxu0 %v1751
      %v1818 = vpop.f32.mrf.mxu0
      %v1819 = vadd.f32 %v1619, %v1818
      %v1820 = vpop.f32.mrf.mxu0
      %v1821 = vpop.f32.mrf.mxu0
      %v1822 = vadd.f32 %v1620, %v1821
      %v1823 = vpop.f32.mrf.mxu0
      %1824 = vmatprep.mubr.bf16.mxu0 0
      %1825 = vmatmul.mubr.bf16.gmra.mxu0 %v1754
      %v1826 = vpop.f32.mrf.mxu0
      %v1827 = vadd.f32 %v1621, %v1826
      %v1828 = vpop.f32.mrf.mxu0
      %v1829 = vpop.f32.mrf.mxu0
      %v1830 = vadd.f32 %v1622, %v1829
      %v1831 = vpop.f32.mrf.mxu0
      %1832 = vdwg.mxu0
      %v1833 = vld [vmem:[%s547] sm:$0xff]
      %v1834 = vld [vmem:[%s547 + $0x8] sm:$0xff]
      %v1835 = vld [vmem:[%s547 + $0x10] sm:$0xff]
      %v1836 = vld [vmem:[%s547 + $0x18] sm:$0xff]
      %v1837 = vld [vmem:[%s547 + $0x20] sm:$0xff]
      %v1838 = vld [vmem:[%s547 + $0x28] sm:$0xff]
      %v1839 = vld [vmem:[%s547 + $0x30] sm:$0xff]
      %v1840 = vld [vmem:[%s547 + $0x38] sm:$0xff]
      %v1841 = vld [vmem:[%s547 + $0x40] sm:$0xff]
      %v1842 = vld [vmem:[%s547 + $0x48] sm:$0xff]
      %v1843 = vld [vmem:[%s547 + $0x50] sm:$0xff]
      %v1844 = vld [vmem:[%s547 + $0x58] sm:$0xff]
      %v1845 = vld [vmem:[%s547 + $0x60] sm:$0xff]
      %v1846 = vld [vmem:[%s547 + $0x68] sm:$0xff]
      %v1847 = vld [vmem:[%s547 + $0x70] sm:$0xff]
      %v1848 = vld [vmem:[%s547 + $0x78] sm:$0xff]
      %v1849 = vadd.f32 %v1698, %v1833
      %v1850 = vadd.f32 %v1701, %v1834
      %v1851 = vadd.f32 %v1706, %v1835
      %v1852 = vadd.f32 %v1709, %v1836
      %v1853 = vadd.f32 %v1714, %v1837
      %v1854 = vadd.f32 %v1717, %v1838
      %v1855 = vadd.f32 %v1722, %v1839
      %v1856 = vadd.f32 %v1725, %v1840
      %v1857 = vadd.f32 %v1803, %v1841
      %v1858 = vadd.f32 %v1806, %v1842
      %v1859 = vadd.f32 %v1811, %v1843
      %v1860 = vadd.f32 %v1814, %v1844
      %v1861 = vadd.f32 %v1819, %v1845
      %v1862 = vadd.f32 %v1822, %v1846
      %v1863 = vadd.f32 %v1827, %v1847
      %v1864 = vadd.f32 %v1830, %v1848
      %v1865 = vsel %vm1235, %v1849, -inf
      %1866 = vmax.xlane.f32.xlu0 %v1865
      %v1867 = vpop.xlane.xlu0 %1866
      %v1868 = vsel %vm1235, %v1850, -inf
      %1869 = vmax.xlane.f32.xlu0 %v1868
      %v1870 = vpop.xlane.xlu0 %1869
      %v1871 = vsel %vm1235, %v1851, -inf
      %1872 = vmax.xlane.f32.xlu0 %v1871
      %v1873 = vpop.xlane.xlu0 %1872
      %v1874 = vsel %vm1235, %v1852, -inf
      %1875 = vmax.xlane.f32.xlu0 %v1874
      %v1876 = vpop.xlane.xlu0 %1875
      %v1877 = vsel %vm1235, %v1853, -inf
      %1878 = vmax.xlane.f32.xlu0 %v1877
      %v1879 = vpop.xlane.xlu0 %1878
      %v1880 = vsel %vm1235, %v1854, -inf
      %1881 = vmax.xlane.f32.xlu0 %v1880
      %v1882 = vpop.xlane.xlu0 %1881
      %v1883 = vsel %vm1235, %v1855, -inf
      %1884 = vmax.xlane.f32.xlu0 %v1883
      %v1885 = vpop.xlane.xlu0 %1884
      %v1886 = vsel %vm1235, %v1856, -inf
      %1887 = vmax.xlane.f32.xlu0 %v1886
      %v1888 = vpop.xlane.xlu0 %1887
      %v1889 = vsel %vm1235, %v1857, -inf
      %1890 = vmax.xlane.f32.xlu0 %v1889
      %v1891 = vpop.xlane.xlu0 %1890
      %v1892 = vsel %vm1235, %v1858, -inf
      %1893 = vmax.xlane.f32.xlu0 %v1892
      %v1894 = vpop.xlane.xlu0 %1893
      %v1895 = vsel %vm1235, %v1859, -inf
      %1896 = vmax.xlane.f32.xlu0 %v1895
      %v1897 = vpop.xlane.xlu0 %1896
      %v1898 = vsel %vm1235, %v1860, -inf
      %1899 = vmax.xlane.f32.xlu0 %v1898
      %v1900 = vpop.xlane.xlu0 %1899
      %v1901 = vsel %vm1235, %v1861, -inf
      %1902 = vmax.xlane.f32.xlu0 %v1901
      %v1903 = vpop.xlane.xlu0 %1902
      %v1904 = vsel %vm1235, %v1862, -inf
      %1905 = vmax.xlane.f32.xlu0 %v1904
      %v1906 = vpop.xlane.xlu0 %1905
      %v1907 = vsel %vm1235, %v1863, -inf
      %1908 = vmax.xlane.f32.xlu0 %v1907
      %v1909 = vpop.xlane.xlu0 %1908
      %v1910 = vsel %vm1235, %v1864, -inf
      %1911 = vmax.xlane.f32.xlu0 %v1910
      %v1912 = vpop.xlane.xlu0 %1911
      %v1913 = vsub.f32 %v1849, %v1867
      %v1914 = vsub.f32 %v1850, %v1870
      %v1915 = vsub.f32 %v1851, %v1873
      %v1916 = vsub.f32 %v1852, %v1876
      %v1917 = vsub.f32 %v1853, %v1879
      %v1918 = vsub.f32 %v1854, %v1882
      %v1919 = vsub.f32 %v1855, %v1885
      %v1920 = vsub.f32 %v1856, %v1888
      %v1921 = vsub.f32 %v1857, %v1891
      %v1922 = vsub.f32 %v1858, %v1894
      %v1923 = vsub.f32 %v1859, %v1897
      %v1924 = vsub.f32 %v1860, %v1900
      %v1925 = vsub.f32 %v1861, %v1903
      %v1926 = vsub.f32 %v1862, %v1906
      %v1927 = vsub.f32 %v1863, %v1909
      %v1928 = vsub.f32 %v1864, %v1912
      %v1929 = vmul.f32 %v1913, 1.442695
      %v1930 = vpow.pop %v1929
      %v1931 = vmul.f32 %v1914, 1.442695
      %v1932 = vpow.pop %v1931
      %v1933 = vmul.f32 %v1915, 1.442695
      %v1934 = vpow.pop %v1933
      %v1935 = vmul.f32 %v1916, 1.442695
      %v1936 = vpow.pop %v1935
      %v1937 = vmul.f32 %v1917, 1.442695
      %v1938 = vpow.pop %v1937
      %v1939 = vmul.f32 %v1918, 1.442695
      %v1940 = vpow.pop %v1939
      %v1941 = vmul.f32 %v1919, 1.442695
      %v1942 = vpow.pop %v1941
      %v1943 = vmul.f32 %v1920, 1.442695
      %v1944 = vpow.pop %v1943
      %v1945 = vmul.f32 %v1921, 1.442695
      %v1946 = vpow.pop %v1945
      %v1947 = vmul.f32 %v1922, 1.442695
      %v1948 = vpow.pop %v1947
      %v1949 = vmul.f32 %v1923, 1.442695
      %v1950 = vpow.pop %v1949
      %v1951 = vmul.f32 %v1924, 1.442695
      %v1952 = vpow.pop %v1951
      %v1953 = vmul.f32 %v1925, 1.442695
      %v1954 = vpow.pop %v1953
      %v1955 = vmul.f32 %v1926, 1.442695
      %v1956 = vpow.pop %v1955
      %v1957 = vmul.f32 %v1927, 1.442695
      %v1958 = vpow.pop %v1957
      %v1959 = vmul.f32 %v1928, 1.442695
      %v1960 = vpow.pop %v1959
      %v1961 = vsel %vm1235, %v1930, 0.0
      %1962 = vadd.xlane.f32.xlu0 %v1961
      %v1963 = vpop.xlane.xlu0 %1962
      %v1964 = vsel %vm1235, %v1932, 0.0
      %1965 = vadd.xlane.f32.xlu0 %v1964
      %v1966 = vpop.xlane.xlu0 %1965
      %v1967 = vsel %vm1235, %v1934, 0.0
      %1968 = vadd.xlane.f32.xlu0 %v1967
      %v1969 = vpop.xlane.xlu0 %1968
      %v1970 = vsel %vm1235, %v1936, 0.0
      %1971 = vadd.xlane.f32.xlu0 %v1970
      %v1972 = vpop.xlane.xlu0 %1971
      %v1973 = vsel %vm1235, %v1938, 0.0
      %1974 = vadd.xlane.f32.xlu0 %v1973
      %v1975 = vpop.xlane.xlu0 %1974
      %v1976 = vsel %vm1235, %v1940, 0.0
      %1977 = vadd.xlane.f32.xlu0 %v1976
      %v1978 = vpop.xlane.xlu0 %1977
      %v1979 = vsel %vm1235, %v1942, 0.0
      %1980 = vadd.xlane.f32.xlu0 %v1979
      %v1981 = vpop.xlane.xlu0 %1980
      %v1982 = vsel %vm1235, %v1944, 0.0
      %1983 = vadd.xlane.f32.xlu0 %v1982
      %v1984 = vpop.xlane.xlu0 %1983
      %v1985 = vsel %vm1235, %v1946, 0.0
      %1986 = vadd.xlane.f32.xlu0 %v1985
      %v1987 = vpop.xlane.xlu0 %1986
      %v1988 = vsel %vm1235, %v1948, 0.0
      %1989 = vadd.xlane.f32.xlu0 %v1988
      %v1990 = vpop.xlane.xlu0 %1989
      %v1991 = vsel %vm1235, %v1950, 0.0
      %1992 = vadd.xlane.f32.xlu0 %v1991
      %v1993 = vpop.xlane.xlu0 %1992
      %v1994 = vsel %vm1235, %v1952, 0.0
      %1995 = vadd.xlane.f32.xlu0 %v1994
      %v1996 = vpop.xlane.xlu0 %1995
      %v1997 = vsel %vm1235, %v1954, 0.0
      %1998 = vadd.xlane.f32.xlu0 %v1997
      %v1999 = vpop.xlane.xlu0 %1998
      %v2000 = vsel %vm1235, %v1956, 0.0
      %2001 = vadd.xlane.f32.xlu0 %v2000
      %v2002 = vpop.xlane.xlu0 %2001
      %v2003 = vsel %vm1235, %v1958, 0.0
      %2004 = vadd.xlane.f32.xlu0 %v2003
      %v2005 = vpop.xlane.xlu0 %2004
      %v2006 = vsel %vm1235, %v1960, 0.0
      %2007 = vadd.xlane.f32.xlu0 %v2006
      %v2008 = vpop.xlane.xlu0 %2007
      %v2009 = vrcp.pop %v1963
      %v2010 = vrcp.pop %v1966
      %v2011 = vrcp.pop %v1969
      %v2012 = vrcp.pop %v1972
      %v2013 = vrcp.pop %v1975
      %v2014 = vrcp.pop %v1978
      %v2015 = vrcp.pop %v1981
      %v2016 = vrcp.pop %v1984
      %v2017 = vrcp.pop %v1987
      %v2018 = vrcp.pop %v1990
      %v2019 = vrcp.pop %v1993
      %v2020 = vrcp.pop %v1996
      %v2021 = vrcp.pop %v1999
      %v2022 = vrcp.pop %v2002
      %v2023 = vrcp.pop %v2005
      %v2024 = vrcp.pop %v2008
      %v2025 = vmul.f32 %v1930, %v2009
      %v2026 = vmul.f32 %v1932, %v2010
      %v2027 = vmul.f32 %v1934, %v2011
      %v2028 = vmul.f32 %v1936, %v2012
      %v2029 = vmul.f32 %v1938, %v2013
      %v2030 = vmul.f32 %v1940, %v2014
      %v2031 = vmul.f32 %v1942, %v2015
      %v2032 = vmul.f32 %v1944, %v2016
      %v2033 = vmul.f32 %v1946, %v2017
      %v2034 = vmul.f32 %v1948, %v2018
      %v2035 = vmul.f32 %v1950, %v2019
      %v2036 = vmul.f32 %v1952, %v2020
      %v2037 = vmul.f32 %v1954, %v2021
      %v2038 = vmul.f32 %v1956, %v2022
      %v2039 = vmul.f32 %v1958, %v2023
      %v2040 = vmul.f32 %v1960, %v2024
      %v2041 = vpack.c.bf16 %v2026, %v2025
      %v2042 = vpack.c.bf16 %v2028, %v2027
      %v2043 = vpack.c.bf16 %v2030, %v2029
      %v2044 = vpack.c.bf16 %v2032, %v2031
      %v2045 = vpack.c.bf16 %v2034, %v2033
      %v2046 = vpack.c.bf16 %v2036, %v2035
      %v2047 = vpack.c.bf16 %v2038, %v2037
      %v2048 = vpack.c.bf16 %v2040, %v2039
      %2049 = vrot.lane.b32.xlu0 %v984, 56
      %v2050 = vpop.permute.xlu0 %2049
      %2051 = vrot.lane.b32.xlu0 %v985, 56
      %v2052 = vpop.permute.xlu0 %2051
      %2053 = vrot.lane.b32.xlu0 %v986, 56
      %v2054 = vpop.permute.xlu0 %2053
      %2055 = vrot.lane.b32.xlu0 %v987, 56
      %v2056 = vpop.permute.xlu0 %2055
      %v2062 = vsel %vm1235, %v2041, 0
      %v2065 = vsel %vm1235, %v2042, 0
      %v2068 = vsel %vm1235, %v2043, 0
      %v2071 = vsel %vm1235, %v2044, 0
      %2073 = vmatprep.subr.bf16.mxu0 0
      %2074 = vmatpush1.bf16.msra.mxu0 0
      %2075 = vmatprep.subr.bf16.mxu0 0
      %2076 = vmatpush1.bf16.msra.mxu0 0
      %2077 = vmatprep.subr.bf16.mxu0 0
      %2078 = vmatpush1.bf16.msra.mxu0 0
      %2079 = vmatprep.subr.bf16.mxu0 0
      %2080 = vmatpush1.bf16.msra.mxu0 0
      %2081 = vmatprep.subr.bf16.mxu0 0
      %2082 = vmatpush1.bf16.msra.mxu0 %v2056
      %2083 = vmatprep.subr.bf16.mxu0 0
      %2084 = vmatpush1.bf16.msra.mxu0 %v2054
      %2085 = vmatprep.subr.bf16.mxu0 0
      %2086 = vmatpush1.bf16.msra.mxu0 %v2052
      %2087 = vmatprep.subr.bf16.mxu0 0
      %2088 = vmatpush1.bf16.msra.mxu0 %v2050
      %2089 = vmatprep.subr.bf16.mxu0 0
      %2090 = vmatpush2.bf16.msra.mxu0 0
      %2091 = vmatprep.subr.bf16.mxu0 0
      %2092 = vmatpush2.bf16.msra.mxu0 0
      %2093 = vmatprep.subr.bf16.mxu0 0
      %2094 = vmatpush2.bf16.msra.mxu0 0
      %2095 = vmatprep.subr.bf16.mxu0 0
      %2096 = vmatpush2.bf16.msra.mxu0 0
      %2097 = vmatprep.subr.bf16.mxu0 0
      %2098 = vmatpush2.bf16.msra.mxu0 0
      %2099 = vmatprep.subr.bf16.mxu0 0
      %2100 = vmatpush2.bf16.msra.mxu0 0
      %2101 = vmatprep.subr.bf16.mxu0 0
      %2102 = vmatpush2.bf16.msra.mxu0 0
      %2103 = vmatprep.subr.bf16.mxu0 0
      %2104 = vmatpush2.bf16.msra.mxu0 0
      %2105 = vmatprep.mubr.bf16.mxu0 0
      %2106 = vmatmul.mubr.bf16.gmra.mxu0 %v2062
      %v2107 = vpop.f32.mrf.mxu0
      %v2108 = vadd.f32 0.0, %v2107
      %v2109 = vpop.f32.mrf.mxu0
      %v2110 = vpop.f32.mrf.mxu0
      %v2111 = vadd.f32 0.0, %v2110
      %v2112 = vpop.f32.mrf.mxu0
      %2113 = vmatprep.mubr.bf16.mxu0 0
      %2114 = vmatmul.mubr.bf16.gmra.mxu0 %v2065
      %v2115 = vpop.f32.mrf.mxu0
      %v2116 = vadd.f32 0.0, %v2115
      %v2117 = vpop.f32.mrf.mxu0
      %v2118 = vpop.f32.mrf.mxu0
      %v2119 = vadd.f32 0.0, %v2118
      %v2120 = vpop.f32.mrf.mxu0
      %2121 = vmatprep.mubr.bf16.mxu0 0
      %2122 = vmatmul.mubr.bf16.gmra.mxu0 %v2068
      %v2123 = vpop.f32.mrf.mxu0
      %v2124 = vadd.f32 0.0, %v2123
      %v2125 = vpop.f32.mrf.mxu0
      %v2126 = vpop.f32.mrf.mxu0
      %v2127 = vadd.f32 0.0, %v2126
      %v2128 = vpop.f32.mrf.mxu0
      %2129 = vmatprep.mubr.bf16.mxu0 0
      %2130 = vmatmul.mubr.bf16.gmra.mxu0 %v2071
      %v2131 = vpop.f32.mrf.mxu0
      %v2132 = vadd.f32 0.0, %v2131
      %v2133 = vpop.f32.mrf.mxu0
      %v2134 = vpop.f32.mrf.mxu0
      %v2135 = vadd.f32 0.0, %v2134
      %v2136 = vpop.f32.mrf.mxu0
      %2137 = vdwg.mxu0
      %2138 = vrot.lane.b32.xlu0 %v988, 56
      %v2139 = vpop.permute.xlu0 %2138
      %2140 = vrot.lane.b32.xlu0 %v989, 56
      %v2141 = vpop.permute.xlu0 %2140
      %2142 = vrot.lane.b32.xlu0 %v990, 56
      %v2143 = vpop.permute.xlu0 %2142
      %2144 = vrot.lane.b32.xlu0 %v991, 56
      %v2145 = vpop.permute.xlu0 %2144
      %v2151 = vsel %vm1235, %v2045, 0
      %v2154 = vsel %vm1235, %v2046, 0
      %v2157 = vsel %vm1235, %v2047, 0
      %v2160 = vsel %vm1235, %v2048, 0
      %2162 = vmatprep.subr.bf16.mxu0 0
      %2163 = vmatpush1.bf16.msra.mxu0 0
      %2164 = vmatprep.subr.bf16.mxu0 0
      %2165 = vmatpush1.bf16.msra.mxu0 0
      %2166 = vmatprep.subr.bf16.mxu0 0
      %2167 = vmatpush1.bf16.msra.mxu0 0
      %2168 = vmatprep.subr.bf16.mxu0 0
      %2169 = vmatpush1.bf16.msra.mxu0 0
      %2170 = vmatprep.subr.bf16.mxu0 0
      %2171 = vmatpush1.bf16.msra.mxu0 %v2145
      %2172 = vmatprep.subr.bf16.mxu0 0
      %2173 = vmatpush1.bf16.msra.mxu0 %v2143
      %2174 = vmatprep.subr.bf16.mxu0 0
      %2175 = vmatpush1.bf16.msra.mxu0 %v2141
      %2176 = vmatprep.subr.bf16.mxu0 0
      %2177 = vmatpush1.bf16.msra.mxu0 %v2139
      %2178 = vmatprep.subr.bf16.mxu0 0
      %2179 = vmatpush2.bf16.msra.mxu0 0
      %2180 = vmatprep.subr.bf16.mxu0 0
      %2181 = vmatpush2.bf16.msra.mxu0 0
      %2182 = vmatprep.subr.bf16.mxu0 0
      %2183 = vmatpush2.bf16.msra.mxu0 0
      %2184 = vmatprep.subr.bf16.mxu0 0
      %2185 = vmatpush2.bf16.msra.mxu0 0
      %2186 = vmatprep.subr.bf16.mxu0 0
      %2187 = vmatpush2.bf16.msra.mxu0 0
      %2188 = vmatprep.subr.bf16.mxu0 0
      %2189 = vmatpush2.bf16.msra.mxu0 0
      %2190 = vmatprep.subr.bf16.mxu0 0
      %2191 = vmatpush2.bf16.msra.mxu0 0
      %2192 = vmatprep.subr.bf16.mxu0 0
      %2193 = vmatpush2.bf16.msra.mxu0 0
      %2194 = vmatprep.mubr.bf16.mxu0 0
      %2195 = vmatmul.mubr.bf16.gmra.mxu0 %v2151
      %v2196 = vpop.f32.mrf.mxu0
      %v2197 = vadd.f32 0.0, %v2196
      %v2198 = vpop.f32.mrf.mxu0
      %v2199 = vpop.f32.mrf.mxu0
      %v2200 = vadd.f32 0.0, %v2199
      %v2201 = vpop.f32.mrf.mxu0
      %2202 = vmatprep.mubr.bf16.mxu0 0
      %2203 = vmatmul.mubr.bf16.gmra.mxu0 %v2154
      %v2204 = vpop.f32.mrf.mxu0
      %v2205 = vadd.f32 0.0, %v2204
      %v2206 = vpop.f32.mrf.mxu0
      %v2207 = vpop.f32.mrf.mxu0
      %v2208 = vadd.f32 0.0, %v2207
      %v2209 = vpop.f32.mrf.mxu0
      %2210 = vmatprep.mubr.bf16.mxu0 0
      %2211 = vmatmul.mubr.bf16.gmra.mxu0 %v2157
      %v2212 = vpop.f32.mrf.mxu0
      %v2213 = vadd.f32 0.0, %v2212
      %v2214 = vpop.f32.mrf.mxu0
      %v2215 = vpop.f32.mrf.mxu0
      %v2216 = vadd.f32 0.0, %v2215
      %v2217 = vpop.f32.mrf.mxu0
      %2218 = vmatprep.mubr.bf16.mxu0 0
      %2219 = vmatmul.mubr.bf16.gmra.mxu0 %v2160
      %v2220 = vpop.f32.mrf.mxu0
      %v2221 = vadd.f32 0.0, %v2220
      %v2222 = vpop.f32.mrf.mxu0
      %v2223 = vpop.f32.mrf.mxu0
      %v2224 = vadd.f32 0.0, %v2223
      %v2225 = vpop.f32.mrf.mxu0
      %2226 = vdwg.mxu0
      %2243 = vrot.lane.b32.xlu0 %v2108, 8
      %v2244 = vpop.permute.xlu0 %2243
      %2245 = vrot.lane.b32.xlu0 %v2111, 8
      %v2246 = vpop.permute.xlu0 %2245
      %2247 = vrot.lane.b32.xlu0 %v2116, 8
      %v2248 = vpop.permute.xlu0 %2247
      %2249 = vrot.lane.b32.xlu0 %v2119, 8
      %v2250 = vpop.permute.xlu0 %2249
      %2251 = vrot.lane.b32.xlu0 %v2124, 8
      %v2252 = vpop.permute.xlu0 %2251
      %2253 = vrot.lane.b32.xlu0 %v2127, 8
      %v2254 = vpop.permute.xlu0 %2253
      %2255 = vrot.lane.b32.xlu0 %v2132, 8
      %v2256 = vpop.permute.xlu0 %2255
      %2257 = vrot.lane.b32.xlu0 %v2135, 8
      %v2258 = vpop.permute.xlu0 %2257
      %2259 = vrot.lane.b32.xlu0 %v2197, 8
      %v2260 = vpop.permute.xlu0 %2259
      %2261 = vrot.lane.b32.xlu0 %v2200, 8
      %v2262 = vpop.permute.xlu0 %2261
      %2263 = vrot.lane.b32.xlu0 %v2205, 8
      %v2264 = vpop.permute.xlu0 %2263
      %2265 = vrot.lane.b32.xlu0 %v2208, 8
      %v2266 = vpop.permute.xlu0 %2265
      %2267 = vrot.lane.b32.xlu0 %v2213, 8
      %v2268 = vpop.permute.xlu0 %2267
      %2269 = vrot.lane.b32.xlu0 %v2216, 8
      %v2270 = vpop.permute.xlu0 %2269
      %2271 = vrot.lane.b32.xlu0 %v2221, 8
      %v2272 = vpop.permute.xlu0 %2271
      %2273 = vrot.lane.b32.xlu0 %v2224, 8
      %v2274 = vpop.permute.xlu0 %2273
      %vm2291 = vcmask 130112
      %2292 = vst.msk [vmem:[#allocation2] sm:$0xff] %vm2291, %v2244
      %2293 = vst.msk [vmem:[#allocation2 + $0x8] sm:$0xff] %vm2291, %v2246
      %2294 = vst.msk [vmem:[#allocation2 + $0x10] sm:$0xff] %vm2291, %v2248
      %2295 = vst.msk [vmem:[#allocation2 + $0x18] sm:$0xff] %vm2291, %v2250
      %2296 = vst.msk [vmem:[#allocation2 + $0x20] sm:$0xff] %vm2291, %v2252
      %2297 = vst.msk [vmem:[#allocation2 + $0x28] sm:$0xff] %vm2291, %v2254
      %2298 = vst.msk [vmem:[#allocation2 + $0x30] sm:$0xff] %vm2291, %v2256
      %2299 = vst.msk [vmem:[#allocation2 + $0x38] sm:$0xff] %vm2291, %v2258
      %2300 = vst.msk [vmem:[#allocation2 + $0x40] sm:$0xff] %vm2291, %v2260
      %2301 = vst.msk [vmem:[#allocation2 + $0x48] sm:$0xff] %vm2291, %v2262
      %2302 = vst.msk [vmem:[#allocation2 + $0x50] sm:$0xff] %vm2291, %v2264
      %2303 = vst.msk [vmem:[#allocation2 + $0x58] sm:$0xff] %vm2291, %v2266
      %2304 = vst.msk [vmem:[#allocation2 + $0x60] sm:$0xff] %vm2291, %v2268
      %2305 = vst.msk [vmem:[#allocation2 + $0x68] sm:$0xff] %vm2291, %v2270
      %2306 = vst.msk [vmem:[#allocation2 + $0x70] sm:$0xff] %vm2291, %v2272
      %2307 = vst.msk [vmem:[#allocation2 + $0x78] sm:$0xff] %vm2291, %v2274
      %s2308 = scalar_lea.vmem %s5, 128
      %v2309 = vld [vmem:[%s2308] sm:$0xff]
      %v2310 = vld [vmem:[%s2308 + $0x8] sm:$0xff]
      %v2311 = vld [vmem:[%s2308 + $0x10] sm:$0xff]
      %v2312 = vld [vmem:[%s2308 + $0x18] sm:$0xff]
      %v2313 = vld [vmem:[%s2308 + $0x20] sm:$0xff]
      %v2314 = vld [vmem:[%s2308 + $0x28] sm:$0xff]
      %v2315 = vld [vmem:[%s2308 + $0x30] sm:$0xff]
      %v2316 = vld [vmem:[%s2308 + $0x38] sm:$0xff]
      %2317 = vrot.lane.b32.xlu0 %v984, 112
      %v2318 = vpop.permute.xlu0 %2317
      %2319 = vrot.lane.b32.xlu0 %v985, 112
      %v2320 = vpop.permute.xlu0 %2319
      %2321 = vrot.lane.b32.xlu0 %v986, 112
      %v2322 = vpop.permute.xlu0 %2321
      %2323 = vrot.lane.b32.xlu0 %v987, 112
      %v2324 = vpop.permute.xlu0 %2323
      %2325 = vrot.lane.b32.xlu0 %v984, 80
      %v2326 = vpop.permute.xlu0 %2325
      %2327 = vrot.lane.b32.xlu0 %v985, 80
      %v2328 = vpop.permute.xlu0 %2327
      %2329 = vrot.lane.b32.xlu0 %v986, 80
      %v2330 = vpop.permute.xlu0 %2329
      %2331 = vrot.lane.b32.xlu0 %v987, 80
      %v2332 = vpop.permute.xlu0 %2331
      %v2334 = vsel %vm1012, %v2318, 0
      %v2337 = vsel %vm1012, %v2320, 0
      %v2340 = vsel %vm1012, %v2322, 0
      %v2343 = vsel %vm1012, %v2324, 0
      %v2346 = vsel %vm1012, %v2326, 0
      %v2349 = vsel %vm1012, %v2328, 0
      %v2352 = vsel %vm1012, %v2330, 0
      %v2355 = vsel %vm1012, %v2332, 0
      %2357 = vmatprep.subr.bf16.mxu0 0
      %2358 = vmatpush1.bf16.xpose.msra.mxu0 0
      %2359 = vmatprep.subr.bf16.mxu0 0
      %2360 = vmatpush1.bf16.xpose.msra.mxu0 0
      %2361 = vmatprep.subr.bf16.mxu0 0
      %2362 = vmatpush1.bf16.xpose.msra.mxu0 0
      %2363 = vmatprep.subr.bf16.mxu0 0
      %2364 = vmatpush1.bf16.xpose.msra.mxu0 0
      %2365 = vmatprep.subr.bf16.mxu0 0
      %2366 = vmatpush1.bf16.xpose.msra.mxu0 %v2355
      %2367 = vmatprep.subr.bf16.mxu0 0
      %2368 = vmatpush1.bf16.xpose.msra.mxu0 %v2352
      %2369 = vmatprep.subr.bf16.mxu0 0
      %2370 = vmatpush1.bf16.xpose.msra.mxu0 %v2349
      %2371 = vmatprep.subr.bf16.mxu0 0
      %2372 = vmatpush1.bf16.xpose.msra.mxu0 %v2346
      %2373 = vmatprep.subr.bf16.mxu0 0
      %2374 = vmatpush2.bf16.xpose.msra.mxu0 0
      %2375 = vmatprep.subr.bf16.mxu0 0
      %2376 = vmatpush2.bf16.xpose.msra.mxu0 0
      %2377 = vmatprep.subr.bf16.mxu0 0
      %2378 = vmatpush2.bf16.xpose.msra.mxu0 0
      %2379 = vmatprep.subr.bf16.mxu0 0
      %2380 = vmatpush2.bf16.xpose.msra.mxu0 0
      %2381 = vmatprep.subr.bf16.mxu0 0
      %2382 = vmatpush2.bf16.xpose.msra.mxu0 0
      %2383 = vmatprep.subr.bf16.mxu0 0
      %2384 = vmatpush2.bf16.xpose.msra.mxu0 0
      %2385 = vmatprep.subr.bf16.mxu0 0
      %2386 = vmatpush2.bf16.xpose.msra.mxu0 0
      %2387 = vmatprep.subr.bf16.mxu0 0
      %2388 = vmatpush2.bf16.xpose.msra.mxu0 0
      %2389 = vmatprep.mubr.bf16.mxu0 0
      %2390 = vmatmul.mubr.bf16.gmra.mxu0 %v2334
      %v2391 = vpop.f32.mrf.mxu0
      %v2392 = vadd.f32 %v2309, %v2391
      %v2393 = vpop.f32.mrf.mxu0
      %v2394 = vpop.f32.mrf.mxu0
      %v2395 = vadd.f32 %v2310, %v2394
      %v2396 = vpop.f32.mrf.mxu0
      %2397 = vmatprep.mubr.bf16.mxu0 0
      %2398 = vmatmul.mubr.bf16.gmra.mxu0 %v2337
      %v2399 = vpop.f32.mrf.mxu0
      %v2400 = vadd.f32 %v2311, %v2399
      %v2401 = vpop.f32.mrf.mxu0
      %v2402 = vpop.f32.mrf.mxu0
      %v2403 = vadd.f32 %v2312, %v2402
      %v2404 = vpop.f32.mrf.mxu0
      %2405 = vmatprep.mubr.bf16.mxu0 0
      %2406 = vmatmul.mubr.bf16.gmra.mxu0 %v2340
      %v2407 = vpop.f32.mrf.mxu0
      %v2408 = vadd.f32 %v2313, %v2407
      %v2409 = vpop.f32.mrf.mxu0
      %v2410 = vpop.f32.mrf.mxu0
      %v2411 = vadd.f32 %v2314, %v2410
      %v2412 = vpop.f32.mrf.mxu0
      %2413 = vmatprep.mubr.bf16.mxu0 0
      %2414 = vmatmul.mubr.bf16.gmra.mxu0 %v2343
      %v2415 = vpop.f32.mrf.mxu0
      %v2416 = vadd.f32 %v2315, %v2415
      %v2417 = vpop.f32.mrf.mxu0
      %v2418 = vpop.f32.mrf.mxu0
      %v2419 = vadd.f32 %v2316, %v2418
      %v2420 = vpop.f32.mrf.mxu0
      %2421 = vdwg.mxu0
      %2422 = vrot.lane.b32.xlu0 %v988, 112
      %v2423 = vpop.permute.xlu0 %2422
      %2424 = vrot.lane.b32.xlu0 %v989, 112
      %v2425 = vpop.permute.xlu0 %2424
      %2426 = vrot.lane.b32.xlu0 %v990, 112
      %v2427 = vpop.permute.xlu0 %2426
      %2428 = vrot.lane.b32.xlu0 %v991, 112
      %v2429 = vpop.permute.xlu0 %2428
      %2430 = vrot.lane.b32.xlu0 %v988, 80
      %v2431 = vpop.permute.xlu0 %2430
      %2432 = vrot.lane.b32.xlu0 %v989, 80
      %v2433 = vpop.permute.xlu0 %2432
      %2434 = vrot.lane.b32.xlu0 %v990, 80
      %v2435 = vpop.permute.xlu0 %2434
      %2436 = vrot.lane.b32.xlu0 %v991, 80
      %v2437 = vpop.permute.xlu0 %2436
      %v2439 = vsel %vm1012, %v2423, 0
      %v2442 = vsel %vm1012, %v2425, 0
      %v2445 = vsel %vm1012, %v2427, 0
      %v2448 = vsel %vm1012, %v2429, 0
      %v2451 = vsel %vm1012, %v2431, 0
      %v2454 = vsel %vm1012, %v2433, 0
      %v2457 = vsel %vm1012, %v2435, 0
      %v2460 = vsel %vm1012, %v2437, 0
      %2462 = vmatprep.subr.bf16.mxu0 0
      %2463 = vmatpush1.bf16.xpose.msra.mxu0 0
      %2464 = vmatprep.subr.bf16.mxu0 0
      %2465 = vmatpush1.bf16.xpose.msra.mxu0 0
      %2466 = vmatprep.subr.bf16.mxu0 0
      %2467 = vmatpush1.bf16.xpose.msra.mxu0 0
      %2468 = vmatprep.subr.bf16.mxu0 0
      %2469 = vmatpush1.bf16.xpose.msra.mxu0 0
      %2470 = vmatprep.subr.bf16.mxu0 0
      %2471 = vmatpush1.bf16.xpose.msra.mxu0 %v2460
      %2472 = vmatprep.subr.bf16.mxu0 0
      %2473 = vmatpush1.bf16.xpose.msra.mxu0 %v2457
      %2474 = vmatprep.subr.bf16.mxu0 0
      %2475 = vmatpush1.bf16.xpose.msra.mxu0 %v2454
      %2476 = vmatprep.subr.bf16.mxu0 0
      %2477 = vmatpush1.bf16.xpose.msra.mxu0 %v2451
      %2478 = vmatprep.subr.bf16.mxu0 0
      %2479 = vmatpush2.bf16.xpose.msra.mxu0 0
      %2480 = vmatprep.subr.bf16.mxu0 0
      %2481 = vmatpush2.bf16.xpose.msra.mxu0 0
      %2482 = vmatprep.subr.bf16.mxu0 0
      %2483 = vmatpush2.bf16.xpose.msra.mxu0 0
      %2484 = vmatprep.subr.bf16.mxu0 0
      %2485 = vmatpush2.bf16.xpose.msra.mxu0 0
      %2486 = vmatprep.subr.bf16.mxu0 0
      %2487 = vmatpush2.bf16.xpose.msra.mxu0 0
      %2488 = vmatprep.subr.bf16.mxu0 0
      %2489 = vmatpush2.bf16.xpose.msra.mxu0 0
      %2490 = vmatprep.subr.bf16.mxu0 0
      %2491 = vmatpush2.bf16.xpose.msra.mxu0 0
      %2492 = vmatprep.subr.bf16.mxu0 0
      %2493 = vmatpush2.bf16.xpose.msra.mxu0 0
      %2494 = vmatprep.mubr.bf16.mxu0 0
      %2495 = vmatmul.mubr.bf16.gmra.mxu0 %v2439
      %v2496 = vpop.f32.mrf.mxu0
      %v2497 = vadd.f32 %v2309, %v2496
      %v2498 = vpop.f32.mrf.mxu0
      %v2499 = vpop.f32.mrf.mxu0
      %v2500 = vadd.f32 %v2310, %v2499
      %v2501 = vpop.f32.mrf.mxu0
      %2502 = vmatprep.mubr.bf16.mxu0 0
      %2503 = vmatmul.mubr.bf16.gmra.mxu0 %v2442
      %v2504 = vpop.f32.mrf.mxu0
      %v2505 = vadd.f32 %v2311, %v2504
      %v2506 = vpop.f32.mrf.mxu0
      %v2507 = vpop.f32.mrf.mxu0
      %v2508 = vadd.f32 %v2312, %v2507
      %v2509 = vpop.f32.mrf.mxu0
      %2510 = vmatprep.mubr.bf16.mxu0 0
      %2511 = vmatmul.mubr.bf16.gmra.mxu0 %v2445
      %v2512 = vpop.f32.mrf.mxu0
      %v2513 = vadd.f32 %v2313, %v2512
      %v2514 = vpop.f32.mrf.mxu0
      %v2515 = vpop.f32.mrf.mxu0
      %v2516 = vadd.f32 %v2314, %v2515
      %v2517 = vpop.f32.mrf.mxu0
      %2518 = vmatprep.mubr.bf16.mxu0 0
      %2519 = vmatmul.mubr.bf16.gmra.mxu0 %v2448
      %v2520 = vpop.f32.mrf.mxu0
      %v2521 = vadd.f32 %v2315, %v2520
      %v2522 = vpop.f32.mrf.mxu0
      %v2523 = vpop.f32.mrf.mxu0
      %v2524 = vadd.f32 %v2316, %v2523
      %v2525 = vpop.f32.mrf.mxu0
      %2526 = vdwg.mxu0
      %v2527 = vld [vmem:[%s547] sm:$0xff]
      %v2528 = vld [vmem:[%s547 + $0x8] sm:$0xff]
      %v2529 = vld [vmem:[%s547 + $0x10] sm:$0xff]
      %v2530 = vld [vmem:[%s547 + $0x18] sm:$0xff]
      %v2531 = vld [vmem:[%s547 + $0x20] sm:$0xff]
      %v2532 = vld [vmem:[%s547 + $0x28] sm:$0xff]
      %v2533 = vld [vmem:[%s547 + $0x30] sm:$0xff]
      %v2534 = vld [vmem:[%s547 + $0x38] sm:$0xff]
      %v2535 = vld [vmem:[%s547 + $0x40] sm:$0xff]
      %v2536 = vld [vmem:[%s547 + $0x48] sm:$0xff]
      %v2537 = vld [vmem:[%s547 + $0x50] sm:$0xff]
      %v2538 = vld [vmem:[%s547 + $0x58] sm:$0xff]
      %v2539 = vld [vmem:[%s547 + $0x60] sm:$0xff]
      %v2540 = vld [vmem:[%s547 + $0x68] sm:$0xff]
      %v2541 = vld [vmem:[%s547 + $0x70] sm:$0xff]
      %v2542 = vld [vmem:[%s547 + $0x78] sm:$0xff]
      %v2543 = vadd.f32 %v2392, %v2527
      %v2544 = vadd.f32 %v2395, %v2528
      %v2545 = vadd.f32 %v2400, %v2529
      %v2546 = vadd.f32 %v2403, %v2530
      %v2547 = vadd.f32 %v2408, %v2531
      %v2548 = vadd.f32 %v2411, %v2532
      %v2549 = vadd.f32 %v2416, %v2533
      %v2550 = vadd.f32 %v2419, %v2534
      %v2551 = vadd.f32 %v2497, %v2535
      %v2552 = vadd.f32 %v2500, %v2536
      %v2553 = vadd.f32 %v2505, %v2537
      %v2554 = vadd.f32 %v2508, %v2538
      %v2555 = vadd.f32 %v2513, %v2539
      %v2556 = vadd.f32 %v2516, %v2540
      %v2557 = vadd.f32 %v2521, %v2541
      %v2558 = vadd.f32 %v2524, %v2542
      %v2559 = vsel %vm1235, %v2543, -inf
      %2560 = vmax.xlane.f32.xlu0 %v2559
      %v2561 = vpop.xlane.xlu0 %2560
      %v2562 = vsel %vm1235, %v2544, -inf
      %2563 = vmax.xlane.f32.xlu0 %v2562
      %v2564 = vpop.xlane.xlu0 %2563
      %v2565 = vsel %vm1235, %v2545, -inf
      %2566 = vmax.xlane.f32.xlu0 %v2565
      %v2567 = vpop.xlane.xlu0 %2566
      %v2568 = vsel %vm1235, %v2546, -inf
      %2569 = vmax.xlane.f32.xlu0 %v2568
      %v2570 = vpop.xlane.xlu0 %2569
      %v2571 = vsel %vm1235, %v2547, -inf
      %2572 = vmax.xlane.f32.xlu0 %v2571
      %v2573 = vpop.xlane.xlu0 %2572
      %v2574 = vsel %vm1235, %v2548, -inf
      %2575 = vmax.xlane.f32.xlu0 %v2574
      %v2576 = vpop.xlane.xlu0 %2575
      %v2577 = vsel %vm1235, %v2549, -inf
      %2578 = vmax.xlane.f32.xlu0 %v2577
      %v2579 = vpop.xlane.xlu0 %2578
      %v2580 = vsel %vm1235, %v2550, -inf
      %2581 = vmax.xlane.f32.xlu0 %v2580
      %v2582 = vpop.xlane.xlu0 %2581
      %v2583 = vsel %vm1235, %v2551, -inf
      %2584 = vmax.xlane.f32.xlu0 %v2583
      %v2585 = vpop.xlane.xlu0 %2584
      %v2586 = vsel %vm1235, %v2552, -inf
      %2587 = vmax.xlane.f32.xlu0 %v2586
      %v2588 = vpop.xlane.xlu0 %2587
      %v2589 = vsel %vm1235, %v2553, -inf
      %2590 = vmax.xlane.f32.xlu0 %v2589
      %v2591 = vpop.xlane.xlu0 %2590
      %v2592 = vsel %vm1235, %v2554, -inf
      %2593 = vmax.xlane.f32.xlu0 %v2592
      %v2594 = vpop.xlane.xlu0 %2593
      %v2595 = vsel %vm1235, %v2555, -inf
      %2596 = vmax.xlane.f32.xlu0 %v2595
      %v2597 = vpop.xlane.xlu0 %2596
      %v2598 = vsel %vm1235, %v2556, -inf
      %2599 = vmax.xlane.f32.xlu0 %v2598
      %v2600 = vpop.xlane.xlu0 %2599
      %v2601 = vsel %vm1235, %v2557, -inf
      %2602 = vmax.xlane.f32.xlu0 %v2601
      %v2603 = vpop.xlane.xlu0 %2602
      %v2604 = vsel %vm1235, %v2558, -inf
      %2605 = vmax.xlane.f32.xlu0 %v2604
      %v2606 = vpop.xlane.xlu0 %2605
      %v2607 = vsub.f32 %v2543, %v2561
      %v2608 = vsub.f32 %v2544, %v2564
      %v2609 = vsub.f32 %v2545, %v2567
      %v2610 = vsub.f32 %v2546, %v2570
      %v2611 = vsub.f32 %v2547, %v2573
      %v2612 = vsub.f32 %v2548, %v2576
      %v2613 = vsub.f32 %v2549, %v2579
      %v2614 = vsub.f32 %v2550, %v2582
      %v2615 = vsub.f32 %v2551, %v2585
      %v2616 = vsub.f32 %v2552, %v2588
      %v2617 = vsub.f32 %v2553, %v2591
      %v2618 = vsub.f32 %v2554, %v2594
      %v2619 = vsub.f32 %v2555, %v2597
      %v2620 = vsub.f32 %v2556, %v2600
      %v2621 = vsub.f32 %v2557, %v2603
      %v2622 = vsub.f32 %v2558, %v2606
      %v2623 = vmul.f32 %v2607, 1.442695
      %v2624 = vpow.pop %v2623
      %v2625 = vmul.f32 %v2608, 1.442695
      %v2626 = vpow.pop %v2625
      %v2627 = vmul.f32 %v2609, 1.442695
      %v2628 = vpow.pop %v2627
      %v2629 = vmul.f32 %v2610, 1.442695
      %v2630 = vpow.pop %v2629
      %v2631 = vmul.f32 %v2611, 1.442695
      %v2632 = vpow.pop %v2631
      %v2633 = vmul.f32 %v2612, 1.442695
      %v2634 = vpow.pop %v2633
      %v2635 = vmul.f32 %v2613, 1.442695
      %v2636 = vpow.pop %v2635
      %v2637 = vmul.f32 %v2614, 1.442695
      %v2638 = vpow.pop %v2637
      %v2639 = vmul.f32 %v2615, 1.442695
      %v2640 = vpow.pop %v2639
      %v2641 = vmul.f32 %v2616, 1.442695
      %v2642 = vpow.pop %v2641
      %v2643 = vmul.f32 %v2617, 1.442695
      %v2644 = vpow.pop %v2643
      %v2645 = vmul.f32 %v2618, 1.442695
      %v2646 = vpow.pop %v2645
      %v2647 = vmul.f32 %v2619, 1.442695
      %v2648 = vpow.pop %v2647
      %v2649 = vmul.f32 %v2620, 1.442695
      %v2650 = vpow.pop %v2649
      %v2651 = vmul.f32 %v2621, 1.442695
      %v2652 = vpow.pop %v2651
      %v2653 = vmul.f32 %v2622, 1.442695
      %v2654 = vpow.pop %v2653
      %v2655 = vsel %vm1235, %v2624, 0.0
      %2656 = vadd.xlane.f32.xlu0 %v2655
      %v2657 = vpop.xlane.xlu0 %2656
      %v2658 = vsel %vm1235, %v2626, 0.0
      %2659 = vadd.xlane.f32.xlu0 %v2658
      %v2660 = vpop.xlane.xlu0 %2659
      %v2661 = vsel %vm1235, %v2628, 0.0
      %2662 = vadd.xlane.f32.xlu0 %v2661
      %v2663 = vpop.xlane.xlu0 %2662
      %v2664 = vsel %vm1235, %v2630, 0.0
      %2665 = vadd.xlane.f32.xlu0 %v2664
      %v2666 = vpop.xlane.xlu0 %2665
      %v2667 = vsel %vm1235, %v2632, 0.0
      %2668 = vadd.xlane.f32.xlu0 %v2667
      %v2669 = vpop.xlane.xlu0 %2668
      %v2670 = vsel %vm1235, %v2634, 0.0
      %2671 = vadd.xlane.f32.xlu0 %v2670
      %v2672 = vpop.xlane.xlu0 %2671
      %v2673 = vsel %vm1235, %v2636, 0.0
      %2674 = vadd.xlane.f32.xlu0 %v2673
      %v2675 = vpop.xlane.xlu0 %2674
      %v2676 = vsel %vm1235, %v2638, 0.0
      %2677 = vadd.xlane.f32.xlu0 %v2676
      %v2678 = vpop.xlane.xlu0 %2677
      %v2679 = vsel %vm1235, %v2640, 0.0
      %2680 = vadd.xlane.f32.xlu0 %v2679
      %v2681 = vpop.xlane.xlu0 %2680
      %v2682 = vsel %vm1235, %v2642, 0.0
      %2683 = vadd.xlane.f32.xlu0 %v2682
      %v2684 = vpop.xlane.xlu0 %2683
      %v2685 = vsel %vm1235, %v2644, 0.0
      %2686 = vadd.xlane.f32.xlu0 %v2685
      %v2687 = vpop.xlane.xlu0 %2686
      %v2688 = vsel %vm1235, %v2646, 0.0
      %2689 = vadd.xlane.f32.xlu0 %v2688
      %v2690 = vpop.xlane.xlu0 %2689
      %v2691 = vsel %vm1235, %v2648, 0.0
      %2692 = vadd.xlane.f32.xlu0 %v2691
      %v2693 = vpop.xlane.xlu0 %2692
      %v2694 = vsel %vm1235, %v2650, 0.0
      %2695 = vadd.xlane.f32.xlu0 %v2694
      %v2696 = vpop.xlane.xlu0 %2695
      %v2697 = vsel %vm1235, %v2652, 0.0
      %2698 = vadd.xlane.f32.xlu0 %v2697
      %v2699 = vpop.xlane.xlu0 %2698
      %v2700 = vsel %vm1235, %v2654, 0.0
      %2701 = vadd.xlane.f32.xlu0 %v2700
      %v2702 = vpop.xlane.xlu0 %2701
      %v2703 = vrcp.pop %v2657
      %v2704 = vrcp.pop %v2660
      %v2705 = vrcp.pop %v2663
      %v2706 = vrcp.pop %v2666
      %v2707 = vrcp.pop %v2669
      %v2708 = vrcp.pop %v2672
      %v2709 = vrcp.pop %v2675
      %v2710 = vrcp.pop %v2678
      %v2711 = vrcp.pop %v2681
      %v2712 = vrcp.pop %v2684
      %v2713 = vrcp.pop %v2687
      %v2714 = vrcp.pop %v2690
      %v2715 = vrcp.pop %v2693
      %v2716 = vrcp.pop %v2696
      %v2717 = vrcp.pop %v2699
      %v2718 = vrcp.pop %v2702
      %v2719 = vmul.f32 %v2624, %v2703
      %v2720 = vmul.f32 %v2626, %v2704
      %v2721 = vmul.f32 %v2628, %v2705
      %v2722 = vmul.f32 %v2630, %v2706
      %v2723 = vmul.f32 %v2632, %v2707
      %v2724 = vmul.f32 %v2634, %v2708
      %v2725 = vmul.f32 %v2636, %v2709
      %v2726 = vmul.f32 %v2638, %v2710
      %v2727 = vmul.f32 %v2640, %v2711
      %v2728 = vmul.f32 %v2642, %v2712
      %v2729 = vmul.f32 %v2644, %v2713
      %v2730 = vmul.f32 %v2646, %v2714
      %v2731 = vmul.f32 %v2648, %v2715
      %v2732 = vmul.f32 %v2650, %v2716
      %v2733 = vmul.f32 %v2652, %v2717
      %v2734 = vmul.f32 %v2654, %v2718
      %v2735 = vpack.c.bf16 %v2720, %v2719
      %v2736 = vpack.c.bf16 %v2722, %v2721
      %v2737 = vpack.c.bf16 %v2724, %v2723
      %v2738 = vpack.c.bf16 %v2726, %v2725
      %v2739 = vpack.c.bf16 %v2728, %v2727
      %v2740 = vpack.c.bf16 %v2730, %v2729
      %v2741 = vpack.c.bf16 %v2732, %v2731
      %v2742 = vpack.c.bf16 %v2734, %v2733
      %2743 = vrot.lane.b32.xlu0 %v984, 48
      %v2744 = vpop.permute.xlu0 %2743
      %2745 = vrot.lane.b32.xlu0 %v985, 48
      %v2746 = vpop.permute.xlu0 %2745
      %2747 = vrot.lane.b32.xlu0 %v986, 48
      %v2748 = vpop.permute.xlu0 %2747
      %2749 = vrot.lane.b32.xlu0 %v987, 48
      %v2750 = vpop.permute.xlu0 %2749
      %v2756 = vsel %vm1235, %v2735, 0
      %v2759 = vsel %vm1235, %v2736, 0
      %v2762 = vsel %vm1235, %v2737, 0
      %v2765 = vsel %vm1235, %v2738, 0
      %2767 = vmatprep.subr.bf16.mxu0 0
      %2768 = vmatpush1.bf16.msra.mxu0 0
      %2769 = vmatprep.subr.bf16.mxu0 0
      %2770 = vmatpush1.bf16.msra.mxu0 0
      %2771 = vmatprep.subr.bf16.mxu0 0
      %2772 = vmatpush1.bf16.msra.mxu0 0
      %2773 = vmatprep.subr.bf16.mxu0 0
      %2774 = vmatpush1.bf16.msra.mxu0 0
      %2775 = vmatprep.subr.bf16.mxu0 0
      %2776 = vmatpush1.bf16.msra.mxu0 %v2750
      %2777 = vmatprep.subr.bf16.mxu0 0
      %2778 = vmatpush1.bf16.msra.mxu0 %v2748
      %2779 = vmatprep.subr.bf16.mxu0 0
      %2780 = vmatpush1.bf16.msra.mxu0 %v2746
      %2781 = vmatprep.subr.bf16.mxu0 0
      %2782 = vmatpush1.bf16.msra.mxu0 %v2744
      %2783 = vmatprep.subr.bf16.mxu0 0
      %2784 = vmatpush2.bf16.msra.mxu0 0
      %2785 = vmatprep.subr.bf16.mxu0 0
      %2786 = vmatpush2.bf16.msra.mxu0 0
      %2787 = vmatprep.subr.bf16.mxu0 0
      %2788 = vmatpush2.bf16.msra.mxu0 0
      %2789 = vmatprep.subr.bf16.mxu0 0
      %2790 = vmatpush2.bf16.msra.mxu0 0
      %2791 = vmatprep.subr.bf16.mxu0 0
      %2792 = vmatpush2.bf16.msra.mxu0 0
      %2793 = vmatprep.subr.bf16.mxu0 0
      %2794 = vmatpush2.bf16.msra.mxu0 0
      %2795 = vmatprep.subr.bf16.mxu0 0
      %2796 = vmatpush2.bf16.msra.mxu0 0
      %2797 = vmatprep.subr.bf16.mxu0 0
      %2798 = vmatpush2.bf16.msra.mxu0 0
      %2799 = vmatprep.mubr.bf16.mxu0 0
      %2800 = vmatmul.mubr.bf16.gmra.mxu0 %v2756
      %v2801 = vpop.f32.mrf.mxu0
      %v2802 = vadd.f32 0.0, %v2801
      %v2803 = vpop.f32.mrf.mxu0
      %v2804 = vpop.f32.mrf.mxu0
      %v2805 = vadd.f32 0.0, %v2804
      %v2806 = vpop.f32.mrf.mxu0
      %2807 = vmatprep.mubr.bf16.mxu0 0
      %2808 = vmatmul.mubr.bf16.gmra.mxu0 %v2759
      %v2809 = vpop.f32.mrf.mxu0
      %v2810 = vadd.f32 0.0, %v2809
      %v2811 = vpop.f32.mrf.mxu0
      %v2812 = vpop.f32.mrf.mxu0
      %v2813 = vadd.f32 0.0, %v2812
      %v2814 = vpop.f32.mrf.mxu0
      %2815 = vmatprep.mubr.bf16.mxu0 0
      %2816 = vmatmul.mubr.bf16.gmra.mxu0 %v2762
      %v2817 = vpop.f32.mrf.mxu0
      %v2818 = vadd.f32 0.0, %v2817
      %v2819 = vpop.f32.mrf.mxu0
      %v2820 = vpop.f32.mrf.mxu0
      %v2821 = vadd.f32 0.0, %v2820
      %v2822 = vpop.f32.mrf.mxu0
      %2823 = vmatprep.mubr.bf16.mxu0 0
      %2824 = vmatmul.mubr.bf16.gmra.mxu0 %v2765
      %v2825 = vpop.f32.mrf.mxu0
      %v2826 = vadd.f32 0.0, %v2825
      %v2827 = vpop.f32.mrf.mxu0
      %v2828 = vpop.f32.mrf.mxu0
      %v2829 = vadd.f32 0.0, %v2828
      %v2830 = vpop.f32.mrf.mxu0
      %2831 = vdwg.mxu0
      %2832 = vrot.lane.b32.xlu0 %v988, 48
      %v2833 = vpop.permute.xlu0 %2832
      %2834 = vrot.lane.b32.xlu0 %v989, 48
      %v2835 = vpop.permute.xlu0 %2834
      %2836 = vrot.lane.b32.xlu0 %v990, 48
      %v2837 = vpop.permute.xlu0 %2836
      %2838 = vrot.lane.b32.xlu0 %v991, 48
      %v2839 = vpop.permute.xlu0 %2838
      %v2845 = vsel %vm1235, %v2739, 0
      %v2848 = vsel %vm1235, %v2740, 0
      %v2851 = vsel %vm1235, %v2741, 0
      %v2854 = vsel %vm1235, %v2742, 0
      %2856 = vmatprep.subr.bf16.mxu0 0
      %2857 = vmatpush1.bf16.msra.mxu0 0
      %2858 = vmatprep.subr.bf16.mxu0 0
      %2859 = vmatpush1.bf16.msra.mxu0 0
      %2860 = vmatprep.subr.bf16.mxu0 0
      %2861 = vmatpush1.bf16.msra.mxu0 0
      %2862 = vmatprep.subr.bf16.mxu0 0
      %2863 = vmatpush1.bf16.msra.mxu0 0
      %2864 = vmatprep.subr.bf16.mxu0 0
      %2865 = vmatpush1.bf16.msra.mxu0 %v2839
      %2866 = vmatprep.subr.bf16.mxu0 0
      %2867 = vmatpush1.bf16.msra.mxu0 %v2837
      %2868 = vmatprep.subr.bf16.mxu0 0
      %2869 = vmatpush1.bf16.msra.mxu0 %v2835
      %2870 = vmatprep.subr.bf16.mxu0 0
      %2871 = vmatpush1.bf16.msra.mxu0 %v2833
      %2872 = vmatprep.subr.bf16.mxu0 0
      %2873 = vmatpush2.bf16.msra.mxu0 0
      %2874 = vmatprep.subr.bf16.mxu0 0
      %2875 = vmatpush2.bf16.msra.mxu0 0
      %2876 = vmatprep.subr.bf16.mxu0 0
      %2877 = vmatpush2.bf16.msra.mxu0 0
      %2878 = vmatprep.subr.bf16.mxu0 0
      %2879 = vmatpush2.bf16.msra.mxu0 0
      %2880 = vmatprep.subr.bf16.mxu0 0
      %2881 = vmatpush2.bf16.msra.mxu0 0
      %2882 = vmatprep.subr.bf16.mxu0 0
      %2883 = vmatpush2.bf16.msra.mxu0 0
      %2884 = vmatprep.subr.bf16.mxu0 0
      %2885 = vmatpush2.bf16.msra.mxu0 0
      %2886 = vmatprep.subr.bf16.mxu0 0
      %2887 = vmatpush2.bf16.msra.mxu0 0
      %2888 = vmatprep.mubr.bf16.mxu0 0
      %2889 = vmatmul.mubr.bf16.gmra.mxu0 %v2845
      %v2890 = vpop.f32.mrf.mxu0
      %v2891 = vadd.f32 0.0, %v2890
      %v2892 = vpop.f32.mrf.mxu0
      %v2893 = vpop.f32.mrf.mxu0
      %v2894 = vadd.f32 0.0, %v2893
      %v2895 = vpop.f32.mrf.mxu0
      %2896 = vmatprep.mubr.bf16.mxu0 0
      %2897 = vmatmul.mubr.bf16.gmra.mxu0 %v2848
      %v2898 = vpop.f32.mrf.mxu0
      %v2899 = vadd.f32 0.0, %v2898
      %v2900 = vpop.f32.mrf.mxu0
      %v2901 = vpop.f32.mrf.mxu0
      %v2902 = vadd.f32 0.0, %v2901
      %v2903 = vpop.f32.mrf.mxu0
      %2904 = vmatprep.mubr.bf16.mxu0 0
      %2905 = vmatmul.mubr.bf16.gmra.mxu0 %v2851
      %v2906 = vpop.f32.mrf.mxu0
      %v2907 = vadd.f32 0.0, %v2906
      %v2908 = vpop.f32.mrf.mxu0
      %v2909 = vpop.f32.mrf.mxu0
      %v2910 = vadd.f32 0.0, %v2909
      %v2911 = vpop.f32.mrf.mxu0
      %2912 = vmatprep.mubr.bf16.mxu0 0
      %2913 = vmatmul.mubr.bf16.gmra.mxu0 %v2854
      %v2914 = vpop.f32.mrf.mxu0
      %v2915 = vadd.f32 0.0, %v2914
      %v2916 = vpop.f32.mrf.mxu0
      %v2917 = vpop.f32.mrf.mxu0
      %v2918 = vadd.f32 0.0, %v2917
      %v2919 = vpop.f32.mrf.mxu0
      %2920 = vdwg.mxu0
      %2937 = vrot.lane.b32.xlu0 %v2802, 16
      %v2938 = vpop.permute.xlu0 %2937
      %2939 = vrot.lane.b32.xlu0 %v2805, 16
      %v2940 = vpop.permute.xlu0 %2939
      %2941 = vrot.lane.b32.xlu0 %v2810, 16
      %v2942 = vpop.permute.xlu0 %2941
      %2943 = vrot.lane.b32.xlu0 %v2813, 16
      %v2944 = vpop.permute.xlu0 %2943
      %2945 = vrot.lane.b32.xlu0 %v2818, 16
      %v2946 = vpop.permute.xlu0 %2945
      %2947 = vrot.lane.b32.xlu0 %v2821, 16
      %v2948 = vpop.permute.xlu0 %2947
      %2949 = vrot.lane.b32.xlu0 %v2826, 16
      %v2950 = vpop.permute.xlu0 %2949
      %2951 = vrot.lane.b32.xlu0 %v2829, 16
      %v2952 = vpop.permute.xlu0 %2951
      %2953 = vrot.lane.b32.xlu0 %v2891, 16
      %v2954 = vpop.permute.xlu0 %2953
      %2955 = vrot.lane.b32.xlu0 %v2894, 16
      %v2956 = vpop.permute.xlu0 %2955
      %2957 = vrot.lane.b32.xlu0 %v2899, 16
      %v2958 = vpop.permute.xlu0 %2957
      %2959 = vrot.lane.b32.xlu0 %v2902, 16
      %v2960 = vpop.permute.xlu0 %2959
      %2961 = vrot.lane.b32.xlu0 %v2907, 16
      %v2962 = vpop.permute.xlu0 %2961
      %2963 = vrot.lane.b32.xlu0 %v2910, 16
      %v2964 = vpop.permute.xlu0 %2963
      %2965 = vrot.lane.b32.xlu0 %v2915, 16
      %v2966 = vpop.permute.xlu0 %2965
      %2967 = vrot.lane.b32.xlu0 %v2918, 16
      %v2968 = vpop.permute.xlu0 %2967
      %vm2985 = vcmask 195712
      %2986 = vst.msk [vmem:[#allocation2] sm:$0xff] %vm2985, %v2938
      %2987 = vst.msk [vmem:[#allocation2 + $0x8] sm:$0xff] %vm2985, %v2940
      %2988 = vst.msk [vmem:[#allocation2 + $0x10] sm:$0xff] %vm2985, %v2942
      %2989 = vst.msk [vmem:[#allocation2 + $0x18] sm:$0xff] %vm2985, %v2944
      %2990 = vst.msk [vmem:[#allocation2 + $0x20] sm:$0xff] %vm2985, %v2946
      %2991 = vst.msk [vmem:[#allocation2 + $0x28] sm:$0xff] %vm2985, %v2948
      %2992 = vst.msk [vmem:[#allocation2 + $0x30] sm:$0xff] %vm2985, %v2950
      %2993 = vst.msk [vmem:[#allocation2 + $0x38] sm:$0xff] %vm2985, %v2952
      %2994 = vst.msk [vmem:[#allocation2 + $0x40] sm:$0xff] %vm2985, %v2954
      %2995 = vst.msk [vmem:[#allocation2 + $0x48] sm:$0xff] %vm2985, %v2956
      %2996 = vst.msk [vmem:[#allocation2 + $0x50] sm:$0xff] %vm2985, %v2958
      %2997 = vst.msk [vmem:[#allocation2 + $0x58] sm:$0xff] %vm2985, %v2960
      %2998 = vst.msk [vmem:[#allocation2 + $0x60] sm:$0xff] %vm2985, %v2962
      %2999 = vst.msk [vmem:[#allocation2 + $0x68] sm:$0xff] %vm2985, %v2964
      %3000 = vst.msk [vmem:[#allocation2 + $0x70] sm:$0xff] %vm2985, %v2966
      %3001 = vst.msk [vmem:[#allocation2 + $0x78] sm:$0xff] %vm2985, %v2968
      %s3002 = scalar_lea.vmem %s5, 192
      %v3003 = vld [vmem:[%s3002] sm:$0xff]
      %v3004 = vld [vmem:[%s3002 + $0x8] sm:$0xff]
      %v3005 = vld [vmem:[%s3002 + $0x10] sm:$0xff]
      %v3006 = vld [vmem:[%s3002 + $0x18] sm:$0xff]
      %v3007 = vld [vmem:[%s3002 + $0x20] sm:$0xff]
      %v3008 = vld [vmem:[%s3002 + $0x28] sm:$0xff]
      %v3009 = vld [vmem:[%s3002 + $0x30] sm:$0xff]
      %v3010 = vld [vmem:[%s3002 + $0x38] sm:$0xff]
      %3011 = vrot.lane.b32.xlu0 %v984, 104
      %v3012 = vpop.permute.xlu0 %3011
      %3013 = vrot.lane.b32.xlu0 %v985, 104
      %v3014 = vpop.permute.xlu0 %3013
      %3015 = vrot.lane.b32.xlu0 %v986, 104
      %v3016 = vpop.permute.xlu0 %3015
      %3017 = vrot.lane.b32.xlu0 %v987, 104
      %v3018 = vpop.permute.xlu0 %3017
      %3019 = vrot.lane.b32.xlu0 %v984, 72
      %v3020 = vpop.permute.xlu0 %3019
      %3021 = vrot.lane.b32.xlu0 %v985, 72
      %v3022 = vpop.permute.xlu0 %3021
      %3023 = vrot.lane.b32.xlu0 %v986, 72
      %v3024 = vpop.permute.xlu0 %3023
      %3025 = vrot.lane.b32.xlu0 %v987, 72
      %v3026 = vpop.permute.xlu0 %3025
      %v3028 = vsel %vm1012, %v3012, 0
      %v3031 = vsel %vm1012, %v3014, 0
      %v3034 = vsel %vm1012, %v3016, 0
      %v3037 = vsel %vm1012, %v3018, 0
      %v3040 = vsel %vm1012, %v3020, 0
      %v3043 = vsel %vm1012, %v3022, 0
      %v3046 = vsel %vm1012, %v3024, 0
      %v3049 = vsel %vm1012, %v3026, 0
      %3051 = vmatprep.subr.bf16.mxu0 0
      %3052 = vmatpush1.bf16.xpose.msra.mxu0 0
      %3053 = vmatprep.subr.bf16.mxu0 0
      %3054 = vmatpush1.bf16.xpose.msra.mxu0 0
      %3055 = vmatprep.subr.bf16.mxu0 0
      %3056 = vmatpush1.bf16.xpose.msra.mxu0 0
      %3057 = vmatprep.subr.bf16.mxu0 0
      %3058 = vmatpush1.bf16.xpose.msra.mxu0 0
      %3059 = vmatprep.subr.bf16.mxu0 0
      %3060 = vmatpush1.bf16.xpose.msra.mxu0 %v3049
      %3061 = vmatprep.subr.bf16.mxu0 0
      %3062 = vmatpush1.bf16.xpose.msra.mxu0 %v3046
      %3063 = vmatprep.subr.bf16.mxu0 0
      %3064 = vmatpush1.bf16.xpose.msra.mxu0 %v3043
      %3065 = vmatprep.subr.bf16.mxu0 0
      %3066 = vmatpush1.bf16.xpose.msra.mxu0 %v3040
      %3067 = vmatprep.subr.bf16.mxu0 0
      %3068 = vmatpush2.bf16.xpose.msra.mxu0 0
      %3069 = vmatprep.subr.bf16.mxu0 0
      %3070 = vmatpush2.bf16.xpose.msra.mxu0 0
      %3071 = vmatprep.subr.bf16.mxu0 0
      %3072 = vmatpush2.bf16.xpose.msra.mxu0 0
      %3073 = vmatprep.subr.bf16.mxu0 0
      %3074 = vmatpush2.bf16.xpose.msra.mxu0 0
      %3075 = vmatprep.subr.bf16.mxu0 0
      %3076 = vmatpush2.bf16.xpose.msra.mxu0 0
      %3077 = vmatprep.subr.bf16.mxu0 0
      %3078 = vmatpush2.bf16.xpose.msra.mxu0 0
      %3079 = vmatprep.subr.bf16.mxu0 0
      %3080 = vmatpush2.bf16.xpose.msra.mxu0 0
      %3081 = vmatprep.subr.bf16.mxu0 0
      %3082 = vmatpush2.bf16.xpose.msra.mxu0 0
      %3083 = vmatprep.mubr.bf16.mxu0 0
      %3084 = vmatmul.mubr.bf16.gmra.mxu0 %v3028
      %v3085 = vpop.f32.mrf.mxu0
      %v3086 = vadd.f32 %v3003, %v3085
      %v3087 = vpop.f32.mrf.mxu0
      %v3088 = vpop.f32.mrf.mxu0
      %v3089 = vadd.f32 %v3004, %v3088
      %v3090 = vpop.f32.mrf.mxu0
      %3091 = vmatprep.mubr.bf16.mxu0 0
      %3092 = vmatmul.mubr.bf16.gmra.mxu0 %v3031
      %v3093 = vpop.f32.mrf.mxu0
      %v3094 = vadd.f32 %v3005, %v3093
      %v3095 = vpop.f32.mrf.mxu0
      %v3096 = vpop.f32.mrf.mxu0
      %v3097 = vadd.f32 %v3006, %v3096
      %v3098 = vpop.f32.mrf.mxu0
      %3099 = vmatprep.mubr.bf16.mxu0 0
      %3100 = vmatmul.mubr.bf16.gmra.mxu0 %v3034
      %v3101 = vpop.f32.mrf.mxu0
      %v3102 = vadd.f32 %v3007, %v3101
      %v3103 = vpop.f32.mrf.mxu0
      %v3104 = vpop.f32.mrf.mxu0
      %v3105 = vadd.f32 %v3008, %v3104
      %v3106 = vpop.f32.mrf.mxu0
      %3107 = vmatprep.mubr.bf16.mxu0 0
      %3108 = vmatmul.mubr.bf16.gmra.mxu0 %v3037
      %v3109 = vpop.f32.mrf.mxu0
      %v3110 = vadd.f32 %v3009, %v3109
      %v3111 = vpop.f32.mrf.mxu0
      %v3112 = vpop.f32.mrf.mxu0
      %v3113 = vadd.f32 %v3010, %v3112
      %v3114 = vpop.f32.mrf.mxu0
      %3115 = vdwg.mxu0
      %3116 = vrot.lane.b32.xlu0 %v988, 104
      %v3117 = vpop.permute.xlu0 %3116
      %3118 = vrot.lane.b32.xlu0 %v989, 104
      %v3119 = vpop.permute.xlu0 %3118
      %3120 = vrot.lane.b32.xlu0 %v990, 104
      %v3121 = vpop.permute.xlu0 %3120
      %3122 = vrot.lane.b32.xlu0 %v991, 104
      %v3123 = vpop.permute.xlu0 %3122
      %3124 = vrot.lane.b32.xlu0 %v988, 72
      %v3125 = vpop.permute.xlu0 %3124
      %3126 = vrot.lane.b32.xlu0 %v989, 72
      %v3127 = vpop.permute.xlu0 %3126
      %3128 = vrot.lane.b32.xlu0 %v990, 72
      %v3129 = vpop.permute.xlu0 %3128
      %3130 = vrot.lane.b32.xlu0 %v991, 72
      %v3131 = vpop.permute.xlu0 %3130
      %v3133 = vsel %vm1012, %v3117, 0
      %v3136 = vsel %vm1012, %v3119, 0
      %v3139 = vsel %vm1012, %v3121, 0
      %v3142 = vsel %vm1012, %v3123, 0
      %v3145 = vsel %vm1012, %v3125, 0
      %v3148 = vsel %vm1012, %v3127, 0
      %v3151 = vsel %vm1012, %v3129, 0
      %v3154 = vsel %vm1012, %v3131, 0
      %3156 = vmatprep.subr.bf16.mxu0 0
      %3157 = vmatpush1.bf16.xpose.msra.mxu0 0
      %3158 = vmatprep.subr.bf16.mxu0 0
      %3159 = vmatpush1.bf16.xpose.msra.mxu0 0
      %3160 = vmatprep.subr.bf16.mxu0 0
      %3161 = vmatpush1.bf16.xpose.msra.mxu0 0
      %3162 = vmatprep.subr.bf16.mxu0 0
      %3163 = vmatpush1.bf16.xpose.msra.mxu0 0
      %3164 = vmatprep.subr.bf16.mxu0 0
      %3165 = vmatpush1.bf16.xpose.msra.mxu0 %v3154
      %3166 = vmatprep.subr.bf16.mxu0 0
      %3167 = vmatpush1.bf16.xpose.msra.mxu0 %v3151
      %3168 = vmatprep.subr.bf16.mxu0 0
      %3169 = vmatpush1.bf16.xpose.msra.mxu0 %v3148
      %3170 = vmatprep.subr.bf16.mxu0 0
      %3171 = vmatpush1.bf16.xpose.msra.mxu0 %v3145
      %3172 = vmatprep.subr.bf16.mxu0 0
      %3173 = vmatpush2.bf16.xpose.msra.mxu0 0
      %3174 = vmatprep.subr.bf16.mxu0 0
      %3175 = vmatpush2.bf16.xpose.msra.mxu0 0
      %3176 = vmatprep.subr.bf16.mxu0 0
      %3177 = vmatpush2.bf16.xpose.msra.mxu0 0
      %3178 = vmatprep.subr.bf16.mxu0 0
      %3179 = vmatpush2.bf16.xpose.msra.mxu0 0
      %3180 = vmatprep.subr.bf16.mxu0 0
      %3181 = vmatpush2.bf16.xpose.msra.mxu0 0
      %3182 = vmatprep.subr.bf16.mxu0 0
      %3183 = vmatpush2.bf16.xpose.msra.mxu0 0
      %3184 = vmatprep.subr.bf16.mxu0 0
      %3185 = vmatpush2.bf16.xpose.msra.mxu0 0
      %3186 = vmatprep.subr.bf16.mxu0 0
      %3187 = vmatpush2.bf16.xpose.msra.mxu0 0
      %3188 = vmatprep.mubr.bf16.mxu0 0
      %3189 = vmatmul.mubr.bf16.gmra.mxu0 %v3133
      %v3190 = vpop.f32.mrf.mxu0
      %v3191 = vadd.f32 %v3003, %v3190
      %v3192 = vpop.f32.mrf.mxu0
      %v3193 = vpop.f32.mrf.mxu0
      %v3194 = vadd.f32 %v3004, %v3193
      %v3195 = vpop.f32.mrf.mxu0
      %3196 = vmatprep.mubr.bf16.mxu0 0
      %3197 = vmatmul.mubr.bf16.gmra.mxu0 %v3136
      %v3198 = vpop.f32.mrf.mxu0
      %v3199 = vadd.f32 %v3005, %v3198
      %v3200 = vpop.f32.mrf.mxu0
      %v3201 = vpop.f32.mrf.mxu0
      %v3202 = vadd.f32 %v3006, %v3201
      %v3203 = vpop.f32.mrf.mxu0
      %3204 = vmatprep.mubr.bf16.mxu0 0
      %3205 = vmatmul.mubr.bf16.gmra.mxu0 %v3139
      %v3206 = vpop.f32.mrf.mxu0
      %v3207 = vadd.f32 %v3007, %v3206
      %v3208 = vpop.f32.mrf.mxu0
      %v3209 = vpop.f32.mrf.mxu0
      %v3210 = vadd.f32 %v3008, %v3209
      %v3211 = vpop.f32.mrf.mxu0
      %3212 = vmatprep.mubr.bf16.mxu0 0
      %3213 = vmatmul.mubr.bf16.gmra.mxu0 %v3142
      %v3214 = vpop.f32.mrf.mxu0
      %v3215 = vadd.f32 %v3009, %v3214
      %v3216 = vpop.f32.mrf.mxu0
      %v3217 = vpop.f32.mrf.mxu0
      %v3218 = vadd.f32 %v3010, %v3217
      %v3219 = vpop.f32.mrf.mxu0
      %3220 = vdwg.mxu0
      %v3221 = vld [vmem:[%s547] sm:$0xff]
      %v3222 = vld [vmem:[%s547 + $0x8] sm:$0xff]
      %v3223 = vld [vmem:[%s547 + $0x10] sm:$0xff]
      %v3224 = vld [vmem:[%s547 + $0x18] sm:$0xff]
      %v3225 = vld [vmem:[%s547 + $0x20] sm:$0xff]
      %v3226 = vld [vmem:[%s547 + $0x28] sm:$0xff]
      %v3227 = vld [vmem:[%s547 + $0x30] sm:$0xff]
      %v3228 = vld [vmem:[%s547 + $0x38] sm:$0xff]
      %v3229 = vld [vmem:[%s547 + $0x40] sm:$0xff]
      %v3230 = vld [vmem:[%s547 + $0x48] sm:$0xff]
      %v3231 = vld [vmem:[%s547 + $0x50] sm:$0xff]
      %v3232 = vld [vmem:[%s547 + $0x58] sm:$0xff]
      %v3233 = vld [vmem:[%s547 + $0x60] sm:$0xff]
      %v3234 = vld [vmem:[%s547 + $0x68] sm:$0xff]
      %v3235 = vld [vmem:[%s547 + $0x70] sm:$0xff]
      %v3236 = vld [vmem:[%s547 + $0x78] sm:$0xff]
      %v3237 = vadd.f32 %v3086, %v3221
      %v3238 = vadd.f32 %v3089, %v3222
      %v3239 = vadd.f32 %v3094, %v3223
      %v3240 = vadd.f32 %v3097, %v3224
      %v3241 = vadd.f32 %v3102, %v3225
      %v3242 = vadd.f32 %v3105, %v3226
      %v3243 = vadd.f32 %v3110, %v3227
      %v3244 = vadd.f32 %v3113, %v3228
      %v3245 = vadd.f32 %v3191, %v3229
      %v3246 = vadd.f32 %v3194, %v3230
      %v3247 = vadd.f32 %v3199, %v3231
      %v3248 = vadd.f32 %v3202, %v3232
      %v3249 = vadd.f32 %v3207, %v3233
      %v3250 = vadd.f32 %v3210, %v3234
      %v3251 = vadd.f32 %v3215, %v3235
      %v3252 = vadd.f32 %v3218, %v3236
      %v3253 = vsel %vm1235, %v3237, -inf
      %3254 = vmax.xlane.f32.xlu0 %v3253
      %v3255 = vpop.xlane.xlu0 %3254
      %v3256 = vsel %vm1235, %v3238, -inf
      %3257 = vmax.xlane.f32.xlu0 %v3256
      %v3258 = vpop.xlane.xlu0 %3257
      %v3259 = vsel %vm1235, %v3239, -inf
      %3260 = vmax.xlane.f32.xlu0 %v3259
      %v3261 = vpop.xlane.xlu0 %3260
      %v3262 = vsel %vm1235, %v3240, -inf
      %3263 = vmax.xlane.f32.xlu0 %v3262
      %v3264 = vpop.xlane.xlu0 %3263
      %v3265 = vsel %vm1235, %v3241, -inf
      %3266 = vmax.xlane.f32.xlu0 %v3265
      %v3267 = vpop.xlane.xlu0 %3266
      %v3268 = vsel %vm1235, %v3242, -inf
      %3269 = vmax.xlane.f32.xlu0 %v3268
      %v3270 = vpop.xlane.xlu0 %3269
      %v3271 = vsel %vm1235, %v3243, -inf
      %3272 = vmax.xlane.f32.xlu0 %v3271
      %v3273 = vpop.xlane.xlu0 %3272
      %v3274 = vsel %vm1235, %v3244, -inf
      %3275 = vmax.xlane.f32.xlu0 %v3274
      %v3276 = vpop.xlane.xlu0 %3275
      %v3277 = vsel %vm1235, %v3245, -inf
      %3278 = vmax.xlane.f32.xlu0 %v3277
      %v3279 = vpop.xlane.xlu0 %3278
      %v3280 = vsel %vm1235, %v3246, -inf
      %3281 = vmax.xlane.f32.xlu0 %v3280
      %v3282 = vpop.xlane.xlu0 %3281
      %v3283 = vsel %vm1235, %v3247, -inf
      %3284 = vmax.xlane.f32.xlu0 %v3283
      %v3285 = vpop.xlane.xlu0 %3284
      %v3286 = vsel %vm1235, %v3248, -inf
      %3287 = vmax.xlane.f32.xlu0 %v3286
      %v3288 = vpop.xlane.xlu0 %3287
      %v3289 = vsel %vm1235, %v3249, -inf
      %3290 = vmax.xlane.f32.xlu0 %v3289
      %v3291 = vpop.xlane.xlu0 %3290
      %v3292 = vsel %vm1235, %v3250, -inf
      %3293 = vmax.xlane.f32.xlu0 %v3292
      %v3294 = vpop.xlane.xlu0 %3293
      %v3295 = vsel %vm1235, %v3251, -inf
      %3296 = vmax.xlane.f32.xlu0 %v3295
      %v3297 = vpop.xlane.xlu0 %3296
      %v3298 = vsel %vm1235, %v3252, -inf
      %3299 = vmax.xlane.f32.xlu0 %v3298
      %v3300 = vpop.xlane.xlu0 %3299
      %v3301 = vsub.f32 %v3237, %v3255
      %v3302 = vsub.f32 %v3238, %v3258
      %v3303 = vsub.f32 %v3239, %v3261
      %v3304 = vsub.f32 %v3240, %v3264
      %v3305 = vsub.f32 %v3241, %v3267
      %v3306 = vsub.f32 %v3242, %v3270
      %v3307 = vsub.f32 %v3243, %v3273
      %v3308 = vsub.f32 %v3244, %v3276
      %v3309 = vsub.f32 %v3245, %v3279
      %v3310 = vsub.f32 %v3246, %v3282
      %v3311 = vsub.f32 %v3247, %v3285
      %v3312 = vsub.f32 %v3248, %v3288
      %v3313 = vsub.f32 %v3249, %v3291
      %v3314 = vsub.f32 %v3250, %v3294
      %v3315 = vsub.f32 %v3251, %v3297
      %v3316 = vsub.f32 %v3252, %v3300
      %v3317 = vmul.f32 %v3301, 1.442695
      %v3318 = vpow.pop %v3317
      %v3319 = vmul.f32 %v3302, 1.442695
      %v3320 = vpow.pop %v3319
      %v3321 = vmul.f32 %v3303, 1.442695
      %v3322 = vpow.pop %v3321
      %v3323 = vmul.f32 %v3304, 1.442695
      %v3324 = vpow.pop %v3323
      %v3325 = vmul.f32 %v3305, 1.442695
      %v3326 = vpow.pop %v3325
      %v3327 = vmul.f32 %v3306, 1.442695
      %v3328 = vpow.pop %v3327
      %v3329 = vmul.f32 %v3307, 1.442695
      %v3330 = vpow.pop %v3329
      %v3331 = vmul.f32 %v3308, 1.442695
      %v3332 = vpow.pop %v3331
      %v3333 = vmul.f32 %v3309, 1.442695
      %v3334 = vpow.pop %v3333
      %v3335 = vmul.f32 %v3310, 1.442695
      %v3336 = vpow.pop %v3335
      %v3337 = vmul.f32 %v3311, 1.442695
      %v3338 = vpow.pop %v3337
      %v3339 = vmul.f32 %v3312, 1.442695
      %v3340 = vpow.pop %v3339
      %v3341 = vmul.f32 %v3313, 1.442695
      %v3342 = vpow.pop %v3341
      %v3343 = vmul.f32 %v3314, 1.442695
      %v3344 = vpow.pop %v3343
      %v3345 = vmul.f32 %v3315, 1.442695
      %v3346 = vpow.pop %v3345
      %v3347 = vmul.f32 %v3316, 1.442695
      %v3348 = vpow.pop %v3347
      %v3349 = vsel %vm1235, %v3318, 0.0
      %3350 = vadd.xlane.f32.xlu0 %v3349
      %v3351 = vpop.xlane.xlu0 %3350
      %v3352 = vsel %vm1235, %v3320, 0.0
      %3353 = vadd.xlane.f32.xlu0 %v3352
      %v3354 = vpop.xlane.xlu0 %3353
      %v3355 = vsel %vm1235, %v3322, 0.0
      %3356 = vadd.xlane.f32.xlu0 %v3355
      %v3357 = vpop.xlane.xlu0 %3356
      %v3358 = vsel %vm1235, %v3324, 0.0
      %3359 = vadd.xlane.f32.xlu0 %v3358
      %v3360 = vpop.xlane.xlu0 %3359
      %v3361 = vsel %vm1235, %v3326, 0.0
      %3362 = vadd.xlane.f32.xlu0 %v3361
      %v3363 = vpop.xlane.xlu0 %3362
      %v3364 = vsel %vm1235, %v3328, 0.0
      %3365 = vadd.xlane.f32.xlu0 %v3364
      %v3366 = vpop.xlane.xlu0 %3365
      %v3367 = vsel %vm1235, %v3330, 0.0
      %3368 = vadd.xlane.f32.xlu0 %v3367
      %v3369 = vpop.xlane.xlu0 %3368
      %v3370 = vsel %vm1235, %v3332, 0.0
      %3371 = vadd.xlane.f32.xlu0 %v3370
      %v3372 = vpop.xlane.xlu0 %3371
      %v3373 = vsel %vm1235, %v3334, 0.0
      %3374 = vadd.xlane.f32.xlu0 %v3373
      %v3375 = vpop.xlane.xlu0 %3374
      %v3376 = vsel %vm1235, %v3336, 0.0
      %3377 = vadd.xlane.f32.xlu0 %v3376
      %v3378 = vpop.xlane.xlu0 %3377
      %v3379 = vsel %vm1235, %v3338, 0.0
      %3380 = vadd.xlane.f32.xlu0 %v3379
      %v3381 = vpop.xlane.xlu0 %3380
      %v3382 = vsel %vm1235, %v3340, 0.0
      %3383 = vadd.xlane.f32.xlu0 %v3382
      %v3384 = vpop.xlane.xlu0 %3383
      %v3385 = vsel %vm1235, %v3342, 0.0
      %3386 = vadd.xlane.f32.xlu0 %v3385
      %v3387 = vpop.xlane.xlu0 %3386
      %v3388 = vsel %vm1235, %v3344, 0.0
      %3389 = vadd.xlane.f32.xlu0 %v3388
      %v3390 = vpop.xlane.xlu0 %3389
      %v3391 = vsel %vm1235, %v3346, 0.0
      %3392 = vadd.xlane.f32.xlu0 %v3391
      %v3393 = vpop.xlane.xlu0 %3392
      %v3394 = vsel %vm1235, %v3348, 0.0
      %3395 = vadd.xlane.f32.xlu0 %v3394
      %v3396 = vpop.xlane.xlu0 %3395
      %v3397 = vrcp.pop %v3351
      %v3398 = vrcp.pop %v3354
      %v3399 = vrcp.pop %v3357
      %v3400 = vrcp.pop %v3360
      %v3401 = vrcp.pop %v3363
      %v3402 = vrcp.pop %v3366
      %v3403 = vrcp.pop %v3369
      %v3404 = vrcp.pop %v3372
      %v3405 = vrcp.pop %v3375
      %v3406 = vrcp.pop %v3378
      %v3407 = vrcp.pop %v3381
      %v3408 = vrcp.pop %v3384
      %v3409 = vrcp.pop %v3387
      %v3410 = vrcp.pop %v3390
      %v3411 = vrcp.pop %v3393
      %v3412 = vrcp.pop %v3396
      %v3413 = vmul.f32 %v3318, %v3397
      %v3414 = vmul.f32 %v3320, %v3398
      %v3415 = vmul.f32 %v3322, %v3399
      %v3416 = vmul.f32 %v3324, %v3400
      %v3417 = vmul.f32 %v3326, %v3401
      %v3418 = vmul.f32 %v3328, %v3402
      %v3419 = vmul.f32 %v3330, %v3403
      %v3420 = vmul.f32 %v3332, %v3404
      %v3421 = vmul.f32 %v3334, %v3405
      %v3422 = vmul.f32 %v3336, %v3406
      %v3423 = vmul.f32 %v3338, %v3407
      %v3424 = vmul.f32 %v3340, %v3408
      %v3425 = vmul.f32 %v3342, %v3409
      %v3426 = vmul.f32 %v3344, %v3410
      %v3427 = vmul.f32 %v3346, %v3411
      %v3428 = vmul.f32 %v3348, %v3412
      %v3429 = vpack.c.bf16 %v3414, %v3413
      %v3430 = vpack.c.bf16 %v3416, %v3415
      %v3431 = vpack.c.bf16 %v3418, %v3417
      %v3432 = vpack.c.bf16 %v3420, %v3419
      %v3433 = vpack.c.bf16 %v3422, %v3421
      %v3434 = vpack.c.bf16 %v3424, %v3423
      %v3435 = vpack.c.bf16 %v3426, %v3425
      %v3436 = vpack.c.bf16 %v3428, %v3427
      %3437 = vrot.lane.b32.xlu0 %v984, 40
      %v3438 = vpop.permute.xlu0 %3437
      %3439 = vrot.lane.b32.xlu0 %v985, 40
      %v3440 = vpop.permute.xlu0 %3439
      %3441 = vrot.lane.b32.xlu0 %v986, 40
      %v3442 = vpop.permute.xlu0 %3441
      %3443 = vrot.lane.b32.xlu0 %v987, 40
      %v3444 = vpop.permute.xlu0 %3443
      %v3450 = vsel %vm1235, %v3429, 0
      %v3453 = vsel %vm1235, %v3430, 0
      %v3456 = vsel %vm1235, %v3431, 0
      %v3459 = vsel %vm1235, %v3432, 0
      %3461 = vmatprep.subr.bf16.mxu0 0
      %3462 = vmatpush1.bf16.msra.mxu0 0
      %3463 = vmatprep.subr.bf16.mxu0 0
      %3464 = vmatpush1.bf16.msra.mxu0 0
      %3465 = vmatprep.subr.bf16.mxu0 0
      %3466 = vmatpush1.bf16.msra.mxu0 0
      %3467 = vmatprep.subr.bf16.mxu0 0
      %3468 = vmatpush1.bf16.msra.mxu0 0
      %3469 = vmatprep.subr.bf16.mxu0 0
      %3470 = vmatpush1.bf16.msra.mxu0 %v3444
      %3471 = vmatprep.subr.bf16.mxu0 0
      %3472 = vmatpush1.bf16.msra.mxu0 %v3442
      %3473 = vmatprep.subr.bf16.mxu0 0
      %3474 = vmatpush1.bf16.msra.mxu0 %v3440
      %3475 = vmatprep.subr.bf16.mxu0 0
      %3476 = vmatpush1.bf16.msra.mxu0 %v3438
      %3477 = vmatprep.subr.bf16.mxu0 0
      %3478 = vmatpush2.bf16.msra.mxu0 0
      %3479 = vmatprep.subr.bf16.mxu0 0
      %3480 = vmatpush2.bf16.msra.mxu0 0
      %3481 = vmatprep.subr.bf16.mxu0 0
      %3482 = vmatpush2.bf16.msra.mxu0 0
      %3483 = vmatprep.subr.bf16.mxu0 0
      %3484 = vmatpush2.bf16.msra.mxu0 0
      %3485 = vmatprep.subr.bf16.mxu0 0
      %3486 = vmatpush2.bf16.msra.mxu0 0
      %3487 = vmatprep.subr.bf16.mxu0 0
      %3488 = vmatpush2.bf16.msra.mxu0 0
      %3489 = vmatprep.subr.bf16.mxu0 0
      %3490 = vmatpush2.bf16.msra.mxu0 0
      %3491 = vmatprep.subr.bf16.mxu0 0
      %3492 = vmatpush2.bf16.msra.mxu0 0
      %3493 = vmatprep.mubr.bf16.mxu0 0
      %3494 = vmatmul.mubr.bf16.gmra.mxu0 %v3450
      %v3495 = vpop.f32.mrf.mxu0
      %v3496 = vadd.f32 0.0, %v3495
      %v3497 = vpop.f32.mrf.mxu0
      %v3498 = vpop.f32.mrf.mxu0
      %v3499 = vadd.f32 0.0, %v3498
      %v3500 = vpop.f32.mrf.mxu0
      %3501 = vmatprep.mubr.bf16.mxu0 0
      %3502 = vmatmul.mubr.bf16.gmra.mxu0 %v3453
      %v3503 = vpop.f32.mrf.mxu0
      %v3504 = vadd.f32 0.0, %v3503
      %v3505 = vpop.f32.mrf.mxu0
      %v3506 = vpop.f32.mrf.mxu0
      %v3507 = vadd.f32 0.0, %v3506
      %v3508 = vpop.f32.mrf.mxu0
      %3509 = vmatprep.mubr.bf16.mxu0 0
      %3510 = vmatmul.mubr.bf16.gmra.mxu0 %v3456
      %v3511 = vpop.f32.mrf.mxu0
      %v3512 = vadd.f32 0.0, %v3511
      %v3513 = vpop.f32.mrf.mxu0
      %v3514 = vpop.f32.mrf.mxu0
      %v3515 = vadd.f32 0.0, %v3514
      %v3516 = vpop.f32.mrf.mxu0
      %3517 = vmatprep.mubr.bf16.mxu0 0
      %3518 = vmatmul.mubr.bf16.gmra.mxu0 %v3459
      %v3519 = vpop.f32.mrf.mxu0
      %v3520 = vadd.f32 0.0, %v3519
      %v3521 = vpop.f32.mrf.mxu0
      %v3522 = vpop.f32.mrf.mxu0
      %v3523 = vadd.f32 0.0, %v3522
      %v3524 = vpop.f32.mrf.mxu0
      %3525 = vdwg.mxu0
      %3526 = vrot.lane.b32.xlu0 %v988, 40
      %v3527 = vpop.permute.xlu0 %3526
      %3528 = vrot.lane.b32.xlu0 %v989, 40
      %v3529 = vpop.permute.xlu0 %3528
      %3530 = vrot.lane.b32.xlu0 %v990, 40
      %v3531 = vpop.permute.xlu0 %3530
      %3532 = vrot.lane.b32.xlu0 %v991, 40
      %v3533 = vpop.permute.xlu0 %3532
      %v3539 = vsel %vm1235, %v3433, 0
      %v3542 = vsel %vm1235, %v3434, 0
      %v3545 = vsel %vm1235, %v3435, 0
      %v3548 = vsel %vm1235, %v3436, 0
      %3550 = vmatprep.subr.bf16.mxu0 0
      %3551 = vmatpush1.bf16.msra.mxu0 0
      %3552 = vmatprep.subr.bf16.mxu0 0
      %3553 = vmatpush1.bf16.msra.mxu0 0
      %3554 = vmatprep.subr.bf16.mxu0 0
      %3555 = vmatpush1.bf16.msra.mxu0 0
      %3556 = vmatprep.subr.bf16.mxu0 0
      %3557 = vmatpush1.bf16.msra.mxu0 0
      %3558 = vmatprep.subr.bf16.mxu0 0
      %3559 = vmatpush1.bf16.msra.mxu0 %v3533
      %3560 = vmatprep.subr.bf16.mxu0 0
      %3561 = vmatpush1.bf16.msra.mxu0 %v3531
      %3562 = vmatprep.subr.bf16.mxu0 0
      %3563 = vmatpush1.bf16.msra.mxu0 %v3529
      %3564 = vmatprep.subr.bf16.mxu0 0
      %3565 = vmatpush1.bf16.msra.mxu0 %v3527
      %3566 = vmatprep.subr.bf16.mxu0 0
      %3567 = vmatpush2.bf16.msra.mxu0 0
      %3568 = vmatprep.subr.bf16.mxu0 0
      %3569 = vmatpush2.bf16.msra.mxu0 0
      %3570 = vmatprep.subr.bf16.mxu0 0
      %3571 = vmatpush2.bf16.msra.mxu0 0
      %3572 = vmatprep.subr.bf16.mxu0 0
      %3573 = vmatpush2.bf16.msra.mxu0 0
      %3574 = vmatprep.subr.bf16.mxu0 0
      %3575 = vmatpush2.bf16.msra.mxu0 0
      %3576 = vmatprep.subr.bf16.mxu0 0
      %3577 = vmatpush2.bf16.msra.mxu0 0
      %3578 = vmatprep.subr.bf16.mxu0 0
      %3579 = vmatpush2.bf16.msra.mxu0 0
      %3580 = vmatprep.subr.bf16.mxu0 0
      %3581 = vmatpush2.bf16.msra.mxu0 0
      %3582 = vmatprep.mubr.bf16.mxu0 0
      %3583 = vmatmul.mubr.bf16.gmra.mxu0 %v3539
      %v3584 = vpop.f32.mrf.mxu0
      %v3585 = vadd.f32 0.0, %v3584
      %v3586 = vpop.f32.mrf.mxu0
      %v3587 = vpop.f32.mrf.mxu0
      %v3588 = vadd.f32 0.0, %v3587
      %v3589 = vpop.f32.mrf.mxu0
      %3590 = vmatprep.mubr.bf16.mxu0 0
      %3591 = vmatmul.mubr.bf16.gmra.mxu0 %v3542
      %v3592 = vpop.f32.mrf.mxu0
      %v3593 = vadd.f32 0.0, %v3592
      %v3594 = vpop.f32.mrf.mxu0
      %v3595 = vpop.f32.mrf.mxu0
      %v3596 = vadd.f32 0.0, %v3595
      %v3597 = vpop.f32.mrf.mxu0
      %3598 = vmatprep.mubr.bf16.mxu0 0
      %3599 = vmatmul.mubr.bf16.gmra.mxu0 %v3545
      %v3600 = vpop.f32.mrf.mxu0
      %v3601 = vadd.f32 0.0, %v3600
      %v3602 = vpop.f32.mrf.mxu0
      %v3603 = vpop.f32.mrf.mxu0
      %v3604 = vadd.f32 0.0, %v3603
      %v3605 = vpop.f32.mrf.mxu0
      %3606 = vmatprep.mubr.bf16.mxu0 0
      %3607 = vmatmul.mubr.bf16.gmra.mxu0 %v3548
      %v3608 = vpop.f32.mrf.mxu0
      %v3609 = vadd.f32 0.0, %v3608
      %v3610 = vpop.f32.mrf.mxu0
      %v3611 = vpop.f32.mrf.mxu0
      %v3612 = vadd.f32 0.0, %v3611
      %v3613 = vpop.f32.mrf.mxu0
      %3614 = vdwg.mxu0
      %3631 = vrot.lane.b32.xlu0 %v3496, 24
      %v3632 = vpop.permute.xlu0 %3631
      %3633 = vrot.lane.b32.xlu0 %v3499, 24
      %v3634 = vpop.permute.xlu0 %3633
      %3635 = vrot.lane.b32.xlu0 %v3504, 24
      %v3636 = vpop.permute.xlu0 %3635
      %3637 = vrot.lane.b32.xlu0 %v3507, 24
      %v3638 = vpop.permute.xlu0 %3637
      %3639 = vrot.lane.b32.xlu0 %v3512, 24
      %v3640 = vpop.permute.xlu0 %3639
      %3641 = vrot.lane.b32.xlu0 %v3515, 24
      %v3642 = vpop.permute.xlu0 %3641
      %3643 = vrot.lane.b32.xlu0 %v3520, 24
      %v3644 = vpop.permute.xlu0 %3643
      %3645 = vrot.lane.b32.xlu0 %v3523, 24
      %v3646 = vpop.permute.xlu0 %3645
      %3647 = vrot.lane.b32.xlu0 %v3585, 24
      %v3648 = vpop.permute.xlu0 %3647
      %3649 = vrot.lane.b32.xlu0 %v3588, 24
      %v3650 = vpop.permute.xlu0 %3649
      %3651 = vrot.lane.b32.xlu0 %v3593, 24
      %v3652 = vpop.permute.xlu0 %3651
      %3653 = vrot.lane.b32.xlu0 %v3596, 24
      %v3654 = vpop.permute.xlu0 %3653
      %3655 = vrot.lane.b32.xlu0 %v3601, 24
      %v3656 = vpop.permute.xlu0 %3655
      %3657 = vrot.lane.b32.xlu0 %v3604, 24
      %v3658 = vpop.permute.xlu0 %3657
      %3659 = vrot.lane.b32.xlu0 %v3609, 24
      %v3660 = vpop.permute.xlu0 %3659
      %3661 = vrot.lane.b32.xlu0 %v3612, 24
      %v3662 = vpop.permute.xlu0 %3661
      %vm3679 = vcmask 261312
      %3680 = vst.msk [vmem:[#allocation2] sm:$0xff] %vm3679, %v3632
      %3681 = vst.msk [vmem:[#allocation2 + $0x8] sm:$0xff] %vm3679, %v3634
      %3682 = vst.msk [vmem:[#allocation2 + $0x10] sm:$0xff] %vm3679, %v3636
      %3683 = vst.msk [vmem:[#allocation2 + $0x18] sm:$0xff] %vm3679, %v3638
      %3684 = vst.msk [vmem:[#allocation2 + $0x20] sm:$0xff] %vm3679, %v3640
      %3685 = vst.msk [vmem:[#allocation2 + $0x28] sm:$0xff] %vm3679, %v3642
      %3686 = vst.msk [vmem:[#allocation2 + $0x30] sm:$0xff] %vm3679, %v3644
      %3687 = vst.msk [vmem:[#allocation2 + $0x38] sm:$0xff] %vm3679, %v3646
      %3688 = vst.msk [vmem:[#allocation2 + $0x40] sm:$0xff] %vm3679, %v3648
      %3689 = vst.msk [vmem:[#allocation2 + $0x48] sm:$0xff] %vm3679, %v3650
      %3690 = vst.msk [vmem:[#allocation2 + $0x50] sm:$0xff] %vm3679, %v3652
      %3691 = vst.msk [vmem:[#allocation2 + $0x58] sm:$0xff] %vm3679, %v3654
      %3692 = vst.msk [vmem:[#allocation2 + $0x60] sm:$0xff] %vm3679, %v3656
      %3693 = vst.msk [vmem:[#allocation2 + $0x68] sm:$0xff] %vm3679, %v3658
      %3694 = vst.msk [vmem:[#allocation2 + $0x70] sm:$0xff] %vm3679, %v3660
      %3695 = vst.msk [vmem:[#allocation2 + $0x78] sm:$0xff] %vm3679, %v3662
      %v3696 = vld [vmem:[#allocation2] sm:$0xff]
      %v3697 = vld [vmem:[#allocation2 + $0x8] sm:$0xff]
      %v3698 = vld [vmem:[#allocation2 + $0x10] sm:$0xff]
      %v3699 = vld [vmem:[#allocation2 + $0x18] sm:$0xff]
      %v3700 = vld [vmem:[#allocation2 + $0x20] sm:$0xff]
      %v3701 = vld [vmem:[#allocation2 + $0x28] sm:$0xff]
      %v3702 = vld [vmem:[#allocation2 + $0x30] sm:$0xff]
      %v3703 = vld [vmem:[#allocation2 + $0x38] sm:$0xff]
      %v3704 = vld [vmem:[#allocation2 + $0x40] sm:$0xff]
      %v3705 = vld [vmem:[#allocation2 + $0x48] sm:$0xff]
      %v3706 = vld [vmem:[#allocation2 + $0x50] sm:$0xff]
      %v3707 = vld [vmem:[#allocation2 + $0x58] sm:$0xff]
      %v3708 = vld [vmem:[#allocation2 + $0x60] sm:$0xff]
      %v3709 = vld [vmem:[#allocation2 + $0x68] sm:$0xff]
      %v3710 = vld [vmem:[#allocation2 + $0x70] sm:$0xff]
      %v3711 = vld [vmem:[#allocation2 + $0x78] sm:$0xff]
      %v3712 = vpack.c.bf16 %v3697, %v3696
      %v3713 = vpack.c.bf16 %v3699, %v3698
      %v3714 = vpack.c.bf16 %v3701, %v3700
      %v3715 = vpack.c.bf16 %v3703, %v3702
      %v3716 = vpack.c.bf16 %v3705, %v3704
      %v3717 = vpack.c.bf16 %v3707, %v3706
      %v3718 = vpack.c.bf16 %v3709, %v3708
      %v3719 = vpack.c.bf16 %v3711, %v3710
      %v3720 = vld [vmem:[%s6] sm:$0xf]
      %v3721 = vld [vmem:[%s6 + $0x4] sm:$0xf]
      %v3722 = vld [vmem:[%s6 + $0x8] sm:$0xf]
      %v3723 = vld [vmem:[%s6 + $0xc] sm:$0xf]
      %v3724 = vld [vmem:[%s7] sm:$0x1]
      %v3726 = vlaneseq
      %v3727 = vshrl.u32 %v3726, 7
      %v3728 = vsub.s32 0, %v3727
      %v3729 = vrot.slane %v3724, %v3728
      %v3735 = vunpack.c.l.b16 %v3720
      %v3736 = vunpack.c.l.b16 %v3721
      %v3737 = vunpack.c.l.b16 %v3722
      %v3738 = vunpack.c.l.b16 %v3723
      %v3739 = vpack.c.b16 %v3736, %v3735
      %v3740 = vpack.c.b16 %v3738, %v3737
      %v3744 = vsel %vm576, %v3712, 0
      %v3747 = vsel %vm576, %v3713, 0
      %v3750 = vsel %vm576, %v3714, 0
      %v3753 = vsel %vm576, %v3715, 0
      %v3756 = vsel %vm576, %v3716, 0
      %v3759 = vsel %vm576, %v3717, 0
      %v3762 = vsel %vm576, %v3718, 0
      %v3765 = vsel %vm576, %v3719, 0
      %3767 = vmatprep.subr.bf16.mxu0 0
      %3768 = vmatpush1.bf16.msra.mxu0 0
      %3769 = vmatprep.subr.bf16.mxu0 0
      %3770 = vmatpush1.bf16.msra.mxu0 0
      %3771 = vmatprep.subr.bf16.mxu0 0
      %3772 = vmatpush1.bf16.msra.mxu0 0
      %3773 = vmatprep.subr.bf16.mxu0 0
      %3774 = vmatpush1.bf16.msra.mxu0 0
      %3775 = vmatprep.subr.bf16.mxu0 0
      %3776 = vmatpush1.bf16.msra.mxu0 0
      %3777 = vmatprep.subr.bf16.mxu0 0
      %3778 = vmatpush1.bf16.msra.mxu0 0
      %3779 = vmatprep.subr.bf16.mxu0 0
      %3780 = vmatpush1.bf16.msra.mxu0 %v3740
      %3781 = vmatprep.subr.bf16.mxu0 0
      %3782 = vmatpush1.bf16.msra.mxu0 %v3739
      %3783 = vmatprep.subr.bf16.mxu0 0
      %3784 = vmatpush2.bf16.msra.mxu0 0
      %3785 = vmatprep.subr.bf16.mxu0 0
      %3786 = vmatpush2.bf16.msra.mxu0 0
      %3787 = vmatprep.subr.bf16.mxu0 0
      %3788 = vmatpush2.bf16.msra.mxu0 0
      %3789 = vmatprep.subr.bf16.mxu0 0
      %3790 = vmatpush2.bf16.msra.mxu0 0
      %3791 = vmatprep.subr.bf16.mxu0 0
      %3792 = vmatpush2.bf16.msra.mxu0 0
      %3793 = vmatprep.subr.bf16.mxu0 0
      %3794 = vmatpush2.bf16.msra.mxu0 0
      %3795 = vmatprep.subr.bf16.mxu0 0
      %3796 = vmatpush2.bf16.msra.mxu0 0
      %3797 = vmatprep.subr.bf16.mxu0 0
      %3798 = vmatpush2.bf16.msra.mxu0 0
      %3799 = vmatprep.mubr.bf16.mxu0 0
      %3800 = vmatmul.mubr.bf16.gmra.mxu0 %v3744
      %v3801 = vpop.f32.mrf.mxu0
      %v3802 = vadd.f32 %v3729, %v3801
      %v3803 = vpop.f32.mrf.mxu0
      %v3804 = vpop.f32.mrf.mxu0
      %v3805 = vadd.f32 %v3729, %v3804
      %v3806 = vpop.f32.mrf.mxu0
      %3807 = vmatprep.mubr.bf16.mxu0 0
      %3808 = vmatmul.mubr.bf16.gmra.mxu0 %v3747
      %v3809 = vpop.f32.mrf.mxu0
      %v3810 = vadd.f32 %v3729, %v3809
      %v3811 = vpop.f32.mrf.mxu0
      %v3812 = vpop.f32.mrf.mxu0
      %v3813 = vadd.f32 %v3729, %v3812
      %v3814 = vpop.f32.mrf.mxu0
      %3815 = vmatprep.mubr.bf16.mxu0 0
      %3816 = vmatmul.mubr.bf16.gmra.mxu0 %v3750
      %v3817 = vpop.f32.mrf.mxu0
      %v3818 = vadd.f32 %v3729, %v3817
      %v3819 = vpop.f32.mrf.mxu0
      %v3820 = vpop.f32.mrf.mxu0
      %v3821 = vadd.f32 %v3729, %v3820
      %v3822 = vpop.f32.mrf.mxu0
      %3823 = vmatprep.mubr.bf16.mxu0 0
      %3824 = vmatmul.mubr.bf16.gmra.mxu0 %v3753
      %v3825 = vpop.f32.mrf.mxu0
      %v3826 = vadd.f32 %v3729, %v3825
      %v3827 = vpop.f32.mrf.mxu0
      %v3828 = vpop.f32.mrf.mxu0
      %v3829 = vadd.f32 %v3729, %v3828
      %v3830 = vpop.f32.mrf.mxu0
      %3831 = vmatprep.mubr.bf16.mxu0 0
      %3832 = vmatmul.mubr.bf16.gmra.mxu0 %v3756
      %v3833 = vpop.f32.mrf.mxu0
      %v3834 = vadd.f32 %v3729, %v3833
      %v3835 = vpop.f32.mrf.mxu0
      %v3836 = vpop.f32.mrf.mxu0
      %v3837 = vadd.f32 %v3729, %v3836
      %v3838 = vpop.f32.mrf.mxu0
      %3839 = vmatprep.mubr.bf16.mxu0 0
      %3840 = vmatmul.mubr.bf16.gmra.mxu0 %v3759
      %v3841 = vpop.f32.mrf.mxu0
      %v3842 = vadd.f32 %v3729, %v3841
      %v3843 = vpop.f32.mrf.mxu0
      %v3844 = vpop.f32.mrf.mxu0
      %v3845 = vadd.f32 %v3729, %v3844
      %v3846 = vpop.f32.mrf.mxu0
      %3847 = vmatprep.mubr.bf16.mxu0 0
      %3848 = vmatmul.mubr.bf16.gmra.mxu0 %v3762
      %v3849 = vpop.f32.mrf.mxu0
      %v3850 = vadd.f32 %v3729, %v3849
      %v3851 = vpop.f32.mrf.mxu0
      %v3852 = vpop.f32.mrf.mxu0
      %v3853 = vadd.f32 %v3729, %v3852
      %v3854 = vpop.f32.mrf.mxu0
      %3855 = vmatprep.mubr.bf16.mxu0 0
      %3856 = vmatmul.mubr.bf16.gmra.mxu0 %v3765
      %v3857 = vpop.f32.mrf.mxu0
      %v3858 = vadd.f32 %v3729, %v3857
      %v3859 = vpop.f32.mrf.mxu0
      %v3860 = vpop.f32.mrf.mxu0
      %v3861 = vadd.f32 %v3729, %v3860
      %v3862 = vpop.f32.mrf.mxu0
      %3863 = vdwg.mxu0
      %v3864 = vadd.f32 %v560, %v3802
      %v3865 = vadd.f32 %v561, %v3805
      %v3866 = vadd.f32 %v562, %v3810
      %v3867 = vadd.f32 %v563, %v3813
      %v3868 = vadd.f32 %v564, %v3818
      %v3869 = vadd.f32 %v565, %v3821
      %v3870 = vadd.f32 %v566, %v3826
      %v3871 = vadd.f32 %v567, %v3829
      %v3872 = vadd.f32 %v568, %v3834
      %v3873 = vadd.f32 %v569, %v3837
      %v3874 = vadd.f32 %v570, %v3842
      %v3875 = vadd.f32 %v571, %v3845
      %v3876 = vadd.f32 %v572, %v3850
      %v3877 = vadd.f32 %v573, %v3853
      %v3878 = vadd.f32 %v574, %v3858
      %v3879 = vadd.f32 %v575, %v3861
      %v3880 = vsel %vm576, %v3864, 0.0
      %3881 = vadd.xlane.f32.xlu0 %v3880
      %v3882 = vpop.xlane.xlu0 %3881
      %v3883 = vsel %vm576, %v3865, 0.0
      %3884 = vadd.xlane.f32.xlu0 %v3883
      %v3885 = vpop.xlane.xlu0 %3884
      %v3886 = vsel %vm576, %v3866, 0.0
      %3887 = vadd.xlane.f32.xlu0 %v3886
      %v3888 = vpop.xlane.xlu0 %3887
      %v3889 = vsel %vm576, %v3867, 0.0
      %3890 = vadd.xlane.f32.xlu0 %v3889
      %v3891 = vpop.xlane.xlu0 %3890
      %v3892 = vsel %vm576, %v3868, 0.0
      %3893 = vadd.xlane.f32.xlu0 %v3892
      %v3894 = vpop.xlane.xlu0 %3893
      %v3895 = vsel %vm576, %v3869, 0.0
      %3896 = vadd.xlane.f32.xlu0 %v3895
      %v3897 = vpop.xlane.xlu0 %3896
      %v3898 = vsel %vm576, %v3870, 0.0
      %3899 = vadd.xlane.f32.xlu0 %v3898
      %v3900 = vpop.xlane.xlu0 %3899
      %v3901 = vsel %vm576, %v3871, 0.0
      %3902 = vadd.xlane.f32.xlu0 %v3901
      %v3903 = vpop.xlane.xlu0 %3902
      %v3904 = vsel %vm576, %v3872, 0.0
      %3905 = vadd.xlane.f32.xlu0 %v3904
      %v3906 = vpop.xlane.xlu0 %3905
      %v3907 = vsel %vm576, %v3873, 0.0
      %3908 = vadd.xlane.f32.xlu0 %v3907
      %v3909 = vpop.xlane.xlu0 %3908
      %v3910 = vsel %vm576, %v3874, 0.0
      %3911 = vadd.xlane.f32.xlu0 %v3910
      %v3912 = vpop.xlane.xlu0 %3911
      %v3913 = vsel %vm576, %v3875, 0.0
      %3914 = vadd.xlane.f32.xlu0 %v3913
      %v3915 = vpop.xlane.xlu0 %3914
      %v3916 = vsel %vm576, %v3876, 0.0
      %3917 = vadd.xlane.f32.xlu0 %v3916
      %v3918 = vpop.xlane.xlu0 %3917
      %v3919 = vsel %vm576, %v3877, 0.0
      %3920 = vadd.xlane.f32.xlu0 %v3919
      %v3921 = vpop.xlane.xlu0 %3920
      %v3922 = vsel %vm576, %v3878, 0.0
      %3923 = vadd.xlane.f32.xlu0 %v3922
      %v3924 = vpop.xlane.xlu0 %3923
      %v3925 = vsel %vm576, %v3879, 0.0
      %3926 = vadd.xlane.f32.xlu0 %v3925
      %v3927 = vpop.xlane.xlu0 %3926
      %v3928 = vmul.f32 %v3882, %v625
      %v3929 = vmul.f32 %v3885, %v625
      %v3930 = vmul.f32 %v3888, %v625
      %v3931 = vmul.f32 %v3891, %v625
      %v3932 = vmul.f32 %v3894, %v625
      %v3933 = vmul.f32 %v3897, %v625
      %v3934 = vmul.f32 %v3900, %v625
      %v3935 = vmul.f32 %v3903, %v625
      %v3936 = vmul.f32 %v3906, %v625
      %v3937 = vmul.f32 %v3909, %v625
      %v3938 = vmul.f32 %v3912, %v625
      %v3939 = vmul.f32 %v3915, %v625
      %v3940 = vmul.f32 %v3918, %v625
      %v3941 = vmul.f32 %v3921, %v625
      %v3942 = vmul.f32 %v3924, %v625
      %v3943 = vmul.f32 %v3927, %v625
      %v3944 = vsub.f32 %v3864, %v3928
      %v3945 = vsub.f32 %v3865, %v3929
      %v3946 = vsub.f32 %v3866, %v3930
      %v3947 = vsub.f32 %v3867, %v3931
      %v3948 = vsub.f32 %v3868, %v3932
      %v3949 = vsub.f32 %v3869, %v3933
      %v3950 = vsub.f32 %v3870, %v3934
      %v3951 = vsub.f32 %v3871, %v3935
      %v3952 = vsub.f32 %v3872, %v3936
      %v3953 = vsub.f32 %v3873, %v3937
      %v3954 = vsub.f32 %v3874, %v3938
      %v3955 = vsub.f32 %v3875, %v3939
      %v3956 = vsub.f32 %v3876, %v3940
      %v3957 = vsub.f32 %v3877, %v3941
      %v3958 = vsub.f32 %v3878, %v3942
      %v3959 = vsub.f32 %v3879, %v3943
      %v3960 = vmul.f32 %v3944, %v3944
      %v3961 = vmul.f32 %v3945, %v3945
      %v3962 = vmul.f32 %v3946, %v3946
      %v3963 = vmul.f32 %v3947, %v3947
      %v3964 = vmul.f32 %v3948, %v3948
      %v3965 = vmul.f32 %v3949, %v3949
      %v3966 = vmul.f32 %v3950, %v3950
      %v3967 = vmul.f32 %v3951, %v3951
      %v3968 = vmul.f32 %v3952, %v3952
      %v3969 = vmul.f32 %v3953, %v3953
      %v3970 = vmul.f32 %v3954, %v3954
      %v3971 = vmul.f32 %v3955, %v3955
      %v3972 = vmul.f32 %v3956, %v3956
      %v3973 = vmul.f32 %v3957, %v3957
      %v3974 = vmul.f32 %v3958, %v3958
      %v3975 = vmul.f32 %v3959, %v3959
      %v3976 = vsel %vm576, %v3960, 0.0
      %3977 = vadd.xlane.f32.xlu0 %v3976
      %v3978 = vpop.xlane.xlu0 %3977
      %v3979 = vsel %vm576, %v3961, 0.0
      %3980 = vadd.xlane.f32.xlu0 %v3979
      %v3981 = vpop.xlane.xlu0 %3980
      %v3982 = vsel %vm576, %v3962, 0.0
      %3983 = vadd.xlane.f32.xlu0 %v3982
      %v3984 = vpop.xlane.xlu0 %3983
      %v3985 = vsel %vm576, %v3963, 0.0
      %3986 = vadd.xlane.f32.xlu0 %v3985
      %v3987 = vpop.xlane.xlu0 %3986
      %v3988 = vsel %vm576, %v3964, 0.0
      %3989 = vadd.xlane.f32.xlu0 %v3988
      %v3990 = vpop.xlane.xlu0 %3989
      %v3991 = vsel %vm576, %v3965, 0.0
      %3992 = vadd.xlane.f32.xlu0 %v3991
      %v3993 = vpop.xlane.xlu0 %3992
      %v3994 = vsel %vm576, %v3966, 0.0
      %3995 = vadd.xlane.f32.xlu0 %v3994
      %v3996 = vpop.xlane.xlu0 %3995
      %v3997 = vsel %vm576, %v3967, 0.0
      %3998 = vadd.xlane.f32.xlu0 %v3997
      %v3999 = vpop.xlane.xlu0 %3998
      %v4000 = vsel %vm576, %v3968, 0.0
      %4001 = vadd.xlane.f32.xlu0 %v4000
      %v4002 = vpop.xlane.xlu0 %4001
      %v4003 = vsel %vm576, %v3969, 0.0
      %4004 = vadd.xlane.f32.xlu0 %v4003
      %v4005 = vpop.xlane.xlu0 %4004
      %v4006 = vsel %vm576, %v3970, 0.0
      %4007 = vadd.xlane.f32.xlu0 %v4006
      %v4008 = vpop.xlane.xlu0 %4007
      %v4009 = vsel %vm576, %v3971, 0.0
      %4010 = vadd.xlane.f32.xlu0 %v4009
      %v4011 = vpop.xlane.xlu0 %4010
      %v4012 = vsel %vm576, %v3972, 0.0
      %4013 = vadd.xlane.f32.xlu0 %v4012
      %v4014 = vpop.xlane.xlu0 %4013
      %v4015 = vsel %vm576, %v3973, 0.0
      %4016 = vadd.xlane.f32.xlu0 %v4015
      %v4017 = vpop.xlane.xlu0 %4016
      %v4018 = vsel %vm576, %v3974, 0.0
      %4019 = vadd.xlane.f32.xlu0 %v4018
      %v4020 = vpop.xlane.xlu0 %4019
      %v4021 = vsel %vm576, %v3975, 0.0
      %4022 = vadd.xlane.f32.xlu0 %v4021
      %v4023 = vpop.xlane.xlu0 %4022
      %v4024 = vmul.f32 %v3978, %v625
      %v4025 = vmul.f32 %v3981, %v625
      %v4026 = vmul.f32 %v3984, %v625
      %v4027 = vmul.f32 %v3987, %v625
      %v4028 = vmul.f32 %v3990, %v625
      %v4029 = vmul.f32 %v3993, %v625
      %v4030 = vmul.f32 %v3996, %v625
      %v4031 = vmul.f32 %v3999, %v625
      %v4032 = vmul.f32 %v4002, %v625
      %v4033 = vmul.f32 %v4005, %v625
      %v4034 = vmul.f32 %v4008, %v625
      %v4035 = vmul.f32 %v4011, %v625
      %v4036 = vmul.f32 %v4014, %v625
      %v4037 = vmul.f32 %v4017, %v625
      %v4038 = vmul.f32 %v4020, %v625
      %v4039 = vmul.f32 %v4023, %v625
      %v4040 = vadd.f32 %v4024, 1e-05
      %v4041 = vadd.f32 %v4025, 1e-05
      %v4042 = vadd.f32 %v4026, 1e-05
      %v4043 = vadd.f32 %v4027, 1e-05
      %v4044 = vadd.f32 %v4028, 1e-05
      %v4045 = vadd.f32 %v4029, 1e-05
      %v4046 = vadd.f32 %v4030, 1e-05
      %v4047 = vadd.f32 %v4031, 1e-05
      %v4048 = vadd.f32 %v4032, 1e-05
      %v4049 = vadd.f32 %v4033, 1e-05
      %v4050 = vadd.f32 %v4034, 1e-05
      %v4051 = vadd.f32 %v4035, 1e-05
      %v4052 = vadd.f32 %v4036, 1e-05
      %v4053 = vadd.f32 %v4037, 1e-05
      %v4054 = vadd.f32 %v4038, 1e-05
      %v4055 = vadd.f32 %v4039, 1e-05
      %v4056 = vrsqrt.pop %v4040
      %v4057 = vrsqrt.pop %v4041
      %v4058 = vrsqrt.pop %v4042
      %v4059 = vrsqrt.pop %v4043
      %v4060 = vrsqrt.pop %v4044
      %v4061 = vrsqrt.pop %v4045
      %v4062 = vrsqrt.pop %v4046
      %v4063 = vrsqrt.pop %v4047
      %v4064 = vrsqrt.pop %v4048
      %v4065 = vrsqrt.pop %v4049
      %v4066 = vrsqrt.pop %v4050
      %v4067 = vrsqrt.pop %v4051
      %v4068 = vrsqrt.pop %v4052
      %v4069 = vrsqrt.pop %v4053
      %v4070 = vrsqrt.pop %v4054
      %v4071 = vrsqrt.pop %v4055
      %v4072 = vmul.f32 %v3944, %v4056
      %v4073 = vmul.f32 %v3945, %v4057
      %v4074 = vmul.f32 %v3946, %v4058
      %v4075 = vmul.f32 %v3947, %v4059
      %v4076 = vmul.f32 %v3948, %v4060
      %v4077 = vmul.f32 %v3949, %v4061
      %v4078 = vmul.f32 %v3950, %v4062
      %v4079 = vmul.f32 %v3951, %v4063
      %v4080 = vmul.f32 %v3952, %v4064
      %v4081 = vmul.f32 %v3953, %v4065
      %v4082 = vmul.f32 %v3954, %v4066
      %v4083 = vmul.f32 %v3955, %v4067
      %v4084 = vmul.f32 %v3956, %v4068
      %v4085 = vmul.f32 %v3957, %v4069
      %v4086 = vmul.f32 %v3958, %v4070
      %v4087 = vmul.f32 %v3959, %v4071
      %v4088 = vld [vmem:[%s8] sm:$0x1]
      %v4090 = vlaneseq
      %v4091 = vshrl.u32 %v4090, 7
      %v4092 = vsub.s32 0, %v4091
      %v4093 = vrot.slane %v4088, %v4092
      %v4095 = vmul.f32 %v4072, %v4093
      %v4096 = vmul.f32 %v4073, %v4093
      %v4097 = vmul.f32 %v4074, %v4093
      %v4098 = vmul.f32 %v4075, %v4093
      %v4099 = vmul.f32 %v4076, %v4093
      %v4100 = vmul.f32 %v4077, %v4093
      %v4101 = vmul.f32 %v4078, %v4093
      %v4102 = vmul.f32 %v4079, %v4093
      %v4103 = vmul.f32 %v4080, %v4093
      %v4104 = vmul.f32 %v4081, %v4093
      %v4105 = vmul.f32 %v4082, %v4093
      %v4106 = vmul.f32 %v4083, %v4093
      %v4107 = vmul.f32 %v4084, %v4093
      %v4108 = vmul.f32 %v4085, %v4093
      %v4109 = vmul.f32 %v4086, %v4093
      %v4110 = vmul.f32 %v4087, %v4093
      %v4111 = vld [vmem:[%s9] sm:$0x1]
      %v4113 = vlaneseq
      %v4114 = vshrl.u32 %v4113, 7
      %v4115 = vsub.s32 0, %v4114
      %v4116 = vrot.slane %v4111, %v4115
      %v4118 = vadd.f32 %v4095, %v4116
      %v4119 = vadd.f32 %v4096, %v4116
      %v4120 = vadd.f32 %v4097, %v4116
      %v4121 = vadd.f32 %v4098, %v4116
      %v4122 = vadd.f32 %v4099, %v4116
      %v4123 = vadd.f32 %v4100, %v4116
      %v4124 = vadd.f32 %v4101, %v4116
      %v4125 = vadd.f32 %v4102, %v4116
      %v4126 = vadd.f32 %v4103, %v4116
      %v4127 = vadd.f32 %v4104, %v4116
      %v4128 = vadd.f32 %v4105, %v4116
      %v4129 = vadd.f32 %v4106, %v4116
      %v4130 = vadd.f32 %v4107, %v4116
      %v4131 = vadd.f32 %v4108, %v4116
      %v4132 = vadd.f32 %v4109, %v4116
      %v4133 = vadd.f32 %v4110, %v4116
      %v4134 = vpack.c.bf16 %v4119, %v4118
      %v4135 = vpack.c.bf16 %v4121, %v4120
      %v4136 = vpack.c.bf16 %v4123, %v4122
      %v4137 = vpack.c.bf16 %v4125, %v4124
      %v4138 = vpack.c.bf16 %v4127, %v4126
      %v4139 = vpack.c.bf16 %v4129, %v4128
      %v4140 = vpack.c.bf16 %v4131, %v4130
      %v4141 = vpack.c.bf16 %v4133, %v4132
      %v4142 = vld [vmem:[%s10] sm:$0xf]
      %v4143 = vld [vmem:[%s10 + $0x4] sm:$0xf]
      %v4144 = vld [vmem:[%s10 + $0x8] sm:$0xf]
      %v4145 = vld [vmem:[%s10 + $0xc] sm:$0xf]
      %v4146 = vld [vmem:[%s11] sm:$0x1]
      %v4148 = vlaneseq
      %v4149 = vshrl.u32 %v4148, 7
      %v4150 = vsub.s32 0, %v4149
      %v4151 = vrot.slane %v4146, %v4150
      %v4157 = vunpack.c.l.b16 %v4142
      %v4158 = vunpack.c.l.b16 %v4143
      %v4159 = vunpack.c.l.b16 %v4144
      %v4160 = vunpack.c.l.b16 %v4145
      %v4161 = vpack.c.b16 %v4158, %v4157
      %v4162 = vpack.c.b16 %v4160, %v4159
      %v4166 = vsel %vm576, %v4134, 0
      %v4169 = vsel %vm576, %v4135, 0
      %v4172 = vsel %vm576, %v4136, 0
      %v4175 = vsel %vm576, %v4137, 0
      %v4178 = vsel %vm576, %v4138, 0
      %v4181 = vsel %vm576, %v4139, 0
      %v4184 = vsel %vm576, %v4140, 0
      %v4187 = vsel %vm576, %v4141, 0
      %4189 = vmatprep.subr.bf16.mxu0 0
      %4190 = vmatpush1.bf16.msra.mxu0 0
      %4191 = vmatprep.subr.bf16.mxu0 0
      %4192 = vmatpush1.bf16.msra.mxu0 0
      %4193 = vmatprep.subr.bf16.mxu0 0
      %4194 = vmatpush1.bf16.msra.mxu0 0
      %4195 = vmatprep.subr.bf16.mxu0 0
      %4196 = vmatpush1.bf16.msra.mxu0 0
      %4197 = vmatprep.subr.bf16.mxu0 0
      %4198 = vmatpush1.bf16.msra.mxu0 0
      %4199 = vmatprep.subr.bf16.mxu0 0
      %4200 = vmatpush1.bf16.msra.mxu0 0
      %4201 = vmatprep.subr.bf16.mxu0 0
      %4202 = vmatpush1.bf16.msra.mxu0 %v4162
      %4203 = vmatprep.subr.bf16.mxu0 0
      %4204 = vmatpush1.bf16.msra.mxu0 %v4161
      %4205 = vmatprep.subr.bf16.mxu0 0
      %4206 = vmatpush2.bf16.msra.mxu0 0
      %4207 = vmatprep.subr.bf16.mxu0 0
      %4208 = vmatpush2.bf16.msra.mxu0 0
      %4209 = vmatprep.subr.bf16.mxu0 0
      %4210 = vmatpush2.bf16.msra.mxu0 0
      %4211 = vmatprep.subr.bf16.mxu0 0
      %4212 = vmatpush2.bf16.msra.mxu0 0
      %4213 = vmatprep.subr.bf16.mxu0 0
      %4214 = vmatpush2.bf16.msra.mxu0 0
      %4215 = vmatprep.subr.bf16.mxu0 0
      %4216 = vmatpush2.bf16.msra.mxu0 0
      %4217 = vmatprep.subr.bf16.mxu0 0
      %4218 = vmatpush2.bf16.msra.mxu0 0
      %4219 = vmatprep.subr.bf16.mxu0 0
      %4220 = vmatpush2.bf16.msra.mxu0 0
      %4221 = vmatprep.mubr.bf16.mxu0 0
      %4222 = vmatmul.mubr.bf16.gmra.mxu0 %v4166
      %v4223 = vpop.f32.mrf.mxu0
      %v4224 = vadd.f32 %v4151, %v4223
      %v4225 = vpop.f32.mrf.mxu0
      %v4226 = vpop.f32.mrf.mxu0
      %v4227 = vadd.f32 %v4151, %v4226
      %v4228 = vpop.f32.mrf.mxu0
      %4229 = vmatprep.mubr.bf16.mxu0 0
      %4230 = vmatmul.mubr.bf16.gmra.mxu0 %v4169
      %v4231 = vpop.f32.mrf.mxu0
      %v4232 = vadd.f32 %v4151, %v4231
      %v4233 = vpop.f32.mrf.mxu0
      %v4234 = vpop.f32.mrf.mxu0
      %v4235 = vadd.f32 %v4151, %v4234
      %v4236 = vpop.f32.mrf.mxu0
      %4237 = vmatprep.mubr.bf16.mxu0 0
      %4238 = vmatmul.mubr.bf16.gmra.mxu0 %v4172
      %v4239 = vpop.f32.mrf.mxu0
      %v4240 = vadd.f32 %v4151, %v4239
      %v4241 = vpop.f32.mrf.mxu0
      %v4242 = vpop.f32.mrf.mxu0
      %v4243 = vadd.f32 %v4151, %v4242
      %v4244 = vpop.f32.mrf.mxu0
      %4245 = vmatprep.mubr.bf16.mxu0 0
      %4246 = vmatmul.mubr.bf16.gmra.mxu0 %v4175
      %v4247 = vpop.f32.mrf.mxu0
      %v4248 = vadd.f32 %v4151, %v4247
      %v4249 = vpop.f32.mrf.mxu0
      %v4250 = vpop.f32.mrf.mxu0
      %v4251 = vadd.f32 %v4151, %v4250
      %v4252 = vpop.f32.mrf.mxu0
      %4253 = vmatprep.mubr.bf16.mxu0 0
      %4254 = vmatmul.mubr.bf16.gmra.mxu0 %v4178
      %v4255 = vpop.f32.mrf.mxu0
      %v4256 = vadd.f32 %v4151, %v4255
      %v4257 = vpop.f32.mrf.mxu0
      %v4258 = vpop.f32.mrf.mxu0
      %v4259 = vadd.f32 %v4151, %v4258
      %v4260 = vpop.f32.mrf.mxu0
      %4261 = vmatprep.mubr.bf16.mxu0 0
      %4262 = vmatmul.mubr.bf16.gmra.mxu0 %v4181
      %v4263 = vpop.f32.mrf.mxu0
      %v4264 = vadd.f32 %v4151, %v4263
      %v4265 = vpop.f32.mrf.mxu0
      %v4266 = vpop.f32.mrf.mxu0
      %v4267 = vadd.f32 %v4151, %v4266
      %v4268 = vpop.f32.mrf.mxu0
      %4269 = vmatprep.mubr.bf16.mxu0 0
      %4270 = vmatmul.mubr.bf16.gmra.mxu0 %v4184
      %v4271 = vpop.f32.mrf.mxu0
      %v4272 = vadd.f32 %v4151, %v4271
      %v4273 = vpop.f32.mrf.mxu0
      %v4274 = vpop.f32.mrf.mxu0
      %v4275 = vadd.f32 %v4151, %v4274
      %v4276 = vpop.f32.mrf.mxu0
      %4277 = vmatprep.mubr.bf16.mxu0 0
      %4278 = vmatmul.mubr.bf16.gmra.mxu0 %v4187
      %v4279 = vpop.f32.mrf.mxu0
      %v4280 = vadd.f32 %v4151, %v4279
      %v4281 = vpop.f32.mrf.mxu0
      %v4282 = vpop.f32.mrf.mxu0
      %v4283 = vadd.f32 %v4151, %v4282
      %v4284 = vpop.f32.mrf.mxu0
      %4285 = vdwg.mxu0
      %v4286 = vmul.f32 %v4224, 0.5
      %v4287 = vmul.f32 %v4227, 0.5
      %v4288 = vmul.f32 %v4232, 0.5
      %v4289 = vmul.f32 %v4235, 0.5
      %v4290 = vmul.f32 %v4240, 0.5
      %v4291 = vmul.f32 %v4243, 0.5
      %v4292 = vmul.f32 %v4248, 0.5
      %v4293 = vmul.f32 %v4251, 0.5
      %v4294 = vmul.f32 %v4256, 0.5
      %v4295 = vmul.f32 %v4259, 0.5
      %v4296 = vmul.f32 %v4264, 0.5
      %v4297 = vmul.f32 %v4267, 0.5
      %v4298 = vmul.f32 %v4272, 0.5
      %v4299 = vmul.f32 %v4275, 0.5
      %v4300 = vmul.f32 %v4280, 0.5
      %v4301 = vmul.f32 %v4283, 0.5
      %v4302 = vmul.f32 %v4224, 0.044715
      %v4303 = vmul.f32 %v4227, 0.044715
      %v4304 = vmul.f32 %v4232, 0.044715
      %v4305 = vmul.f32 %v4235, 0.044715
      %v4306 = vmul.f32 %v4240, 0.044715
      %v4307 = vmul.f32 %v4243, 0.044715
      %v4308 = vmul.f32 %v4248, 0.044715
      %v4309 = vmul.f32 %v4251, 0.044715
      %v4310 = vmul.f32 %v4256, 0.044715
      %v4311 = vmul.f32 %v4259, 0.044715
      %v4312 = vmul.f32 %v4264, 0.044715
      %v4313 = vmul.f32 %v4267, 0.044715
      %v4314 = vmul.f32 %v4272, 0.044715
      %v4315 = vmul.f32 %v4275, 0.044715
      %v4316 = vmul.f32 %v4280, 0.044715
      %v4317 = vmul.f32 %v4283, 0.044715
      %v4318 = vmul.f32 %v4302, %v4224
      %v4319 = vmul.f32 %v4303, %v4227
      %v4320 = vmul.f32 %v4304, %v4232
      %v4321 = vmul.f32 %v4305, %v4235
      %v4322 = vmul.f32 %v4306, %v4240
      %v4323 = vmul.f32 %v4307, %v4243
      %v4324 = vmul.f32 %v4308, %v4248
      %v4325 = vmul.f32 %v4309, %v4251
      %v4326 = vmul.f32 %v4310, %v4256
      %v4327 = vmul.f32 %v4311, %v4259
      %v4328 = vmul.f32 %v4312, %v4264
      %v4329 = vmul.f32 %v4313, %v4267
      %v4330 = vmul.f32 %v4314, %v4272
      %v4331 = vmul.f32 %v4315, %v4275
      %v4332 = vmul.f32 %v4316, %v4280
      %v4333 = vmul.f32 %v4317, %v4283
      %v4334 = vmul.f32 %v4318, %v4224
      %v4335 = vmul.f32 %v4319, %v4227
      %v4336 = vmul.f32 %v4320, %v4232
      %v4337 = vmul.f32 %v4321, %v4235
      %v4338 = vmul.f32 %v4322, %v4240
      %v4339 = vmul.f32 %v4323, %v4243
      %v4340 = vmul.f32 %v4324, %v4248
      %v4341 = vmul.f32 %v4325, %v4251
      %v4342 = vmul.f32 %v4326, %v4256
      %v4343 = vmul.f32 %v4327, %v4259
      %v4344 = vmul.f32 %v4328, %v4264
      %v4345 = vmul.f32 %v4329, %v4267
      %v4346 = vmul.f32 %v4330, %v4272
      %v4347 = vmul.f32 %v4331, %v4275
      %v4348 = vmul.f32 %v4332, %v4280
      %v4349 = vmul.f32 %v4333, %v4283
      %v4350 = vadd.f32 %v4224, %v4334
      %v4351 = vadd.f32 %v4227, %v4335
      %v4352 = vadd.f32 %v4232, %v4336
      %v4353 = vadd.f32 %v4235, %v4337
      %v4354 = vadd.f32 %v4240, %v4338
      %v4355 = vadd.f32 %v4243, %v4339
      %v4356 = vadd.f32 %v4248, %v4340
      %v4357 = vadd.f32 %v4251, %v4341
      %v4358 = vadd.f32 %v4256, %v4342
      %v4359 = vadd.f32 %v4259, %v4343
      %v4360 = vadd.f32 %v4264, %v4344
      %v4361 = vadd.f32 %v4267, %v4345
      %v4362 = vadd.f32 %v4272, %v4346
      %v4363 = vadd.f32 %v4275, %v4347
      %v4364 = vadd.f32 %v4280, %v4348
      %v4365 = vadd.f32 %v4283, %v4349
      %v4366 = vmul.f32 %v4350, 0.7978846
      %v4367 = vmul.f32 %v4351, 0.7978846
      %v4368 = vmul.f32 %v4352, 0.7978846
      %v4369 = vmul.f32 %v4353, 0.7978846
      %v4370 = vmul.f32 %v4354, 0.7978846
      %v4371 = vmul.f32 %v4355, 0.7978846
      %v4372 = vmul.f32 %v4356, 0.7978846
      %v4373 = vmul.f32 %v4357, 0.7978846
      %v4374 = vmul.f32 %v4358, 0.7978846
      %v4375 = vmul.f32 %v4359, 0.7978846
      %v4376 = vmul.f32 %v4360, 0.7978846
      %v4377 = vmul.f32 %v4361, 0.7978846
      %v4378 = vmul.f32 %v4362, 0.7978846
      %v4379 = vmul.f32 %v4363, 0.7978846
      %v4380 = vmul.f32 %v4364, 0.7978846
      %v4381 = vmul.f32 %v4365, 0.7978846
      %v4382 = vtanh.pop %v4366
      %v4383 = vtanh.pop %v4367
      %v4384 = vtanh.pop %v4368
      %v4385 = vtanh.pop %v4369
      %v4386 = vtanh.pop %v4370
      %v4387 = vtanh.pop %v4371
      %v4388 = vtanh.pop %v4372
      %v4389 = vtanh.pop %v4373
      %v4390 = vtanh.pop %v4374
      %v4391 = vtanh.pop %v4375
      %v4392 = vtanh.pop %v4376
      %v4393 = vtanh.pop %v4377
      %v4394 = vtanh.pop %v4378
      %v4395 = vtanh.pop %v4379
      %v4396 = vtanh.pop %v4380
      %v4397 = vtanh.pop %v4381
      %v4398 = vadd.f32 %v4382, 1.0
      %v4399 = vadd.f32 %v4383, 1.0
      %v4400 = vadd.f32 %v4384, 1.0
      %v4401 = vadd.f32 %v4385, 1.0
      %v4402 = vadd.f32 %v4386, 1.0
      %v4403 = vadd.f32 %v4387, 1.0
      %v4404 = vadd.f32 %v4388, 1.0
      %v4405 = vadd.f32 %v4389, 1.0
      %v4406 = vadd.f32 %v4390, 1.0
      %v4407 = vadd.f32 %v4391, 1.0
      %v4408 = vadd.f32 %v4392, 1.0
      %v4409 = vadd.f32 %v4393, 1.0
      %v4410 = vadd.f32 %v4394, 1.0
      %v4411 = vadd.f32 %v4395, 1.0
      %v4412 = vadd.f32 %v4396, 1.0
      %v4413 = vadd.f32 %v4397, 1.0
      %v4414 = vmul.f32 %v4286, %v4398
      %v4415 = vmul.f32 %v4287, %v4399
      %v4416 = vmul.f32 %v4288, %v4400
      %v4417 = vmul.f32 %v4289, %v4401
      %v4418 = vmul.f32 %v4290, %v4402
      %v4419 = vmul.f32 %v4291, %v4403
      %v4420 = vmul.f32 %v4292, %v4404
      %v4421 = vmul.f32 %v4293, %v4405
      %v4422 = vmul.f32 %v4294, %v4406
      %v4423 = vmul.f32 %v4295, %v4407
      %v4424 = vmul.f32 %v4296, %v4408
      %v4425 = vmul.f32 %v4297, %v4409
      %v4426 = vmul.f32 %v4298, %v4410
      %v4427 = vmul.f32 %v4299, %v4411
      %v4428 = vmul.f32 %v4300, %v4412
      %v4429 = vmul.f32 %v4301, %v4413
      %v4430 = vpack.c.bf16 %v4415, %v4414
      %v4431 = vpack.c.bf16 %v4417, %v4416
      %v4432 = vpack.c.bf16 %v4419, %v4418
      %v4433 = vpack.c.bf16 %v4421, %v4420
      %v4434 = vpack.c.bf16 %v4423, %v4422
      %v4435 = vpack.c.bf16 %v4425, %v4424
      %v4436 = vpack.c.bf16 %v4427, %v4426
      %v4437 = vpack.c.bf16 %v4429, %v4428
      %v4438 = vld [vmem:[%s12] sm:$0xf]
      %v4439 = vld [vmem:[%s12 + $0x4] sm:$0xf]
      %v4440 = vld [vmem:[%s12 + $0x8] sm:$0xf]
      %v4441 = vld [vmem:[%s12 + $0xc] sm:$0xf]
      %v4442 = vld [vmem:[%s12 + $0x10] sm:$0xf]
      %v4443 = vld [vmem:[%s12 + $0x14] sm:$0xf]
      %v4444 = vld [vmem:[%s12 + $0x18] sm:$0xf]
      %v4445 = vld [vmem:[%s12 + $0x1c] sm:$0xf]
      %v4446 = vld [vmem:[%s12 + $0x20] sm:$0xf]
      %v4447 = vld [vmem:[%s12 + $0x24] sm:$0xf]
      %v4448 = vld [vmem:[%s12 + $0x28] sm:$0xf]
      %v4449 = vld [vmem:[%s12 + $0x2c] sm:$0xf]
      %v4450 = vld [vmem:[%s12 + $0x30] sm:$0xf]
      %v4451 = vld [vmem:[%s12 + $0x34] sm:$0xf]
      %v4452 = vld [vmem:[%s12 + $0x38] sm:$0xf]
      %v4453 = vld [vmem:[%s12 + $0x3c] sm:$0xf]
      %v4454 = vld [vmem:[%s13] sm:$0x1]
      %v4456 = vlaneseq
      %v4457 = vshrl.u32 %v4456, 7
      %v4458 = vsub.s32 0, %v4457
      %v4459 = vrot.slane %v4454, %v4458
      %v4477 = vunpack.c.l.b16 %v4438
      %v4478 = vunpack.c.l.b16 %v4439
      %v4479 = vunpack.c.l.b16 %v4440
      %v4480 = vunpack.c.l.b16 %v4441
      %v4481 = vunpack.c.l.b16 %v4442
      %v4482 = vunpack.c.l.b16 %v4443
      %v4483 = vunpack.c.l.b16 %v4444
      %v4484 = vunpack.c.l.b16 %v4445
      %v4485 = vunpack.c.l.b16 %v4446
      %v4486 = vunpack.c.l.b16 %v4447
      %v4487 = vunpack.c.l.b16 %v4448
      %v4488 = vunpack.c.l.b16 %v4449
      %v4489 = vunpack.c.l.b16 %v4450
      %v4490 = vunpack.c.l.b16 %v4451
      %v4491 = vunpack.c.l.b16 %v4452
      %v4492 = vunpack.c.l.b16 %v4453
      %v4493 = vpack.c.b16 %v4478, %v4477
      %v4494 = vpack.c.b16 %v4480, %v4479
      %v4495 = vpack.c.b16 %v4482, %v4481
      %v4496 = vpack.c.b16 %v4484, %v4483
      %v4497 = vpack.c.b16 %v4486, %v4485
      %v4498 = vpack.c.b16 %v4488, %v4487
      %v4499 = vpack.c.b16 %v4490, %v4489
      %v4500 = vpack.c.b16 %v4492, %v4491
      %4509 = vmatprep.subr.bf16.mxu0 0
      %4510 = vmatpush1.bf16.msra.mxu0 %v4500
      %4511 = vmatprep.subr.bf16.mxu0 0
      %4512 = vmatpush1.bf16.msra.mxu0 %v4499
      %4513 = vmatprep.subr.bf16.mxu0 0
      %4514 = vmatpush1.bf16.msra.mxu0 %v4498
      %4515 = vmatprep.subr.bf16.mxu0 0
      %4516 = vmatpush1.bf16.msra.mxu0 %v4497
      %4517 = vmatprep.subr.bf16.mxu0 0
      %4518 = vmatpush1.bf16.msra.mxu0 %v4496
      %4519 = vmatprep.subr.bf16.mxu0 0
      %4520 = vmatpush1.bf16.msra.mxu0 %v4495
      %4521 = vmatprep.subr.bf16.mxu0 0
      %4522 = vmatpush1.bf16.msra.mxu0 %v4494
      %4523 = vmatprep.subr.bf16.mxu0 0
      %4524 = vmatpush1.bf16.msra.mxu0 %v4493
      %4525 = vmatprep.subr.bf16.mxu0 0
      %4526 = vmatpush2.bf16.msra.mxu0 0
      %4527 = vmatprep.subr.bf16.mxu0 0
      %4528 = vmatpush2.bf16.msra.mxu0 0
      %4529 = vmatprep.subr.bf16.mxu0 0
      %4530 = vmatpush2.bf16.msra.mxu0 0
      %4531 = vmatprep.subr.bf16.mxu0 0
      %4532 = vmatpush2.bf16.msra.mxu0 0
      %4533 = vmatprep.subr.bf16.mxu0 0
      %4534 = vmatpush2.bf16.msra.mxu0 0
      %4535 = vmatprep.subr.bf16.mxu0 0
      %4536 = vmatpush2.bf16.msra.mxu0 0
      %4537 = vmatprep.subr.bf16.mxu0 0
      %4538 = vmatpush2.bf16.msra.mxu0 0
      %4539 = vmatprep.subr.bf16.mxu0 0
      %4540 = vmatpush2.bf16.msra.mxu0 0
      %4541 = vmatprep.mubr.bf16.mxu0 0
      %4542 = vmatmul.mubr.bf16.gmra.mxu0 %v4430
      %v4543 = vpop.f32.mrf.mxu0
      %v4544 = vadd.f32 %v4459, %v4543
      %v4545 = vpop.f32.mrf.mxu0
      %v4546 = vpop.f32.mrf.mxu0
      %v4547 = vadd.f32 %v4459, %v4546
      %v4548 = vpop.f32.mrf.mxu0
      %4549 = vmatprep.mubr.bf16.mxu0 0
      %4550 = vmatmul.mubr.bf16.gmra.mxu0 %v4431
      %v4551 = vpop.f32.mrf.mxu0
      %v4552 = vadd.f32 %v4459, %v4551
      %v4553 = vpop.f32.mrf.mxu0
      %v4554 = vpop.f32.mrf.mxu0
      %v4555 = vadd.f32 %v4459, %v4554
      %v4556 = vpop.f32.mrf.mxu0
      %4557 = vmatprep.mubr.bf16.mxu0 0
      %4558 = vmatmul.mubr.bf16.gmra.mxu0 %v4432
      %v4559 = vpop.f32.mrf.mxu0
      %v4560 = vadd.f32 %v4459, %v4559
      %v4561 = vpop.f32.mrf.mxu0
      %v4562 = vpop.f32.mrf.mxu0
      %v4563 = vadd.f32 %v4459, %v4562
      %v4564 = vpop.f32.mrf.mxu0
      %4565 = vmatprep.mubr.bf16.mxu0 0
      %4566 = vmatmul.mubr.bf16.gmra.mxu0 %v4433
      %v4567 = vpop.f32.mrf.mxu0
      %v4568 = vadd.f32 %v4459, %v4567
      %v4569 = vpop.f32.mrf.mxu0
      %v4570 = vpop.f32.mrf.mxu0
      %v4571 = vadd.f32 %v4459, %v4570
      %v4572 = vpop.f32.mrf.mxu0
      %4573 = vmatprep.mubr.bf16.mxu0 0
      %4574 = vmatmul.mubr.bf16.gmra.mxu0 %v4434
      %v4575 = vpop.f32.mrf.mxu0
      %v4576 = vadd.f32 %v4459, %v4575
      %v4577 = vpop.f32.mrf.mxu0
      %v4578 = vpop.f32.mrf.mxu0
      %v4579 = vadd.f32 %v4459, %v4578
      %v4580 = vpop.f32.mrf.mxu0
      %4581 = vmatprep.mubr.bf16.mxu0 0
      %4582 = vmatmul.mubr.bf16.gmra.mxu0 %v4435
      %v4583 = vpop.f32.mrf.mxu0
      %v4584 = vadd.f32 %v4459, %v4583
      %v4585 = vpop.f32.mrf.mxu0
      %v4586 = vpop.f32.mrf.mxu0
      %v4587 = vadd.f32 %v4459, %v4586
      %v4588 = vpop.f32.mrf.mxu0
      %4589 = vmatprep.mubr.bf16.mxu0 0
      %4590 = vmatmul.mubr.bf16.gmra.mxu0 %v4436
      %v4591 = vpop.f32.mrf.mxu0
      %v4592 = vadd.f32 %v4459, %v4591
      %v4593 = vpop.f32.mrf.mxu0
      %v4594 = vpop.f32.mrf.mxu0
      %v4595 = vadd.f32 %v4459, %v4594
      %v4596 = vpop.f32.mrf.mxu0
      %4597 = vmatprep.mubr.bf16.mxu0 0
      %4598 = vmatmul.mubr.bf16.gmra.mxu0 %v4437
      %v4599 = vpop.f32.mrf.mxu0
      %v4600 = vadd.f32 %v4459, %v4599
      %v4601 = vpop.f32.mrf.mxu0
      %v4602 = vpop.f32.mrf.mxu0
      %v4603 = vadd.f32 %v4459, %v4602
      %v4604 = vpop.f32.mrf.mxu0
      %4605 = vdwg.mxu0
      %v4606 = vadd.f32 %v3864, %v4544
      %v4607 = vadd.f32 %v3865, %v4547
      %v4608 = vadd.f32 %v3866, %v4552
      %v4609 = vadd.f32 %v3867, %v4555
      %v4610 = vadd.f32 %v3868, %v4560
      %v4611 = vadd.f32 %v3869, %v4563
      %v4612 = vadd.f32 %v3870, %v4568
      %v4613 = vadd.f32 %v3871, %v4571
      %v4614 = vadd.f32 %v3872, %v4576
      %v4615 = vadd.f32 %v3873, %v4579
      %v4616 = vadd.f32 %v3874, %v4584
      %v4617 = vadd.f32 %v3875, %v4587
      %v4618 = vadd.f32 %v3876, %v4592
      %v4619 = vadd.f32 %v3877, %v4595
      %v4620 = vadd.f32 %v3878, %v4600
      %v4621 = vadd.f32 %v3879, %v4603
      %4622 = vst.msk [vmem:[%s557] sm:$0xff] %vm576, %v4606
      %4623 = vst.msk [vmem:[%s557 + $0x8] sm:$0xff] %vm576, %v4607
      %4624 = vst.msk [vmem:[%s557 + $0x10] sm:$0xff] %vm576, %v4608
      %4625 = vst.msk [vmem:[%s557 + $0x18] sm:$0xff] %vm576, %v4609
      %4626 = vst.msk [vmem:[%s557 + $0x20] sm:$0xff] %vm576, %v4610
      %4627 = vst.msk [vmem:[%s557 + $0x28] sm:$0xff] %vm576, %v4611
      %4628 = vst.msk [vmem:[%s557 + $0x30] sm:$0xff] %vm576, %v4612
      %4629 = vst.msk [vmem:[%s557 + $0x38] sm:$0xff] %vm576, %v4613
      %4630 = vst.msk [vmem:[%s557 + $0x40] sm:$0xff] %vm576, %v4614
      %4631 = vst.msk [vmem:[%s557 + $0x48] sm:$0xff] %vm576, %v4615
      %4632 = vst.msk [vmem:[%s557 + $0x50] sm:$0xff] %vm576, %v4616
      %4633 = vst.msk [vmem:[%s557 + $0x58] sm:$0xff] %vm576, %v4617
      %4634 = vst.msk [vmem:[%s557 + $0x60] sm:$0xff] %vm576, %v4618
      %4635 = vst.msk [vmem:[%s557 + $0x68] sm:$0xff] %vm576, %v4619
      %4636 = vst.msk [vmem:[%s557 + $0x70] sm:$0xff] %vm576, %v4620
      %4637 = vst.msk [vmem:[%s557 + $0x78] sm:$0xff] %vm576, %v4621
      %s4638 = smul.u32 16, %s31
      %p4639 = scmp.lt.s32.totalorder %s30, 1
      %s4640 = scalar_select %p4639, %s30, 1
      %p4641 = scmp.lt.s32.totalorder %s4638, 31
      %s4642 = scalar_select %p4641, %s4638, 31
      %s4643 = smul.addr %s4640, 32
      %s4644 = sadd.s32 %s4642, %s4643
      %s4645 = smul.addr %s4644, 8
      %s4646 = scalar_lea.vmem %s15, %s4645
      // Predicated region
      $region81: #{tpu_custom_call.1} parent=79 // pred_check
        %p4647 = pneg %p385
      $region82: #{tpu_custom_call.1} parent=79 // pred_check_branch
        %4649 = sbr.rel (%p4647) target = $region84
      $region83: #{tpu_custom_call.1} parent=79 // pred_region
        %s4650 = smul.u32 16, %s31
      $region84: #{tpu_custom_call.1} parent=79 // pred_fallthru
        _
    $region80: #{tpu_custom_call.1} parent=5 // pred_fallthru
      _
    %p4651 = scmp.le.s32.totalorder 2, %s21
    // Predicated region
    $region85: #{tpu_custom_call.1} parent=5 // pred_check
      %p4652 = pneg %p4651
    $region86: #{tpu_custom_call.1} parent=5 // pred_check_branch
      %4654 = sbr.rel (%p4652) target = $region88
    $region87: #{tpu_custom_call.1} parent=5 // pred_region
      %s4655 = ssub.s32 %s21, 2
      // Predicated region
      $region89: #{tpu_custom_call.1} parent=87 // pred_check
        %p4656 = pneg %p391
      $region90: #{tpu_custom_call.1} parent=87 // pred_check_branch
        %4658 = sbr.rel (%p4656) target = $region92
      $region91: #{tpu_custom_call.1} parent=87 // pred_region
        %s4659 = smul.u32 16, %s33
        %p4660 = scmp.lt.s32.totalorder %s32, 1
        %s4661 = scalar_select %p4660, %s32, 1
        %p4662 = scmp.lt.s32.totalorder %s4659, 31
        %s4663 = scalar_select %p4662, %s4659, 31
        %s4664 = smul.addr %s4661, 32
        %s4665 = sadd.s32 %s4663, %s4664
        %s4666 = smul.addr %s4665, 8
        %s4667 = scalar_lea.vmem %s15, %s4666
      $region92: #{tpu_custom_call.1} parent=87 // pred_fallthru
        _
    $region88: #{tpu_custom_call.1} parent=5 // pred_fallthru
      _
  $region6: #{tpu_custom_call.1} parent=0 // loop_footer
    %s25 = sadd.s32 1, %s21
  $region7: #{tpu_custom_call.1} parent=0 // loop_footer_branch
    %20 = sbr.rel target = $region3
  $region8: #{tpu_custom_call.1} parent=0 // loop_exit
    _

</llo_original>
